<compile_context>
chip_gen: v7x
topology: tpu7x:2x2x1
jax: 0.10.0
libtpu: 0.0.40
codegen_flags: <defaults>
</compile_context>

<pallas_src>
import functools
import math

import jax
import jax.numpy as jnp
import numpy as np
from jax.experimental import pallas as pl
from jax.experimental.pallas import tpu as pltpu


# ----------------------------------------------------------------------------
# Fused kernel: LayerNorm + masked-average pooling for 4 streams + align matmuls
# ----------------------------------------------------------------------------
def _cm2_fused_kernel(num_tok_ref, num_w_ref,
                      catcol_tok_ref, catcol_w_ref,
                      catval_tok_ref, cathdr_tok_ref, catval_w_ref,
                      gh_ref, bh_ref, gv_ref, bv_ref,
                      bias_ref, w_ref,
                      numcol_o, catcol_o, xcatval_o, xcathdr_o, biasrow_o,
                      *, ln_eps):
    gh = gh_ref[...]                                    # (1, V) header LN gamma
    bh = bh_ref[...]                                    # (1, V) header LN beta
    gv = gv_ref[...]                                    # (1, V) value LN gamma
    bv = bv_ref[...]                                    # (1, V) value LN beta
    w = w_ref[...]                                      # (V, H) bf16, loaded once

    def ln_pool(tok, pw, g, b):
        # tok: (R, L, V) f32, pw: (R, L, 1) pre-normalized mask weights
        mu = jnp.mean(tok, axis=-1, keepdims=True)
        var = jnp.mean(jnp.square(tok - mu), axis=-1, keepdims=True)
        y = (tok - mu) * jax.lax.rsqrt(var + ln_eps) * g + b      # (R, L, V)
        return jnp.sum(y * pw, axis=1)                            # (R, V)

    def align(x):
        # bf16 operands on the MXU, f32 accumulation
        return jnp.dot(x.astype(jnp.bfloat16), w,
                       preferred_element_type=jnp.float32)

    num_col = ln_pool(num_tok_ref[...], num_w_ref[...], gh, bh)        # (Nn, V)
    cat_col = ln_pool(catcol_tok_ref[...], catcol_w_ref[...], gh, bh)  # (Nc, V)
    cat_pw = catval_w_ref[...]                                         # shared weights
    xcat_val = ln_pool(catval_tok_ref[...], cat_pw, gv, bv)            # (B*Nc, V)
    xcat_hdr = ln_pool(cathdr_tok_ref[...], cat_pw, gh, bh)            # (B*Nc, V)

    numcol_o[...] = align(num_col)              # (Nn, H)   = num_col_emb @ W
    catcol_o[...] = align(cat_col)              # (Nc, H)   = cat_col_emb @ W
    xcatval_o[...] = align(xcat_val)            # (B*Nc, H) = x_cat_value_emb @ W
    xcathdr_o[...] = align(xcat_hdr)            # (B*Nc, H) = x_cat_header_emb @ W
    biasrow_o[...] = align(bias_ref[...])       # (1, H)    = num_bias @ W


def _cm2_fused_call(num_tok, num_w, catcol_tok, catcol_w,
                    catval_tok, cathdr_tok, catval_w,
                    gh, bh, gv, bv, num_bias, w_bf16, *, ln_eps=1e-5):
    Nn, L1, V = num_tok.shape
    Nc, L3, _ = catcol_tok.shape
    R, L2, _ = catval_tok.shape                 # R = B * Nc
    H = w_bf16.shape[1]

    def full(shape):
        n = len(shape)
        return pl.BlockSpec(shape, lambda i, _n=n: (0,) * _n)

    tot_tok = Nn * L1 + Nc * L3 + 2 * R * L2
    m_rows = Nn + Nc + 2 * R + 1
    cost = pl.CostEstimate(
        flops=2 * m_rows * V * H + 10 * tot_tok * V,
        transcendentals=tot_tok,
        bytes_accessed=4 * tot_tok * V + 2 * V * H + 4 * H * m_rows + 4 * 6 * V,
    )

    return pl.pallas_call(
        functools.partial(_cm2_fused_kernel, ln_eps=ln_eps),
        out_shape=(
            jax.ShapeDtypeStruct((Nn, H), jnp.float32),
            jax.ShapeDtypeStruct((Nc, H), jnp.float32),
            jax.ShapeDtypeStruct((R, H), jnp.float32),
            jax.ShapeDtypeStruct((R, H), jnp.float32),
            jax.ShapeDtypeStruct((1, H), jnp.float32),
        ),
        grid=(1,),
        in_specs=[
            full((Nn, L1, V)), full((Nn, L1, 1)),
            full((Nc, L3, V)), full((Nc, L3, 1)),
            full((R, L2, V)), full((R, L2, V)), full((R, L2, 1)),
            full((1, V)), full((1, V)), full((1, V)), full((1, V)),
            full((1, V)),
            full((V, H)),
        ],
        out_specs=(full((Nn, H)), full((Nc, H)), full((R, H)),
                   full((R, H)), full((1, H))),
        compiler_params=pltpu.CompilerParams(dimension_semantics=("arbitrary",)),
        cost_estimate=cost,
    )(num_tok, num_w, catcol_tok, catcol_w,
      catval_tok, cathdr_tok, catval_w,
      gh, bh, gv, bv, num_bias, w_bf16)


# ----------------------------------------------------------------------------
# Parameter init (deterministic, mirrors the module's __init__ shapes)
# ----------------------------------------------------------------------------
def init_params(key, vocab_size=100, vocab_dim=768, hidden_dim=128):
    ks = jax.random.split(key, 8)
    emb_header = 0.02 * jax.random.normal(ks[0], (vocab_size, vocab_dim), jnp.float32)
    emb_value = 0.02 * jax.random.normal(ks[1], (vocab_size, vocab_dim), jnp.float32)
    emb_value = emb_value.at[0].set(0.0)  # padding_idx=0 row zero for nn.Embedding
    bound = 1.0 / math.sqrt(vocab_dim)
    params = dict(
        emb_header=emb_header,
        emb_value=emb_value,
        norm_header_g=1.0 + 0.1 * jax.random.normal(ks[2], (vocab_dim,), jnp.float32),
        norm_header_b=0.1 * jax.random.normal(ks[3], (vocab_dim,), jnp.float32),
        norm_value_g=1.0 + 0.1 * jax.random.normal(ks[4], (vocab_dim,), jnp.float32),
        norm_value_b=0.1 * jax.random.normal(ks[5], (vocab_dim,), jnp.float32),
        num_bias=jax.random.uniform(ks[6], (1, 1, vocab_dim), jnp.float32,
                                    minval=-bound, maxval=bound),
        # nn.Linear(vocab_dim, hidden_dim, bias=False); stored as (V, H) so y = x @ W
        align_w=(1.0 / math.sqrt(vocab_dim)) *
                jax.random.normal(ks[7], (vocab_dim, hidden_dim), jnp.float32),
    )
    return params


# ----------------------------------------------------------------------------
# Forward (pool_policy == 'avg'), dropout prob = 0 -> identity
# ----------------------------------------------------------------------------
def cm2_feature_processor_forward(params, x_num, num_col_input_ids, num_col_attn_mask,
                                  x_cat_input_ids, x_cat_attn_mask,
                                  cat_col_input_ids, cat_col_attn_mask,
                                  ln_eps=1e-5, pool_eps=1e-12):
    V = params["emb_header"].shape[1]
    H = params["align_w"].shape[1]
    B, Nn = x_num.shape
    Bc, Nc, Lc = x_cat_input_ids.shape

    # ---- embedding-table gathers (glue, stays in XLA) ----
    num_tok = jnp.take(params["emb_header"], num_col_input_ids, axis=0)       # (Nn,L,V)
    catcol_tok = jnp.take(params["emb_header"], cat_col_input_ids, axis=0)    # (Nc,L,V)
    flat_ids = x_cat_input_ids.reshape(Bc * Nc, Lc)
    catval_tok = jnp.take(params["emb_value"], flat_ids, axis=0)              # (BNc,L,V)
    cathdr_tok = jnp.take(params["emb_header"], flat_ids, axis=0)             # (BNc,L,V)

    # ---- pre-normalized pooling weights (mask / (sum+eps)), computed once per mask ----
    def pool_w(mask):
        m = mask.astype(jnp.float32)
        return (m / (jnp.sum(m, axis=-1, keepdims=True) + pool_eps))[..., None]

    num_w = pool_w(num_col_attn_mask)                                         # (Nn,L,1)
    catcol_w = pool_w(cat_col_attn_mask)                                      # (Nc,L,1)
    catval_w = pool_w(x_cat_attn_mask.reshape(Bc * Nc, Lc))                   # (BNc,L,1)

    # ---- single fused Pallas kernel ----
    num_col_a, cat_col_a, xcat_val_a, xcat_hdr_a, bias_a = _cm2_fused_call(
        num_tok.astype(jnp.float32), num_w,
        catcol_tok.astype(jnp.float32), catcol_w,
        catval_tok.astype(jnp.float32), cathdr_tok.astype(jnp.float32), catval_w,
        params["norm_header_g"].reshape(1, V).astype(jnp.float32),
        params["norm_header_b"].reshape(1, V).astype(jnp.float32),
        params["norm_value_g"].reshape(1, V).astype(jnp.float32),
        params["norm_value_b"].reshape(1, V).astype(jnp.float32),
        params["num_bias"].reshape(1, V).astype(jnp.float32),
        params["align_w"].astype(jnp.bfloat16),
        ln_eps=ln_eps)

    # ---- tiny post-combines (~2K floats, XLA glue) ----
    # (col*x_num + bias) @ W  ==  x_num*(col@W) + bias@W
    num_feat_embedding = (x_num.astype(jnp.float32)[:, :, None] * num_col_a[None, :, :]
                          + bias_a[None, :, :])                               # (B,Nn,H)
    # 0.5*(col + val) @ W  ==  0.5*(col@W + val@W)
    cat_feat_embedding = 0.5 * (cat_col_a[None, :, :]
                                + xcat_val_a.reshape(Bc, Nc, H))              # (B,Nc,H)
    x_cat_bert_aligned = xcat_hdr_a.reshape(Bc, Nc, H)

    all_feat_embedding = jnp.concatenate(
        [num_feat_embedding, cat_feat_embedding], axis=1).astype(jnp.float32)
    attention_mask = jnp.ones((B, Nn + Nc), jnp.float32)
    other_info = {
        "col_emb": jnp.concatenate([num_col_a, cat_col_a], axis=0).astype(jnp.float32),
        "num_cnt": Nn,
        "x_num": x_num,
        "cat_bert_emb": x_cat_bert_aligned,
    }
    return {"embedding": all_feat_embedding, "attention_mask": attention_mask}, other_info


# ----------------------------------------------------------------------------
# Pure-JAX reference for a sanity check
# ----------------------------------------------------------------------------
def _reference(params, x_num, n_ids, n_mask, xc_ids, xc_mask, cc_ids, cc_mask):
    def ln(x, g, b):
        mu = x.mean(-1, keepdims=True)
        var = ((x - mu) ** 2).mean(-1, keepdims=True)
        return (x - mu) / jnp.sqrt(var + 1e-5) * g + b

    def avg(e, m):
        e = e * m[..., None]
        return e.sum(-2) / (m.sum(-1, keepdims=True) + 1e-12)

    W = params["align_w"]
    num_col = avg(ln(jnp.take(params["emb_header"], n_ids, axis=0),
                     params["norm_header_g"], params["norm_header_b"]),
                  n_mask.astype(jnp.float32))
    num_feat = (num_col[None] * x_num[..., None] + params["num_bias"]) @ W

    xc = avg(ln(jnp.take(params["emb_value"], xc_ids, axis=0),
                params["norm_value_g"], params["norm_value_b"]),
             xc_mask.astype(jnp.float32))
    cc = avg(ln(jnp.take(params["emb_header"], cc_ids, axis=0),
                params["norm_header_g"], params["norm_header_b"]),
             cc_mask.astype(jnp.float32))
    cat_feat = (0.5 * (cc[None] + xc)) @ W
    emb = jnp.concatenate([num_feat, cat_feat], axis=1)
    col_emb = jnp.concatenate([num_col @ W, cc @ W], axis=0)
    bert = avg(ln(jnp.take(params["emb_header"], xc_ids, axis=0),
                  params["norm_header_g"], params["norm_header_b"]),
               xc_mask.astype(jnp.float32)) @ W
    return emb, col_emb, bert


if __name__ == "__main__":
    key = jax.random.PRNGKey(0)
    kp, kx, k1, k2, k3, k4, k5, k6, k7 = jax.random.split(key, 9)

    VOCAB, V, H = 100, 768, 128
    B, N_NUM, N_CAT, L = 2, 3, 2, 8

    params = init_params(kp, vocab_size=VOCAB, vocab_dim=V, hidden_dim=H)

    x_num = jax.random.normal(kx, (B, N_NUM), jnp.float32)
    num_col_input_ids = jax.random.randint(k1, (N_NUM, L), 1, VOCAB)
    num_col_attn_mask = jax.random.bernoulli(k2, 0.8, (N_NUM, L)).astype(jnp.int32)
    num_col_attn_mask = num_col_attn_mask.at[:, 0].set(1)
    x_cat_input_ids = jax.random.randint(k3, (B, N_CAT, L), 1, VOCAB)
    x_cat_attn_mask = jax.random.bernoulli(k4, 0.8, (B, N_CAT, L)).astype(jnp.int32)
    x_cat_attn_mask = x_cat_attn_mask.at[:, :, 0].set(1)
    cat_col_input_ids = jax.random.randint(k5, (N_CAT, L), 1, VOCAB)
    cat_col_attn_mask = jax.random.bernoulli(k6, 0.8, (N_CAT, L)).astype(jnp.int32)
    cat_col_attn_mask = cat_col_attn_mask.at[:, 0].set(1)

    out, other = cm2_feature_processor_forward(
        params, x_num, num_col_input_ids, num_col_attn_mask,
        x_cat_input_ids, x_cat_attn_mask, cat_col_input_ids, cat_col_attn_mask)
    jax.block_until_ready(out["embedding"])
    jax.block_until_ready(other["col_emb"])
    jax.block_until_ready(other["cat_bert_emb"])

    ref_emb, ref_col, ref_bert = _reference(
        params, x_num, num_col_input_ids, num_col_attn_mask,
        x_cat_input_ids, x_cat_attn_mask, cat_col_input_ids, cat_col_attn_mask)
    np.testing.assert_allclose(np.asarray(out["embedding"]), np.asarray(ref_emb),
                               rtol=1e-2, atol=1e-1)
    np.testing.assert_allclose(np.asarray(other["col_emb"]), np.asarray(ref_col),
                               rtol=1e-2, atol=1e-1)
    np.testing.assert_allclose(np.asarray(other["cat_bert_emb"]), np.asarray(ref_bert),
                               rtol=1e-2, atol=1e-1)
    assert out["embedding"].shape == (B, N_NUM + N_CAT, H)
    assert out["attention_mask"].shape == (B, N_NUM + N_CAT)
    assert other["col_emb"].shape == (N_NUM + N_CAT, H)
    assert other["cat_bert_emb"].shape == (B, N_CAT, H)

    print("KERNEL_OK")
</pallas_src>

<mosaic_0001>
module attributes {stable_mosaic.version = 11 : i64} {
  func.func @_cm2_fused_kernel(%arg0: i32, %arg1: memref<3x8x768xf32, #tpu.memory_space<vmem>>, %arg2: memref<3x8x1xf32, #tpu.memory_space<vmem>>, %arg3: memref<2x8x768xf32, #tpu.memory_space<vmem>>, %arg4: memref<2x8x1xf32, #tpu.memory_space<vmem>>, %arg5: memref<4x8x768xf32, #tpu.memory_space<vmem>>, %arg6: memref<4x8x768xf32, #tpu.memory_space<vmem>>, %arg7: memref<4x8x1xf32, #tpu.memory_space<vmem>>, %arg8: memref<1x768xf32, #tpu.memory_space<vmem>>, %arg9: memref<1x768xf32, #tpu.memory_space<vmem>>, %arg10: memref<1x768xf32, #tpu.memory_space<vmem>>, %arg11: memref<1x768xf32, #tpu.memory_space<vmem>>, %arg12: memref<1x768xf32, #tpu.memory_space<vmem>>, %arg13: memref<768x128xbf16, #tpu.memory_space<vmem>>, %arg14: memref<3x128xf32, #tpu.memory_space<vmem>>, %arg15: memref<2x128xf32, #tpu.memory_space<vmem>>, %arg16: memref<4x128xf32, #tpu.memory_space<vmem>>, %arg17: memref<4x128xf32, #tpu.memory_space<vmem>>, %arg18: memref<1x128xf32, #tpu.memory_space<vmem>>) attributes {dimension_semantics = [#tpu.dimension_semantics<arbitrary>], iteration_bounds = array<i64: 1>, scalar_prefetch = 0 : i64, scratch_operands = 0 : i64, tpu.core_type = #tpu.core_type<tc>, window_params = [{pipeline_mode = #tpu.pipeline_mode<synchronous>, transform_indices = @transform_0, window_bounds = array<i64: 3, 8, 768>}, {pipeline_mode = #tpu.pipeline_mode<synchronous>, transform_indices = @transform_1, window_bounds = array<i64: 3, 8, 1>}, {pipeline_mode = #tpu.pipeline_mode<synchronous>, transform_indices = @transform_2, window_bounds = array<i64: 2, 8, 768>}, {pipeline_mode = #tpu.pipeline_mode<synchronous>, transform_indices = @transform_3, window_bounds = array<i64: 2, 8, 1>}, {pipeline_mode = #tpu.pipeline_mode<synchronous>, transform_indices = @transform_4, window_bounds = array<i64: 4, 8, 768>}, {pipeline_mode = #tpu.pipeline_mode<synchronous>, transform_indices = @transform_5, window_bounds = array<i64: 4, 8, 768>}, {pipeline_mode = #tpu.pipeline_mode<synchronous>, transform_indices = @transform_6, window_bounds = array<i64: 4, 8, 1>}, {pipeline_mode = #tpu.pipeline_mode<synchronous>, transform_indices = @transform_7, window_bounds = array<i64: 1, 768>}, {pipeline_mode = #tpu.pipeline_mode<synchronous>, transform_indices = @transform_8, window_bounds = array<i64: 1, 768>}, {pipeline_mode = #tpu.pipeline_mode<synchronous>, transform_indices = @transform_9, window_bounds = array<i64: 1, 768>}, {pipeline_mode = #tpu.pipeline_mode<synchronous>, transform_indices = @transform_10, window_bounds = array<i64: 1, 768>}, {pipeline_mode = #tpu.pipeline_mode<synchronous>, transform_indices = @transform_11, window_bounds = array<i64: 1, 768>}, {pipeline_mode = #tpu.pipeline_mode<synchronous>, transform_indices = @transform_12, window_bounds = array<i64: 768, 128>}, {pipeline_mode = #tpu.pipeline_mode<synchronous>, transform_indices = @transform_13, window_bounds = array<i64: 3, 128>}, {pipeline_mode = #tpu.pipeline_mode<synchronous>, transform_indices = @transform_14, window_bounds = array<i64: 2, 128>}, {pipeline_mode = #tpu.pipeline_mode<synchronous>, transform_indices = @transform_15, window_bounds = array<i64: 4, 128>}, {pipeline_mode = #tpu.pipeline_mode<synchronous>, transform_indices = @transform_16, window_bounds = array<i64: 4, 128>}, {pipeline_mode = #tpu.pipeline_mode<synchronous>, transform_indices = @transform_17, window_bounds = array<i64: 1, 128>}]} {
    %c0 = arith.constant 0 : index
    %c0_0 = arith.constant 0 : index
    %0 = vector.load %arg8[%c0, %c0_0] : memref<1x768xf32, #tpu.memory_space<vmem>>, vector<1x768xf32>
    %c0_1 = arith.constant 0 : index
    %c0_2 = arith.constant 0 : index
    %1 = vector.load %arg9[%c0_1, %c0_2] : memref<1x768xf32, #tpu.memory_space<vmem>>, vector<1x768xf32>
    %c0_3 = arith.constant 0 : index
    %c0_4 = arith.constant 0 : index
    %2 = vector.load %arg10[%c0_3, %c0_4] : memref<1x768xf32, #tpu.memory_space<vmem>>, vector<1x768xf32>
    %c0_5 = arith.constant 0 : index
    %c0_6 = arith.constant 0 : index
    %3 = vector.load %arg11[%c0_5, %c0_6] : memref<1x768xf32, #tpu.memory_space<vmem>>, vector<1x768xf32>
    %c0_7 = arith.constant 0 : index
    %c0_8 = arith.constant 0 : index
    %4 = vector.load %arg13[%c0_7, %c0_8] : memref<768x128xbf16, #tpu.memory_space<vmem>>, vector<768x128xbf16>
    %c0_9 = arith.constant 0 : index
    %c0_10 = arith.constant 0 : index
    %c0_11 = arith.constant 0 : index
    %5 = vector.load %arg1[%c0_9, %c0_10, %c0_11] : memref<3x8x768xf32, #tpu.memory_space<vmem>>, vector<3x8x768xf32>
    %c0_12 = arith.constant 0 : index
    %c0_13 = arith.constant 0 : index
    %c0_14 = arith.constant 0 : index
    %6 = vector.load %arg2[%c0_12, %c0_13, %c0_14] : memref<3x8x1xf32, #tpu.memory_space<vmem>>, vector<3x8x1xf32>
    %cst = arith.constant dense<0.000000e+00> : vector<3x8xf32>
    %7 = vector.multi_reduction <add>, %5, %cst [2] : vector<3x8x768xf32> to vector<3x8xf32>
    %8 = vector.shape_cast %7 : vector<3x8xf32> to vector<3x8x1xf32>
    %cst_15 = arith.constant 7.680000e+02 : f32
    %9 = vector.broadcast %cst_15 : f32 to vector<3x8x1xf32>
    %10 = arith.divf %8, %9 : vector<3x8x1xf32>
    %11 = vector.broadcast %10 : vector<3x8x1xf32> to vector<3x8x768xf32>
    %12 = arith.subf %5, %11 : vector<3x8x768xf32>
    %13 = arith.mulf %12, %12 : vector<3x8x768xf32>
    %cst_16 = arith.constant dense<0.000000e+00> : vector<3x8xf32>
    %14 = vector.multi_reduction <add>, %13, %cst_16 [2] : vector<3x8x768xf32> to vector<3x8xf32>
    %15 = vector.shape_cast %14 : vector<3x8xf32> to vector<3x8x1xf32>
    %cst_17 = arith.constant 7.680000e+02 : f32
    %16 = vector.broadcast %cst_17 : f32 to vector<3x8x1xf32>
    %17 = arith.divf %15, %16 : vector<3x8x1xf32>
    %18 = vector.broadcast %10 : vector<3x8x1xf32> to vector<3x8x768xf32>
    %19 = arith.subf %5, %18 : vector<3x8x768xf32>
    %cst_18 = arith.constant 9.99999974E-6 : f32
    %20 = vector.broadcast %cst_18 : f32 to vector<3x8x1xf32>
    %21 = arith.addf %17, %20 : vector<3x8x1xf32>
    %22 = math.rsqrt %21 : vector<3x8x1xf32>
    %23 = vector.broadcast %22 : vector<3x8x1xf32> to vector<3x8x768xf32>
    %24 = arith.mulf %19, %23 : vector<3x8x768xf32>
    %25 = vector.shape_cast %0 : vector<1x768xf32> to vector<1x1x768xf32>
    %26 = vector.broadcast %25 : vector<1x1x768xf32> to vector<3x8x768xf32>
    %27 = arith.mulf %24, %26 : vector<3x8x768xf32>
    %28 = vector.shape_cast %1 : vector<1x768xf32> to vector<1x1x768xf32>
    %29 = vector.broadcast %28 : vector<1x1x768xf32> to vector<3x8x768xf32>
    %30 = arith.addf %27, %29 : vector<3x8x768xf32>
    %31 = vector.broadcast %6 : vector<3x8x1xf32> to vector<3x8x768xf32>
    %32 = arith.mulf %30, %31 : vector<3x8x768xf32>
    %cst_19 = arith.constant dense<0.000000e+00> : vector<3x768xf32>
    %33 = vector.multi_reduction <add>, %32, %cst_19 [1] : vector<3x8x768xf32> to vector<3x768xf32>
    %c0_20 = arith.constant 0 : index
    %c0_21 = arith.constant 0 : index
    %c0_22 = arith.constant 0 : index
    %34 = vector.load %arg3[%c0_20, %c0_21, %c0_22] : memref<2x8x768xf32, #tpu.memory_space<vmem>>, vector<2x8x768xf32>
    %c0_23 = arith.constant 0 : index
    %c0_24 = arith.constant 0 : index
    %c0_25 = arith.constant 0 : index
    %35 = vector.load %arg4[%c0_23, %c0_24, %c0_25] : memref<2x8x1xf32, #tpu.memory_space<vmem>>, vector<2x8x1xf32>
    %cst_26 = arith.constant dense<0.000000e+00> : vector<2x8xf32>
    %36 = vector.multi_reduction <add>, %34, %cst_26 [2] : vector<2x8x768xf32> to vector<2x8xf32>
    %37 = vector.shape_cast %36 : vector<2x8xf32> to vector<2x8x1xf32>
    %cst_27 = arith.constant 7.680000e+02 : f32
    %38 = vector.broadcast %cst_27 : f32 to vector<2x8x1xf32>
    %39 = arith.divf %37, %38 : vector<2x8x1xf32>
    %40 = vector.broadcast %39 : vector<2x8x1xf32> to vector<2x8x768xf32>
    %41 = arith.subf %34, %40 : vector<2x8x768xf32>
    %42 = arith.mulf %41, %41 : vector<2x8x768xf32>
    %cst_28 = arith.constant dense<0.000000e+00> : vector<2x8xf32>
    %43 = vector.multi_reduction <add>, %42, %cst_28 [2] : vector<2x8x768xf32> to vector<2x8xf32>
    %44 = vector.shape_cast %43 : vector<2x8xf32> to vector<2x8x1xf32>
    %cst_29 = arith.constant 7.680000e+02 : f32
    %45 = vector.broadcast %cst_29 : f32 to vector<2x8x1xf32>
    %46 = arith.divf %44, %45 : vector<2x8x1xf32>
    %47 = vector.broadcast %39 : vector<2x8x1xf32> to vector<2x8x768xf32>
    %48 = arith.subf %34, %47 : vector<2x8x768xf32>
    %cst_30 = arith.constant 9.99999974E-6 : f32
    %49 = vector.broadcast %cst_30 : f32 to vector<2x8x1xf32>
    %50 = arith.addf %46, %49 : vector<2x8x1xf32>
    %51 = math.rsqrt %50 : vector<2x8x1xf32>
    %52 = vector.broadcast %51 : vector<2x8x1xf32> to vector<2x8x768xf32>
    %53 = arith.mulf %48, %52 : vector<2x8x768xf32>
    %54 = vector.shape_cast %0 : vector<1x768xf32> to vector<1x1x768xf32>
    %55 = vector.broadcast %54 : vector<1x1x768xf32> to vector<2x8x768xf32>
    %56 = arith.mulf %53, %55 : vector<2x8x768xf32>
    %57 = vector.shape_cast %1 : vector<1x768xf32> to vector<1x1x768xf32>
    %58 = vector.broadcast %57 : vector<1x1x768xf32> to vector<2x8x768xf32>
    %59 = arith.addf %56, %58 : vector<2x8x768xf32>
    %60 = vector.broadcast %35 : vector<2x8x1xf32> to vector<2x8x768xf32>
    %61 = arith.mulf %59, %60 : vector<2x8x768xf32>
    %cst_31 = arith.constant dense<0.000000e+00> : vector<2x768xf32>
    %62 = vector.multi_reduction <add>, %61, %cst_31 [1] : vector<2x8x768xf32> to vector<2x768xf32>
    %c0_32 = arith.constant 0 : index
    %c0_33 = arith.constant 0 : index
    %c0_34 = arith.constant 0 : index
    %63 = vector.load %arg7[%c0_32, %c0_33, %c0_34] : memref<4x8x1xf32, #tpu.memory_space<vmem>>, vector<4x8x1xf32>
    %c0_35 = arith.constant 0 : index
    %c0_36 = arith.constant 0 : index
    %c0_37 = arith.constant 0 : index
    %64 = vector.load %arg5[%c0_35, %c0_36, %c0_37] : memref<4x8x768xf32, #tpu.memory_space<vmem>>, vector<4x8x768xf32>
    %cst_38 = arith.constant dense<0.000000e+00> : vector<4x8xf32>
    %65 = vector.multi_reduction <add>, %64, %cst_38 [2] : vector<4x8x768xf32> to vector<4x8xf32>
    %66 = vector.shape_cast %65 : vector<4x8xf32> to vector<4x8x1xf32>
    %cst_39 = arith.constant 7.680000e+02 : f32
    %67 = vector.broadcast %cst_39 : f32 to vector<4x8x1xf32>
    %68 = arith.divf %66, %67 : vector<4x8x1xf32>
    %69 = vector.broadcast %68 : vector<4x8x1xf32> to vector<4x8x768xf32>
    %70 = arith.subf %64, %69 : vector<4x8x768xf32>
    %71 = arith.mulf %70, %70 : vector<4x8x768xf32>
    %cst_40 = arith.constant dense<0.000000e+00> : vector<4x8xf32>
    %72 = vector.multi_reduction <add>, %71, %cst_40 [2] : vector<4x8x768xf32> to vector<4x8xf32>
    %73 = vector.shape_cast %72 : vector<4x8xf32> to vector<4x8x1xf32>
    %cst_41 = arith.constant 7.680000e+02 : f32
    %74 = vector.broadcast %cst_41 : f32 to vector<4x8x1xf32>
    %75 = arith.divf %73, %74 : vector<4x8x1xf32>
    %76 = vector.broadcast %68 : vector<4x8x1xf32> to vector<4x8x768xf32>
    %77 = arith.subf %64, %76 : vector<4x8x768xf32>
    %cst_42 = arith.constant 9.99999974E-6 : f32
    %78 = vector.broadcast %cst_42 : f32 to vector<4x8x1xf32>
    %79 = arith.addf %75, %78 : vector<4x8x1xf32>
    %80 = math.rsqrt %79 : vector<4x8x1xf32>
    %81 = vector.broadcast %80 : vector<4x8x1xf32> to vector<4x8x768xf32>
    %82 = arith.mulf %77, %81 : vector<4x8x768xf32>
    %83 = vector.shape_cast %2 : vector<1x768xf32> to vector<1x1x768xf32>
    %84 = vector.broadcast %83 : vector<1x1x768xf32> to vector<4x8x768xf32>
    %85 = arith.mulf %82, %84 : vector<4x8x768xf32>
    %86 = vector.shape_cast %3 : vector<1x768xf32> to vector<1x1x768xf32>
    %87 = vector.broadcast %86 : vector<1x1x768xf32> to vector<4x8x768xf32>
    %88 = arith.addf %85, %87 : vector<4x8x768xf32>
    %89 = vector.broadcast %63 : vector<4x8x1xf32> to vector<4x8x768xf32>
    %90 = arith.mulf %88, %89 : vector<4x8x768xf32>
    %cst_43 = arith.constant dense<0.000000e+00> : vector<4x768xf32>
    %91 = vector.multi_reduction <add>, %90, %cst_43 [1] : vector<4x8x768xf32> to vector<4x768xf32>
    %c0_44 = arith.constant 0 : index
    %c0_45 = arith.constant 0 : index
    %c0_46 = arith.constant 0 : index
    %92 = vector.load %arg6[%c0_44, %c0_45, %c0_46] : memref<4x8x768xf32, #tpu.memory_space<vmem>>, vector<4x8x768xf32>
    %cst_47 = arith.constant dense<0.000000e+00> : vector<4x8xf32>
    %93 = vector.multi_reduction <add>, %92, %cst_47 [2] : vector<4x8x768xf32> to vector<4x8xf32>
    %94 = vector.shape_cast %93 : vector<4x8xf32> to vector<4x8x1xf32>
    %cst_48 = arith.constant 7.680000e+02 : f32
    %95 = vector.broadcast %cst_48 : f32 to vector<4x8x1xf32>
    %96 = arith.divf %94, %95 : vector<4x8x1xf32>
    %97 = vector.broadcast %96 : vector<4x8x1xf32> to vector<4x8x768xf32>
    %98 = arith.subf %92, %97 : vector<4x8x768xf32>
    %99 = arith.mulf %98, %98 : vector<4x8x768xf32>
    %cst_49 = arith.constant dense<0.000000e+00> : vector<4x8xf32>
    %100 = vector.multi_reduction <add>, %99, %cst_49 [2] : vector<4x8x768xf32> to vector<4x8xf32>
    %101 = vector.shape_cast %100 : vector<4x8xf32> to vector<4x8x1xf32>
    %cst_50 = arith.constant 7.680000e+02 : f32
    %102 = vector.broadcast %cst_50 : f32 to vector<4x8x1xf32>
    %103 = arith.divf %101, %102 : vector<4x8x1xf32>
    %104 = vector.broadcast %96 : vector<4x8x1xf32> to vector<4x8x768xf32>
    %105 = arith.subf %92, %104 : vector<4x8x768xf32>
    %cst_51 = arith.constant 9.99999974E-6 : f32
    %106 = vector.broadcast %cst_51 : f32 to vector<4x8x1xf32>
    %107 = arith.addf %103, %106 : vector<4x8x1xf32>
    %108 = math.rsqrt %107 : vector<4x8x1xf32>
    %109 = vector.broadcast %108 : vector<4x8x1xf32> to vector<4x8x768xf32>
    %110 = arith.mulf %105, %109 : vector<4x8x768xf32>
    %111 = vector.shape_cast %0 : vector<1x768xf32> to vector<1x1x768xf32>
    %112 = vector.broadcast %111 : vector<1x1x768xf32> to vector<4x8x768xf32>
    %113 = arith.mulf %110, %112 : vector<4x8x768xf32>
    %114 = vector.shape_cast %1 : vector<1x768xf32> to vector<1x1x768xf32>
    %115 = vector.broadcast %114 : vector<1x1x768xf32> to vector<4x8x768xf32>
    %116 = arith.addf %113, %115 : vector<4x8x768xf32>
    %117 = vector.broadcast %63 : vector<4x8x1xf32> to vector<4x8x768xf32>
    %118 = arith.mulf %116, %117 : vector<4x8x768xf32>
    %cst_52 = arith.constant dense<0.000000e+00> : vector<4x768xf32>
    %119 = vector.multi_reduction <add>, %118, %cst_52 [1] : vector<4x8x768xf32> to vector<4x768xf32>
    %120 = arith.truncf %33 : vector<3x768xf32> to vector<3x768xbf16>
    %cst_53 = arith.constant dense<0.000000e+00> : vector<3x128xf32>
    %121 = tpu.matmul %120, %4, %cst_53 {dimension_numbers = #tpu.dot_dimension_numbers<[1], [0], [0], [1], [0, 0, 1, 1], [], []>} : vector<3x768xbf16>, vector<768x128xbf16>, vector<3x128xf32> -> vector<3x128xf32>
    %c0_54 = arith.constant 0 : index
    %c0_55 = arith.constant 0 : index
    %122 = vector.load %arg14[%c0_54, %c0_55] : memref<3x128xf32, #tpu.memory_space<vmem>>, vector<3x128xf32>
    tpu.vector_store %arg14[%c0_54, %c0_55], %121 {strides = array<i32>} : memref<3x128xf32, #tpu.memory_space<vmem>>, vector<3x128xf32>,
    %123 = arith.truncf %62 : vector<2x768xf32> to vector<2x768xbf16>
    %cst_56 = arith.constant dense<0.000000e+00> : vector<2x128xf32>
    %124 = tpu.matmul %123, %4, %cst_56 {dimension_numbers = #tpu.dot_dimension_numbers<[1], [0], [0], [1], [0, 0, 1, 1], [], []>} : vector<2x768xbf16>, vector<768x128xbf16>, vector<2x128xf32> -> vector<2x128xf32>
    %c0_57 = arith.constant 0 : index
    %c0_58 = arith.constant 0 : index
    %125 = vector.load %arg15[%c0_57, %c0_58] : memref<2x128xf32, #tpu.memory_space<vmem>>, vector<2x128xf32>
    tpu.vector_store %arg15[%c0_57, %c0_58], %124 {strides = array<i32>} : memref<2x128xf32, #tpu.memory_space<vmem>>, vector<2x128xf32>,
    %126 = arith.truncf %91 : vector<4x768xf32> to vector<4x768xbf16>
    %cst_59 = arith.constant dense<0.000000e+00> : vector<4x128xf32>
    %127 = tpu.matmul %126, %4, %cst_59 {dimension_numbers = #tpu.dot_dimension_numbers<[1], [0], [0], [1], [0, 0, 1, 1], [], []>} : vector<4x768xbf16>, vector<768x128xbf16>, vector<4x128xf32> -> vector<4x128xf32>
    %c0_60 = arith.constant 0 : index
    %c0_61 = arith.constant 0 : index
    %128 = vector.load %arg16[%c0_60, %c0_61] : memref<4x128xf32, #tpu.memory_space<vmem>>, vector<4x128xf32>
    tpu.vector_store %arg16[%c0_60, %c0_61], %127 {strides = array<i32>} : memref<4x128xf32, #tpu.memory_space<vmem>>, vector<4x128xf32>,
    %129 = arith.truncf %119 : vector<4x768xf32> to vector<4x768xbf16>
    %cst_62 = arith.constant dense<0.000000e+00> : vector<4x128xf32>
    %130 = tpu.matmul %129, %4, %cst_62 {dimension_numbers = #tpu.dot_dimension_numbers<[1], [0], [0], [1], [0, 0, 1, 1], [], []>} : vector<4x768xbf16>, vector<768x128xbf16>, vector<4x128xf32> -> vector<4x128xf32>
    %c0_63 = arith.constant 0 : index
    %c0_64 = arith.constant 0 : index
    %131 = vector.load %arg17[%c0_63, %c0_64] : memref<4x128xf32, #tpu.memory_space<vmem>>, vector<4x128xf32>
    tpu.vector_store %arg17[%c0_63, %c0_64], %130 {strides = array<i32>} : memref<4x128xf32, #tpu.memory_space<vmem>>, vector<4x128xf32>,
    %c0_65 = arith.constant 0 : index
    %c0_66 = arith.constant 0 : index
    %132 = vector.load %arg12[%c0_65, %c0_66] : memref<1x768xf32, #tpu.memory_space<vmem>>, vector<1x768xf32>
    %133 = arith.truncf %132 : vector<1x768xf32> to vector<1x768xbf16>
    %cst_67 = arith.constant dense<0.000000e+00> : vector<1x128xf32>
    %134 = tpu.matmul %133, %4, %cst_67 {dimension_numbers = #tpu.dot_dimension_numbers<[1], [0], [0], [1], [0, 0, 1, 1], [], []>} : vector<1x768xbf16>, vector<768x128xbf16>, vector<1x128xf32> -> vector<1x128xf32>
    %c0_68 = arith.constant 0 : index
    %c0_69 = arith.constant 0 : index
    %135 = vector.load %arg18[%c0_68, %c0_69] : memref<1x128xf32, #tpu.memory_space<vmem>>, vector<1x128xf32>
    tpu.vector_store %arg18[%c0_68, %c0_69], %134 {strides = array<i32>} : memref<1x128xf32, #tpu.memory_space<vmem>>, vector<1x128xf32>,
    return
  }
  func.func @transform_0(%arg0: i32) -> (i32, i32, i32) {
    %c0_i32 = arith.constant 0 : i32
    %c0_i32_0 = arith.constant 0 : i32
    %c0_i32_1 = arith.constant 0 : i32
    %c0_i32_2 = arith.constant 0 : i32
    return %c0_i32, %c0_i32_0, %c0_i32_1 : i32, i32, i32
  }
  func.func @transform_1(%arg0: i32) -> (i32, i32, i32) {
    %c0_i32 = arith.constant 0 : i32
    %c0_i32_0 = arith.constant 0 : i32
    %c0_i32_1 = arith.constant 0 : i32
    %c0_i32_2 = arith.constant 0 : i32
    return %c0_i32, %c0_i32_0, %c0_i32_1 : i32, i32, i32
  }
  func.func @transform_2(%arg0: i32) -> (i32, i32, i32) {
    %c0_i32 = arith.constant 0 : i32
    %c0_i32_0 = arith.constant 0 : i32
    %c0_i32_1 = arith.constant 0 : i32
    %c0_i32_2 = arith.constant 0 : i32
    return %c0_i32, %c0_i32_0, %c0_i32_1 : i32, i32, i32
  }
  func.func @transform_3(%arg0: i32) -> (i32, i32, i32) {
    %c0_i32 = arith.constant 0 : i32
    %c0_i32_0 = arith.constant 0 : i32
    %c0_i32_1 = arith.constant 0 : i32
    %c0_i32_2 = arith.constant 0 : i32
    return %c0_i32, %c0_i32_0, %c0_i32_1 : i32, i32, i32
  }
  func.func @transform_4(%arg0: i32) -> (i32, i32, i32) {
    %c0_i32 = arith.constant 0 : i32
    %c0_i32_0 = arith.constant 0 : i32
    %c0_i32_1 = arith.constant 0 : i32
    %c0_i32_2 = arith.constant 0 : i32
    return %c0_i32, %c0_i32_0, %c0_i32_1 : i32, i32, i32
  }
  func.func @transform_5(%arg0: i32) -> (i32, i32, i32) {
    %c0_i32 = arith.constant 0 : i32
    %c0_i32_0 = arith.constant 0 : i32
    %c0_i32_1 = arith.constant 0 : i32
    %c0_i32_2 = arith.constant 0 : i32
    return %c0_i32, %c0_i32_0, %c0_i32_1 : i32, i32, i32
  }
  func.func @transform_6(%arg0: i32) -> (i32, i32, i32) {
    %c0_i32 = arith.constant 0 : i32
    %c0_i32_0 = arith.constant 0 : i32
    %c0_i32_1 = arith.constant 0 : i32
    %c0_i32_2 = arith.constant 0 : i32
    return %c0_i32, %c0_i32_0, %c0_i32_1 : i32, i32, i32
  }
  func.func @transform_7(%arg0: i32) -> (i32, i32) {
    %c0_i32 = arith.constant 0 : i32
    %c0_i32_0 = arith.constant 0 : i32
    %c0_i32_1 = arith.constant 0 : i32
    return %c0_i32, %c0_i32_0 : i32, i32
  }
  func.func @transform_8(%arg0: i32) -> (i32, i32) {
    %c0_i32 = arith.constant 0 : i32
    %c0_i32_0 = arith.constant 0 : i32
    %c0_i32_1 = arith.constant 0 : i32
    return %c0_i32, %c0_i32_0 : i32, i32
  }
  func.func @transform_9(%arg0: i32) -> (i32, i32) {
    %c0_i32 = arith.constant 0 : i32
    %c0_i32_0 = arith.constant 0 : i32
    %c0_i32_1 = arith.constant 0 : i32
    return %c0_i32, %c0_i32_0 : i32, i32
  }
  func.func @transform_10(%arg0: i32) -> (i32, i32) {
    %c0_i32 = arith.constant 0 : i32
    %c0_i32_0 = arith.constant 0 : i32
    %c0_i32_1 = arith.constant 0 : i32
    return %c0_i32, %c0_i32_0 : i32, i32
  }
  func.func @transform_11(%arg0: i32) -> (i32, i32) {
    %c0_i32 = arith.constant 0 : i32
    %c0_i32_0 = arith.constant 0 : i32
    %c0_i32_1 = arith.constant 0 : i32
    return %c0_i32, %c0_i32_0 : i32, i32
  }
  func.func @transform_12(%arg0: i32) -> (i32, i32) {
    %c0_i32 = arith.constant 0 : i32
    %c0_i32_0 = arith.constant 0 : i32
    %c0_i32_1 = arith.constant 0 : i32
    return %c0_i32, %c0_i32_0 : i32, i32
  }
  func.func @transform_13(%arg0: i32) -> (i32, i32) {
    %c0_i32 = arith.constant 0 : i32
    %c0_i32_0 = arith.constant 0 : i32
    %c0_i32_1 = arith.constant 0 : i32
    return %c0_i32, %c0_i32_0 : i32, i32
  }
  func.func @transform_14(%arg0: i32) -> (i32, i32) {
    %c0_i32 = arith.constant 0 : i32
    %c0_i32_0 = arith.constant 0 : i32
    %c0_i32_1 = arith.constant 0 : i32
    return %c0_i32, %c0_i32_0 : i32, i32
  }
  func.func @transform_15(%arg0: i32) -> (i32, i32) {
    %c0_i32 = arith.constant 0 : i32
    %c0_i32_0 = arith.constant 0 : i32
    %c0_i32_1 = arith.constant 0 : i32
    return %c0_i32, %c0_i32_0 : i32, i32
  }
  func.func @transform_16(%arg0: i32) -> (i32, i32) {
    %c0_i32 = arith.constant 0 : i32
    %c0_i32_0 = arith.constant 0 : i32
    %c0_i32_1 = arith.constant 0 : i32
    return %c0_i32, %c0_i32_0 : i32, i32
  }
  func.func @transform_17(%arg0: i32) -> (i32, i32) {
    %c0_i32 = arith.constant 0 : i32
    %c0_i32_0 = arith.constant 0 : i32
    %c0_i32_1 = arith.constant 0 : i32
    return %c0_i32, %c0_i32_0 : i32, i32
  }
}

</mosaic_0001>

<llo_original>
// kernel: tpu_custom_call.1
$region0: #{tpu_custom_call.1}
  #allocation0 [shape = 'u32[]', space=smem, size = 0x4, offset = 0x4, fixed_abs, tag = 'smem constant byte address 0x4 - core index']
  #allocation1 [shape = 'u32[144,128]{1,0:T(1,128)}', space=vmem, size = 0x12000, scoped, tag = 'internal scratch']
  %s0 = inlined_call_operand.hbm [shape: f32[3,8,768], index: 0, kind: input, shape index: {}]
  %s1 = inlined_call_operand.vmem [shape: f32[3,8,1], index: 1, kind: input, shape index: {}]
  %s2 = inlined_call_operand.hbm [shape: f32[2,8,768], index: 2, kind: input, shape index: {}]
  %s3 = inlined_call_operand.vmem [shape: f32[2,8,1], index: 3, kind: input, shape index: {}]
  %s4 = inlined_call_operand.hbm [shape: f32[4,8,768], index: 4, kind: input, shape index: {}]
  %s5 = inlined_call_operand.hbm [shape: f32[4,8,768], index: 5, kind: input, shape index: {}]
  %s6 = inlined_call_operand.vmem [shape: f32[4,8,1], index: 6, kind: input, shape index: {}]
  %s7 = inlined_call_operand.vmem [shape: f32[1,768], index: 7, kind: input, shape index: {}]
  %s8 = inlined_call_operand.vmem [shape: f32[1,768], index: 8, kind: input, shape index: {}]
  %s9 = inlined_call_operand.vmem [shape: f32[1,768], index: 9, kind: input, shape index: {}]
  %s10 = inlined_call_operand.vmem [shape: f32[1,768], index: 10, kind: input, shape index: {}]
  %s11 = inlined_call_operand.vmem [shape: f32[1,768], index: 11, kind: input, shape index: {}]
  %s12 = inlined_call_operand.hbm [shape: bf16[768,128], index: 12, kind: input, shape index: {}]
  %s13 = inlined_call_operand.hbm [shape: f32[3,128], index: 13, kind: output, shape index: {0}]
  %s14 = inlined_call_operand.hbm [shape: f32[2,128], index: 14, kind: output, shape index: {1}]
  %s15 = inlined_call_operand.hbm [shape: f32[4,128], index: 15, kind: output, shape index: {2}]
  %s16 = inlined_call_operand.hbm [shape: f32[4,128], index: 16, kind: output, shape index: {3}]
  %s17 = inlined_call_operand.hbm [shape: f32[1,128], index: 17, kind: output, shape index: {4}]
  %18 = xla_tuple %s13, %s14, %s15, %s16, %s17
  %s19 = sld [smem:[#allocation0]]
  $region114: #{tpu_custom_call.1} parent=0
    _
  %s21 = ssub.s32 1, %s19
  %s22 = scalar_select 0, %s21, %s19
  $region1: #{tpu_custom_call.1} parent=0
    #allocation2 [shape = 'u8[73728]{0}', space=vmem, size = 0x12000, scoped, tag = 'input window, operand 0, single buffered']
    #allocation3 [shape = 's32[1]{0}', space=sflag, size = 0x4, scoped, tag = 'scoped memory for tpu_custom_call.1']
    #allocation4 [shape = 's32[1]{0}', space=sflag, size = 0x4, scoped, tag = 'scoped memory for tpu_custom_call.1']
    #allocation5 [shape = 'u8[49152]{0}', space=vmem, size = 0xc000, scoped, tag = 'input window, operand 2, single buffered']
    #allocation6 [shape = 's32[1]{0}', space=sflag, size = 0x4, scoped, tag = 'scoped memory for tpu_custom_call.1']
    #allocation7 [shape = 'u8[98304]{0}', space=vmem, size = 0x18000, scoped, tag = 'input window, operand 4, single buffered']
    #allocation8 [shape = 'u8[98304]{0}', space=vmem, size = 0x18000, scoped, tag = 'input window, operand 5, single buffered']
    #allocation9 [shape = 's32[1]{0}', space=sflag, size = 0x4, scoped, tag = 'scoped memory for tpu_custom_call.1']
    #allocation10 [shape = 'u8[196608]{0}', space=vmem, size = 0x30000, scoped, tag = 'input window, operand 12, single buffered']
    #allocation11 [shape = 'u8[2048]{0}', space=vmem, size = 0x800, scoped, tag = 'output window, operand 0, single buffered']
    #allocation12 [shape = 'u8[1024]{0}', space=vmem, size = 0x400, scoped, tag = 'output window, operand 1, single buffered']
    #allocation13 [shape = 's32[1]{0}', space=sflag, size = 0x4, scoped, tag = 'scoped memory for tpu_custom_call.1']
    #allocation14 [shape = 'u8[2048]{0}', space=vmem, size = 0x800, scoped, tag = 'output window, operand 2, single buffered']
    #allocation15 [shape = 'u8[2048]{0}', space=vmem, size = 0x800, scoped, tag = 'output window, operand 3, single buffered']
    #allocation16 [shape = 's32[1]{0}', space=sflag, size = 0x4, scoped, tag = 'scoped memory for tpu_custom_call.1']
    #allocation17 [shape = 'u8[512]{0}', space=vmem, size = 0x400, scoped, tag = 'output window, operand 4, single buffered']
    %23 = vsyncpa [#allocation3], 0
    %24 = vsyncpa [#allocation6], 0
    %25 = vsyncpa [#allocation9], 0
    %26 = vsyncpa [#allocation4], 0
    %27 = vsyncpa [#allocation13], 0
    %28 = vsyncpa [#allocation16], 0
    // Predicated region
    $region2: #{tpu_custom_call.1} parent=1 // pred_check
      _
    $region3: #{tpu_custom_call.1} parent=1 // pred_check_branch
      %30 = sbr.rel (0) target = $region5
    $region4: #{tpu_custom_call.1} parent=1 // pred_region
      %s32 = ssub.s32 2304, 2304
      %33 = vsyncadd [#allocation3], %s32
      %s34 = sshll.u32 [#allocation2], 4
      %s35 = int_to_ptr.vmem [resolvable:$true] %s34
      %40 = dma.hbm_to_vmem [thread:$0]  %s0, 2304, %s35, [#allocation3], 768, 768, 48
    $region5: #{tpu_custom_call.1} parent=1 // pred_fallthru
      _
    // Predicated region
    $region6: #{tpu_custom_call.1} parent=1 // pred_check
      _
    $region7: #{tpu_custom_call.1} parent=1 // pred_check_branch
      %42 = sbr.rel (0) target = $region9
    $region8: #{tpu_custom_call.1} parent=1 // pred_region
      _
    $region9: #{tpu_custom_call.1} parent=1 // pred_fallthru
      _
    // Predicated region
    $region10: #{tpu_custom_call.1} parent=1 // pred_check
      _
    $region11: #{tpu_custom_call.1} parent=1 // pred_check_branch
      %44 = sbr.rel (0) target = $region13
    $region12: #{tpu_custom_call.1} parent=1 // pred_region
      %s46 = ssub.s32 1536, 1536
      %47 = vsyncadd [#allocation6], %s46
      %s48 = sshll.u32 [#allocation5], 4
      %s49 = int_to_ptr.vmem [resolvable:$true] %s48
      %54 = dma.hbm_to_vmem [thread:$0]  %s2, 1536, %s49, [#allocation6], 768, 768, 48
    $region13: #{tpu_custom_call.1} parent=1 // pred_fallthru
      _
    // Predicated region
    $region14: #{tpu_custom_call.1} parent=1 // pred_check
      _
    $region15: #{tpu_custom_call.1} parent=1 // pred_check_branch
      %56 = sbr.rel (0) target = $region17
    $region16: #{tpu_custom_call.1} parent=1 // pred_region
      _
    $region17: #{tpu_custom_call.1} parent=1 // pred_fallthru
      _
    // Predicated region
    $region18: #{tpu_custom_call.1} parent=1 // pred_check
      _
    $region19: #{tpu_custom_call.1} parent=1 // pred_check_branch
      %58 = sbr.rel (0) target = $region21
    $region20: #{tpu_custom_call.1} parent=1 // pred_region
      %s60 = ssub.s32 3072, 3072
      %61 = vsyncadd [#allocation6], %s60
      %s62 = sshll.u32 [#allocation7], 4
      %s63 = int_to_ptr.vmem [resolvable:$true] %s62
      %68 = dma.hbm_to_vmem [thread:$0]  %s4, 3072, %s63, [#allocation6], 768, 768, 48
    $region21: #{tpu_custom_call.1} parent=1 // pred_fallthru
      _
    // Predicated region
    $region22: #{tpu_custom_call.1} parent=1 // pred_check
      _
    $region23: #{tpu_custom_call.1} parent=1 // pred_check_branch
      %70 = sbr.rel (0) target = $region25
    $region24: #{tpu_custom_call.1} parent=1 // pred_region
      %s72 = ssub.s32 3072, 3072
      %73 = vsyncadd [#allocation9], %s72
      %s74 = sshll.u32 [#allocation8], 4
      %s75 = int_to_ptr.vmem [resolvable:$true] %s74
      %80 = dma.hbm_to_vmem [thread:$0]  %s5, 3072, %s75, [#allocation9], 768, 768, 48
    $region25: #{tpu_custom_call.1} parent=1 // pred_fallthru
      _
    // Predicated region
    $region26: #{tpu_custom_call.1} parent=1 // pred_check
      _
    $region27: #{tpu_custom_call.1} parent=1 // pred_check_branch
      %82 = sbr.rel (0) target = $region29
    $region28: #{tpu_custom_call.1} parent=1 // pred_region
      _
    $region29: #{tpu_custom_call.1} parent=1 // pred_fallthru
      _
    // Predicated region
    $region30: #{tpu_custom_call.1} parent=1 // pred_check
      _
    $region31: #{tpu_custom_call.1} parent=1 // pred_check_branch
      %84 = sbr.rel (0) target = $region33
    $region32: #{tpu_custom_call.1} parent=1 // pred_region
      _
    $region33: #{tpu_custom_call.1} parent=1 // pred_fallthru
      _
    // Predicated region
    $region34: #{tpu_custom_call.1} parent=1 // pred_check
      _
    $region35: #{tpu_custom_call.1} parent=1 // pred_check_branch
      %86 = sbr.rel (0) target = $region37
    $region36: #{tpu_custom_call.1} parent=1 // pred_region
      _
    $region37: #{tpu_custom_call.1} parent=1 // pred_fallthru
      _
    // Predicated region
    $region38: #{tpu_custom_call.1} parent=1 // pred_check
      _
    $region39: #{tpu_custom_call.1} parent=1 // pred_check_branch
      %88 = sbr.rel (0) target = $region41
    $region40: #{tpu_custom_call.1} parent=1 // pred_region
      _
    $region41: #{tpu_custom_call.1} parent=1 // pred_fallthru
      _
    // Predicated region
    $region42: #{tpu_custom_call.1} parent=1 // pred_check
      _
    $region43: #{tpu_custom_call.1} parent=1 // pred_check_branch
      %90 = sbr.rel (0) target = $region45
    $region44: #{tpu_custom_call.1} parent=1 // pred_region
      _
    $region45: #{tpu_custom_call.1} parent=1 // pred_fallthru
      _
    // Predicated region
    $region46: #{tpu_custom_call.1} parent=1 // pred_check
      _
    $region47: #{tpu_custom_call.1} parent=1 // pred_check_branch
      %92 = sbr.rel (0) target = $region49
    $region48: #{tpu_custom_call.1} parent=1 // pred_region
      _
    $region49: #{tpu_custom_call.1} parent=1 // pred_fallthru
      _
    // Predicated region
    $region50: #{tpu_custom_call.1} parent=1 // pred_check
      _
    $region51: #{tpu_custom_call.1} parent=1 // pred_check_branch
      %94 = sbr.rel (0) target = $region53
    $region52: #{tpu_custom_call.1} parent=1 // pred_region
      %s96 = ssub.s32 6144, 6144
      %97 = vsyncadd [#allocation9], %s96
      %s98 = sshll.u32 [#allocation10], 4
      %s99 = int_to_ptr.vmem [resolvable:$true] %s98
      %104 = dma.hbm_to_vmem [thread:$0]  %s12, 6144, %s99, [#allocation9], 64, 64, 4
    $region53: #{tpu_custom_call.1} parent=1 // pred_fallthru
      _
    // Predicated region
    $region54: #{tpu_custom_call.1} parent=1 // pred_check
      _
    $region55: #{tpu_custom_call.1} parent=1 // pred_check_branch
      %106 = sbr.rel (0) target = $region57
    $region56: #{tpu_custom_call.1} parent=1 // pred_region
      %107 = dma.done [#allocation3], 2304
    $region57: #{tpu_custom_call.1} parent=1 // pred_fallthru
      _
    // Predicated region
    $region58: #{tpu_custom_call.1} parent=1 // pred_check
      _
    $region59: #{tpu_custom_call.1} parent=1 // pred_check_branch
      %109 = sbr.rel (0) target = $region61
    $region60: #{tpu_custom_call.1} parent=1 // pred_region
      %110 = dma.done [#allocation6], 1536
    $region61: #{tpu_custom_call.1} parent=1 // pred_fallthru
      _
    // Predicated region
    $region62: #{tpu_custom_call.1} parent=1 // pred_check
      _
    $region63: #{tpu_custom_call.1} parent=1 // pred_check_branch
      %112 = sbr.rel (0) target = $region65
    $region64: #{tpu_custom_call.1} parent=1 // pred_region
      %113 = dma.done [#allocation6], 3072
    $region65: #{tpu_custom_call.1} parent=1 // pred_fallthru
      _
    // Predicated region
    $region66: #{tpu_custom_call.1} parent=1 // pred_check
      _
    $region67: #{tpu_custom_call.1} parent=1 // pred_check_branch
      %115 = sbr.rel (0) target = $region69
    $region68: #{tpu_custom_call.1} parent=1 // pred_region
      %116 = dma.done [#allocation9], 3072
    $region69: #{tpu_custom_call.1} parent=1 // pred_fallthru
      _
    // Predicated region
    $region70: #{tpu_custom_call.1} parent=1 // pred_check
      _
    $region71: #{tpu_custom_call.1} parent=1 // pred_check_branch
      %118 = sbr.rel (0) target = $region73
    $region72: #{tpu_custom_call.1} parent=1 // pred_region
      %119 = dma.done [#allocation9], 6144
    $region73: #{tpu_custom_call.1} parent=1 // pred_fallthru
      _
    %v121 = vld [vmem:[%s7] sm:$0x3f]
    %v122 = vld [vmem:[%s8] sm:$0x3f]
    %v123 = vld [vmem:[%s9] sm:$0x3f]
    %v124 = vld [vmem:[%s10] sm:$0x3f]
    %v125 = vld [vmem:[#allocation10] sm:$0xf]
    %v126 = vld [vmem:[#allocation10 + $0x4] sm:$0xf]
    %v127 = vld [vmem:[#allocation10 + $0x8] sm:$0xf]
    %v128 = vld [vmem:[#allocation10 + $0xc] sm:$0xf]
    %v129 = vld [vmem:[#allocation10 + $0x10] sm:$0xf]
    %v130 = vld [vmem:[#allocation10 + $0x14] sm:$0xf]
    %v131 = vld [vmem:[#allocation10 + $0x18] sm:$0xf]
    %v132 = vld [vmem:[#allocation10 + $0x1c] sm:$0xf]
    %v133 = vld [vmem:[#allocation10 + $0x20] sm:$0xf]
    %v134 = vld [vmem:[#allocation10 + $0x24] sm:$0xf]
    %v135 = vld [vmem:[#allocation10 + $0x28] sm:$0xf]
    %v136 = vld [vmem:[#allocation10 + $0x2c] sm:$0xf]
    %v137 = vld [vmem:[#allocation10 + $0x30] sm:$0xf]
    %v138 = vld [vmem:[#allocation10 + $0x34] sm:$0xf]
    %v139 = vld [vmem:[#allocation10 + $0x38] sm:$0xf]
    %v140 = vld [vmem:[#allocation10 + $0x3c] sm:$0xf]
    %v141 = vld [vmem:[#allocation10 + $0x40] sm:$0xf]
    %v142 = vld [vmem:[#allocation10 + $0x44] sm:$0xf]
    %v143 = vld [vmem:[#allocation10 + $0x48] sm:$0xf]
    %v144 = vld [vmem:[#allocation10 + $0x4c] sm:$0xf]
    %v145 = vld [vmem:[#allocation10 + $0x50] sm:$0xf]
    %v146 = vld [vmem:[#allocation10 + $0x54] sm:$0xf]
    %v147 = vld [vmem:[#allocation10 + $0x58] sm:$0xf]
    %v148 = vld [vmem:[#allocation10 + $0x5c] sm:$0xf]
    %v149 = vld [vmem:[#allocation10 + $0x60] sm:$0xf]
    %v150 = vld [vmem:[#allocation10 + $0x64] sm:$0xf]
    %v151 = vld [vmem:[#allocation10 + $0x68] sm:$0xf]
    %v152 = vld [vmem:[#allocation10 + $0x6c] sm:$0xf]
    %v153 = vld [vmem:[#allocation10 + $0x70] sm:$0xf]
    %v154 = vld [vmem:[#allocation10 + $0x74] sm:$0xf]
    %v155 = vld [vmem:[#allocation10 + $0x78] sm:$0xf]
    %v156 = vld [vmem:[#allocation10 + $0x7c] sm:$0xf]
    %v157 = vld [vmem:[#allocation10 + $0x80] sm:$0xf]
    %v158 = vld [vmem:[#allocation10 + $0x84] sm:$0xf]
    %v159 = vld [vmem:[#allocation10 + $0x88] sm:$0xf]
    %v160 = vld [vmem:[#allocation10 + $0x8c] sm:$0xf]
    %v161 = vld [vmem:[#allocation10 + $0x90] sm:$0xf]
    %v162 = vld [vmem:[#allocation10 + $0x94] sm:$0xf]
    %v163 = vld [vmem:[#allocation10 + $0x98] sm:$0xf]
    %v164 = vld [vmem:[#allocation10 + $0x9c] sm:$0xf]
    %v165 = vld [vmem:[#allocation10 + $0xa0] sm:$0xf]
    %v166 = vld [vmem:[#allocation10 + $0xa4] sm:$0xf]
    %v167 = vld [vmem:[#allocation10 + $0xa8] sm:$0xf]
    %v168 = vld [vmem:[#allocation10 + $0xac] sm:$0xf]
    %v169 = vld [vmem:[#allocation10 + $0xb0] sm:$0xf]
    %v170 = vld [vmem:[#allocation10 + $0xb4] sm:$0xf]
    %v171 = vld [vmem:[#allocation10 + $0xb8] sm:$0xf]
    %v172 = vld [vmem:[#allocation10 + $0xbc] sm:$0xf]
    %v173 = vld [vmem:[#allocation10 + $0xc0] sm:$0xf]
    %v174 = vld [vmem:[#allocation10 + $0xc4] sm:$0xf]
    %v175 = vld [vmem:[#allocation10 + $0xc8] sm:$0xf]
    %v176 = vld [vmem:[#allocation10 + $0xcc] sm:$0xf]
    %v177 = vld [vmem:[#allocation10 + $0xd0] sm:$0xf]
    %v178 = vld [vmem:[#allocation10 + $0xd4] sm:$0xf]
    %v179 = vld [vmem:[#allocation10 + $0xd8] sm:$0xf]
    %v180 = vld [vmem:[#allocation10 + $0xdc] sm:$0xf]
    %v181 = vld [vmem:[#allocation10 + $0xe0] sm:$0xf]
    %v182 = vld [vmem:[#allocation10 + $0xe4] sm:$0xf]
    %v183 = vld [vmem:[#allocation10 + $0xe8] sm:$0xf]
    %v184 = vld [vmem:[#allocation10 + $0xec] sm:$0xf]
    %v185 = vld [vmem:[#allocation10 + $0xf0] sm:$0xf]
    %v186 = vld [vmem:[#allocation10 + $0xf4] sm:$0xf]
    %v187 = vld [vmem:[#allocation10 + $0xf8] sm:$0xf]
    %v188 = vld [vmem:[#allocation10 + $0xfc] sm:$0xf]
    %v189 = vld [vmem:[#allocation10 + $0x100] sm:$0xf]
    %v190 = vld [vmem:[#allocation10 + $0x104] sm:$0xf]
    %v191 = vld [vmem:[#allocation10 + $0x108] sm:$0xf]
    %v192 = vld [vmem:[#allocation10 + $0x10c] sm:$0xf]
    %v193 = vld [vmem:[#allocation10 + $0x110] sm:$0xf]
    %v194 = vld [vmem:[#allocation10 + $0x114] sm:$0xf]
    %v195 = vld [vmem:[#allocation10 + $0x118] sm:$0xf]
    %v196 = vld [vmem:[#allocation10 + $0x11c] sm:$0xf]
    %v197 = vld [vmem:[#allocation10 + $0x120] sm:$0xf]
    %v198 = vld [vmem:[#allocation10 + $0x124] sm:$0xf]
    %v199 = vld [vmem:[#allocation10 + $0x128] sm:$0xf]
    %v200 = vld [vmem:[#allocation10 + $0x12c] sm:$0xf]
    %v201 = vld [vmem:[#allocation10 + $0x130] sm:$0xf]
    %v202 = vld [vmem:[#allocation10 + $0x134] sm:$0xf]
    %v203 = vld [vmem:[#allocation10 + $0x138] sm:$0xf]
    %v204 = vld [vmem:[#allocation10 + $0x13c] sm:$0xf]
    %v205 = vld [vmem:[#allocation10 + $0x140] sm:$0xf]
    %v206 = vld [vmem:[#allocation10 + $0x144] sm:$0xf]
    %v207 = vld [vmem:[#allocation10 + $0x148] sm:$0xf]
    %v208 = vld [vmem:[#allocation10 + $0x14c] sm:$0xf]
    %v209 = vld [vmem:[#allocation10 + $0x150] sm:$0xf]
    %v210 = vld [vmem:[#allocation10 + $0x154] sm:$0xf]
    %v211 = vld [vmem:[#allocation10 + $0x158] sm:$0xf]
    %v212 = vld [vmem:[#allocation10 + $0x15c] sm:$0xf]
    %v213 = vld [vmem:[#allocation10 + $0x160] sm:$0xf]
    %v214 = vld [vmem:[#allocation10 + $0x164] sm:$0xf]
    %v215 = vld [vmem:[#allocation10 + $0x168] sm:$0xf]
    %v216 = vld [vmem:[#allocation10 + $0x16c] sm:$0xf]
    %v217 = vld [vmem:[#allocation10 + $0x170] sm:$0xf]
    %v218 = vld [vmem:[#allocation10 + $0x174] sm:$0xf]
    %v219 = vld [vmem:[#allocation10 + $0x178] sm:$0xf]
    %v220 = vld [vmem:[#allocation10 + $0x17c] sm:$0xf]
    %v221 = vld [vmem:[#allocation2] sm:$0xff]
    %v222 = vld [vmem:[#allocation2 + $0x8] sm:$0xff]
    %v223 = vld [vmem:[#allocation2 + $0x10] sm:$0xff]
    %v224 = vld [vmem:[#allocation2 + $0x18] sm:$0xff]
    %v225 = vld [vmem:[#allocation2 + $0x20] sm:$0xff]
    %v226 = vld [vmem:[#allocation2 + $0x28] sm:$0xff]
    %v227 = vld [vmem:[#allocation2 + $0x30] sm:$0xff]
    %v228 = vld [vmem:[#allocation2 + $0x38] sm:$0xff]
    %v229 = vld [vmem:[#allocation2 + $0x40] sm:$0xff]
    %v230 = vld [vmem:[#allocation2 + $0x48] sm:$0xff]
    %v231 = vld [vmem:[#allocation2 + $0x50] sm:$0xff]
    %v232 = vld [vmem:[#allocation2 + $0x58] sm:$0xff]
    %v233 = vld [vmem:[#allocation2 + $0x60] sm:$0xff]
    %v234 = vld [vmem:[#allocation2 + $0x68] sm:$0xff]
    %v235 = vld [vmem:[#allocation2 + $0x70] sm:$0xff]
    %v236 = vld [vmem:[#allocation2 + $0x78] sm:$0xff]
    %v237 = vld [vmem:[#allocation2 + $0x80] sm:$0xff]
    %v238 = vld [vmem:[#allocation2 + $0x88] sm:$0xff]
    %v239 = vld [vmem:[%s1] sm:$0xff]
    %v240 = vld [vmem:[%s1 + $0x8] sm:$0xff]
    %v241 = vld [vmem:[%s1 + $0x10] sm:$0xff]
    %v242 = vadd.f32 %v221, %v222
    %v243 = vadd.f32 %v242, %v223
    %v244 = vadd.f32 %v243, %v224
    %v245 = vadd.f32 %v244, %v225
    %v246 = vadd.f32 %v245, %v226
    %247 = vadd.xlane.f32.xlu0 %v246
    %v248 = vpop.xlane.xlu0 %247
    %v249 = vadd.f32 %v227, %v228
    %v250 = vadd.f32 %v249, %v229
    %v251 = vadd.f32 %v250, %v230
    %v252 = vadd.f32 %v251, %v231
    %v253 = vadd.f32 %v252, %v232
    %254 = vadd.xlane.f32.xlu0 %v253
    %v255 = vpop.xlane.xlu0 %254
    %v256 = vadd.f32 %v233, %v234
    %v257 = vadd.f32 %v256, %v235
    %v258 = vadd.f32 %v257, %v236
    %v259 = vadd.f32 %v258, %v237
    %v260 = vadd.f32 %v259, %v238
    %261 = vadd.xlane.f32.xlu0 %v260
    %v262 = vpop.xlane.xlu0 %261
    %v263 = vrcp.pop 768.0
    %v264 = vmul.f32 %v248, %v263
    %v265 = vmul.f32 %v255, %v263
    %v266 = vmul.f32 %v262, %v263
    %v267 = vsub.f32 %v221, %v264
    %v268 = vsub.f32 %v222, %v264
    %v269 = vsub.f32 %v223, %v264
    %v270 = vsub.f32 %v224, %v264
    %v271 = vsub.f32 %v225, %v264
    %v272 = vsub.f32 %v226, %v264
    %v273 = vsub.f32 %v227, %v265
    %v274 = vsub.f32 %v228, %v265
    %v275 = vsub.f32 %v229, %v265
    %v276 = vsub.f32 %v230, %v265
    %v277 = vsub.f32 %v231, %v265
    %v278 = vsub.f32 %v232, %v265
    %v279 = vsub.f32 %v233, %v266
    %v280 = vsub.f32 %v234, %v266
    %v281 = vsub.f32 %v235, %v266
    %v282 = vsub.f32 %v236, %v266
    %v283 = vsub.f32 %v237, %v266
    %v284 = vsub.f32 %v238, %v266
    %v285 = vmul.f32 %v267, %v267
    %v286 = vmul.f32 %v268, %v268
    %v287 = vmul.f32 %v269, %v269
    %v288 = vmul.f32 %v270, %v270
    %v289 = vmul.f32 %v271, %v271
    %v290 = vmul.f32 %v272, %v272
    %v291 = vmul.f32 %v273, %v273
    %v292 = vmul.f32 %v274, %v274
    %v293 = vmul.f32 %v275, %v275
    %v294 = vmul.f32 %v276, %v276
    %v295 = vmul.f32 %v277, %v277
    %v296 = vmul.f32 %v278, %v278
    %v297 = vmul.f32 %v279, %v279
    %v298 = vmul.f32 %v280, %v280
    %v299 = vmul.f32 %v281, %v281
    %v300 = vmul.f32 %v282, %v282
    %v301 = vmul.f32 %v283, %v283
    %v302 = vmul.f32 %v284, %v284
    %v303 = vadd.f32 %v285, %v286
    %v304 = vadd.f32 %v303, %v287
    %v305 = vadd.f32 %v304, %v288
    %v306 = vadd.f32 %v305, %v289
    %v307 = vadd.f32 %v306, %v290
    %308 = vadd.xlane.f32.xlu0 %v307
    %v309 = vpop.xlane.xlu0 %308
    %v310 = vadd.f32 %v291, %v292
    %v311 = vadd.f32 %v310, %v293
    %v312 = vadd.f32 %v311, %v294
    %v313 = vadd.f32 %v312, %v295
    %v314 = vadd.f32 %v313, %v296
    %315 = vadd.xlane.f32.xlu0 %v314
    %v316 = vpop.xlane.xlu0 %315
    %v317 = vadd.f32 %v297, %v298
    %v318 = vadd.f32 %v317, %v299
    %v319 = vadd.f32 %v318, %v300
    %v320 = vadd.f32 %v319, %v301
    %v321 = vadd.f32 %v320, %v302
    %322 = vadd.xlane.f32.xlu0 %v321
    %v323 = vpop.xlane.xlu0 %322
    %v324 = vmul.f32 %v309, %v263
    %v325 = vmul.f32 %v316, %v263
    %v326 = vmul.f32 %v323, %v263
    %v327 = vadd.f32 %v324, 1e-05
    %v328 = vadd.f32 %v325, 1e-05
    %v329 = vadd.f32 %v326, 1e-05
    %v330 = vrsqrt.pop %v327
    %v331 = vrsqrt.pop %v328
    %v332 = vrsqrt.pop %v329
    %v333 = vmul.f32 %v267, %v330
    %v334 = vmul.f32 %v268, %v330
    %v335 = vmul.f32 %v269, %v330
    %v336 = vmul.f32 %v270, %v330
    %v337 = vmul.f32 %v271, %v330
    %v338 = vmul.f32 %v272, %v330
    %v339 = vmul.f32 %v273, %v331
    %v340 = vmul.f32 %v274, %v331
    %v341 = vmul.f32 %v275, %v331
    %v342 = vmul.f32 %v276, %v331
    %v343 = vmul.f32 %v277, %v331
    %v344 = vmul.f32 %v278, %v331
    %v345 = vmul.f32 %v279, %v332
    %v346 = vmul.f32 %v280, %v332
    %v347 = vmul.f32 %v281, %v332
    %v348 = vmul.f32 %v282, %v332
    %v349 = vmul.f32 %v283, %v332
    %v350 = vmul.f32 %v284, %v332
    %v352 = vlaneseq
    %v353 = vshrl.u32 %v352, 7
    %v354 = vsub.s32 0, %v353
    %v355 = vrot.slane %v121, %v354
    %v356 = vlaneseq
    %v357 = vshrl.u32 %v356, 7
    %v358 = vsub.s32 1, %v357
    %v359 = vrot.slane %v121, %v358
    %v360 = vlaneseq
    %v361 = vshrl.u32 %v360, 7
    %v362 = vsub.s32 2, %v361
    %v363 = vrot.slane %v121, %v362
    %v364 = vlaneseq
    %v365 = vshrl.u32 %v364, 7
    %v366 = vsub.s32 3, %v365
    %v367 = vrot.slane %v121, %v366
    %v368 = vlaneseq
    %v369 = vshrl.u32 %v368, 7
    %v370 = vsub.s32 4, %v369
    %v371 = vrot.slane %v121, %v370
    %v372 = vlaneseq
    %v373 = vshrl.u32 %v372, 7
    %v374 = vsub.s32 5, %v373
    %v375 = vrot.slane %v121, %v374
    %v382 = vmul.f32 %v333, %v355
    %v383 = vmul.f32 %v334, %v359
    %v384 = vmul.f32 %v335, %v363
    %v385 = vmul.f32 %v336, %v367
    %v386 = vmul.f32 %v337, %v371
    %v387 = vmul.f32 %v338, %v375
    %v388 = vmul.f32 %v339, %v355
    %v389 = vmul.f32 %v340, %v359
    %v390 = vmul.f32 %v341, %v363
    %v391 = vmul.f32 %v342, %v367
    %v392 = vmul.f32 %v343, %v371
    %v393 = vmul.f32 %v344, %v375
    %v394 = vmul.f32 %v345, %v355
    %v395 = vmul.f32 %v346, %v359
    %v396 = vmul.f32 %v347, %v363
    %v397 = vmul.f32 %v348, %v367
    %v398 = vmul.f32 %v349, %v371
    %v399 = vmul.f32 %v350, %v375
    %v401 = vlaneseq
    %v402 = vshrl.u32 %v401, 7
    %v403 = vsub.s32 0, %v402
    %v404 = vrot.slane %v122, %v403
    %v405 = vlaneseq
    %v406 = vshrl.u32 %v405, 7
    %v407 = vsub.s32 1, %v406
    %v408 = vrot.slane %v122, %v407
    %v409 = vlaneseq
    %v410 = vshrl.u32 %v409, 7
    %v411 = vsub.s32 2, %v410
    %v412 = vrot.slane %v122, %v411
    %v413 = vlaneseq
    %v414 = vshrl.u32 %v413, 7
    %v415 = vsub.s32 3, %v414
    %v416 = vrot.slane %v122, %v415
    %v417 = vlaneseq
    %v418 = vshrl.u32 %v417, 7
    %v419 = vsub.s32 4, %v418
    %v420 = vrot.slane %v122, %v419
    %v421 = vlaneseq
    %v422 = vshrl.u32 %v421, 7
    %v423 = vsub.s32 5, %v422
    %v424 = vrot.slane %v122, %v423
    %v431 = vadd.f32 %v382, %v404
    %v432 = vadd.f32 %v383, %v408
    %v433 = vadd.f32 %v384, %v412
    %v434 = vadd.f32 %v385, %v416
    %v435 = vadd.f32 %v386, %v420
    %v436 = vadd.f32 %v387, %v424
    %v437 = vadd.f32 %v388, %v404
    %v438 = vadd.f32 %v389, %v408
    %v439 = vadd.f32 %v390, %v412
    %v440 = vadd.f32 %v391, %v416
    %v441 = vadd.f32 %v392, %v420
    %v442 = vadd.f32 %v393, %v424
    %v443 = vadd.f32 %v394, %v404
    %v444 = vadd.f32 %v395, %v408
    %v445 = vadd.f32 %v396, %v412
    %v446 = vadd.f32 %v397, %v416
    %v447 = vadd.f32 %v398, %v420
    %v448 = vadd.f32 %v399, %v424
    %450 = vset.pattern.permute.xlu0 0
    %451 = vperm.xlu0 %450, %v239
    %v452 = vpop.permute.xlu0 %451
    %455 = vset.pattern.permute.xlu0 0
    %456 = vperm.xlu0 %455, %v240
    %v457 = vpop.permute.xlu0 %456
    %460 = vset.pattern.permute.xlu0 0
    %461 = vperm.xlu0 %460, %v241
    %v462 = vpop.permute.xlu0 %461
    %v464 = vmul.f32 %v431, %v452
    %v465 = vmul.f32 %v432, %v452
    %v466 = vmul.f32 %v433, %v452
    %v467 = vmul.f32 %v434, %v452
    %v468 = vmul.f32 %v435, %v452
    %v469 = vmul.f32 %v436, %v452
    %v470 = vmul.f32 %v437, %v457
    %v471 = vmul.f32 %v438, %v457
    %v472 = vmul.f32 %v439, %v457
    %v473 = vmul.f32 %v440, %v457
    %v474 = vmul.f32 %v441, %v457
    %v475 = vmul.f32 %v442, %v457
    %v476 = vmul.f32 %v443, %v462
    %v477 = vmul.f32 %v444, %v462
    %v478 = vmul.f32 %v445, %v462
    %v479 = vmul.f32 %v446, %v462
    %v480 = vmul.f32 %v447, %v462
    %v481 = vmul.f32 %v448, %v462
    %v482 = vrot.slane %v464, 4
    %v483 = vadd.f32 %v464, %v482
    %v484 = vrot.slane %v483, 2
    %v485 = vadd.f32 %v483, %v484
    %v486 = vrot.slane %v485, 1
    %v487 = vadd.f32 %v485, %v486
    %v488 = vrot.slane %v465, 4
    %v489 = vadd.f32 %v465, %v488
    %v490 = vrot.slane %v489, 2
    %v491 = vadd.f32 %v489, %v490
    %v492 = vrot.slane %v491, 1
    %v493 = vadd.f32 %v491, %v492
    %v494 = vrot.slane %v466, 4
    %v495 = vadd.f32 %v466, %v494
    %v496 = vrot.slane %v495, 2
    %v497 = vadd.f32 %v495, %v496
    %v498 = vrot.slane %v497, 1
    %v499 = vadd.f32 %v497, %v498
    %v500 = vrot.slane %v467, 4
    %v501 = vadd.f32 %v467, %v500
    %v502 = vrot.slane %v501, 2
    %v503 = vadd.f32 %v501, %v502
    %v504 = vrot.slane %v503, 1
    %v505 = vadd.f32 %v503, %v504
    %v506 = vrot.slane %v468, 4
    %v507 = vadd.f32 %v468, %v506
    %v508 = vrot.slane %v507, 2
    %v509 = vadd.f32 %v507, %v508
    %v510 = vrot.slane %v509, 1
    %v511 = vadd.f32 %v509, %v510
    %v512 = vrot.slane %v469, 4
    %v513 = vadd.f32 %v469, %v512
    %v514 = vrot.slane %v513, 2
    %v515 = vadd.f32 %v513, %v514
    %v516 = vrot.slane %v515, 1
    %v517 = vadd.f32 %v515, %v516
    %v518 = vrot.slane %v470, 4
    %v519 = vadd.f32 %v470, %v518
    %v520 = vrot.slane %v519, 2
    %v521 = vadd.f32 %v519, %v520
    %v522 = vrot.slane %v521, 1
    %v523 = vadd.f32 %v521, %v522
    %v524 = vrot.slane %v471, 4
    %v525 = vadd.f32 %v471, %v524
    %v526 = vrot.slane %v525, 2
    %v527 = vadd.f32 %v525, %v526
    %v528 = vrot.slane %v527, 1
    %v529 = vadd.f32 %v527, %v528
    %v530 = vrot.slane %v472, 4
    %v531 = vadd.f32 %v472, %v530
    %v532 = vrot.slane %v531, 2
    %v533 = vadd.f32 %v531, %v532
    %v534 = vrot.slane %v533, 1
    %v535 = vadd.f32 %v533, %v534
    %v536 = vrot.slane %v473, 4
    %v537 = vadd.f32 %v473, %v536
    %v538 = vrot.slane %v537, 2
    %v539 = vadd.f32 %v537, %v538
    %v540 = vrot.slane %v539, 1
    %v541 = vadd.f32 %v539, %v540
    %v542 = vrot.slane %v474, 4
    %v543 = vadd.f32 %v474, %v542
    %v544 = vrot.slane %v543, 2
    %v545 = vadd.f32 %v543, %v544
    %v546 = vrot.slane %v545, 1
    %v547 = vadd.f32 %v545, %v546
    %v548 = vrot.slane %v475, 4
    %v549 = vadd.f32 %v475, %v548
    %v550 = vrot.slane %v549, 2
    %v551 = vadd.f32 %v549, %v550
    %v552 = vrot.slane %v551, 1
    %v553 = vadd.f32 %v551, %v552
    %v554 = vrot.slane %v476, 4
    %v555 = vadd.f32 %v476, %v554
    %v556 = vrot.slane %v555, 2
    %v557 = vadd.f32 %v555, %v556
    %v558 = vrot.slane %v557, 1
    %v559 = vadd.f32 %v557, %v558
    %v560 = vrot.slane %v477, 4
    %v561 = vadd.f32 %v477, %v560
    %v562 = vrot.slane %v561, 2
    %v563 = vadd.f32 %v561, %v562
    %v564 = vrot.slane %v563, 1
    %v565 = vadd.f32 %v563, %v564
    %v566 = vrot.slane %v478, 4
    %v567 = vadd.f32 %v478, %v566
    %v568 = vrot.slane %v567, 2
    %v569 = vadd.f32 %v567, %v568
    %v570 = vrot.slane %v569, 1
    %v571 = vadd.f32 %v569, %v570
    %v572 = vrot.slane %v479, 4
    %v573 = vadd.f32 %v479, %v572
    %v574 = vrot.slane %v573, 2
    %v575 = vadd.f32 %v573, %v574
    %v576 = vrot.slane %v575, 1
    %v577 = vadd.f32 %v575, %v576
    %v578 = vrot.slane %v480, 4
    %v579 = vadd.f32 %v480, %v578
    %v580 = vrot.slane %v579, 2
    %v581 = vadd.f32 %v579, %v580
    %v582 = vrot.slane %v581, 1
    %v583 = vadd.f32 %v581, %v582
    %v584 = vrot.slane %v481, 4
    %v585 = vadd.f32 %v481, %v584
    %v586 = vrot.slane %v585, 2
    %v587 = vadd.f32 %v585, %v586
    %v588 = vrot.slane %v587, 1
    %v589 = vadd.f32 %v587, %v588
    %v590 = vld [vmem:[#allocation5] sm:$0xff]
    %v591 = vld [vmem:[#allocation5 + $0x8] sm:$0xff]
    %v592 = vld [vmem:[#allocation5 + $0x10] sm:$0xff]
    %v593 = vld [vmem:[#allocation5 + $0x18] sm:$0xff]
    %v594 = vld [vmem:[#allocation5 + $0x20] sm:$0xff]
    %v595 = vld [vmem:[#allocation5 + $0x28] sm:$0xff]
    %v596 = vld [vmem:[#allocation5 + $0x30] sm:$0xff]
    %v597 = vld [vmem:[#allocation5 + $0x38] sm:$0xff]
    %v598 = vld [vmem:[#allocation5 + $0x40] sm:$0xff]
    %v599 = vld [vmem:[#allocation5 + $0x48] sm:$0xff]
    %v600 = vld [vmem:[#allocation5 + $0x50] sm:$0xff]
    %v601 = vld [vmem:[#allocation5 + $0x58] sm:$0xff]
    %v602 = vld [vmem:[%s3] sm:$0xff]
    %v603 = vld [vmem:[%s3 + $0x8] sm:$0xff]
    %v604 = vadd.f32 %v590, %v591
    %v605 = vadd.f32 %v604, %v592
    %v606 = vadd.f32 %v605, %v593
    %v607 = vadd.f32 %v606, %v594
    %v608 = vadd.f32 %v607, %v595
    %609 = vadd.xlane.f32.xlu0 %v608
    %v610 = vpop.xlane.xlu0 %609
    %v611 = vadd.f32 %v596, %v597
    %v612 = vadd.f32 %v611, %v598
    %v613 = vadd.f32 %v612, %v599
    %v614 = vadd.f32 %v613, %v600
    %v615 = vadd.f32 %v614, %v601
    %616 = vadd.xlane.f32.xlu0 %v615
    %v617 = vpop.xlane.xlu0 %616
    %v618 = vmul.f32 %v610, %v263
    %v619 = vmul.f32 %v617, %v263
    %v620 = vsub.f32 %v590, %v618
    %v621 = vsub.f32 %v591, %v618
    %v622 = vsub.f32 %v592, %v618
    %v623 = vsub.f32 %v593, %v618
    %v624 = vsub.f32 %v594, %v618
    %v625 = vsub.f32 %v595, %v618
    %v626 = vsub.f32 %v596, %v619
    %v627 = vsub.f32 %v597, %v619
    %v628 = vsub.f32 %v598, %v619
    %v629 = vsub.f32 %v599, %v619
    %v630 = vsub.f32 %v600, %v619
    %v631 = vsub.f32 %v601, %v619
    %v632 = vmul.f32 %v620, %v620
    %v633 = vmul.f32 %v621, %v621
    %v634 = vmul.f32 %v622, %v622
    %v635 = vmul.f32 %v623, %v623
    %v636 = vmul.f32 %v624, %v624
    %v637 = vmul.f32 %v625, %v625
    %v638 = vmul.f32 %v626, %v626
    %v639 = vmul.f32 %v627, %v627
    %v640 = vmul.f32 %v628, %v628
    %v641 = vmul.f32 %v629, %v629
    %v642 = vmul.f32 %v630, %v630
    %v643 = vmul.f32 %v631, %v631
    %v644 = vadd.f32 %v632, %v633
    %v645 = vadd.f32 %v644, %v634
    %v646 = vadd.f32 %v645, %v635
    %v647 = vadd.f32 %v646, %v636
    %v648 = vadd.f32 %v647, %v637
    %649 = vadd.xlane.f32.xlu0 %v648
    %v650 = vpop.xlane.xlu0 %649
    %v651 = vadd.f32 %v638, %v639
    %v652 = vadd.f32 %v651, %v640
    %v653 = vadd.f32 %v652, %v641
    %v654 = vadd.f32 %v653, %v642
    %v655 = vadd.f32 %v654, %v643
    %656 = vadd.xlane.f32.xlu0 %v655
    %v657 = vpop.xlane.xlu0 %656
    %v658 = vmul.f32 %v650, %v263
    %v659 = vmul.f32 %v657, %v263
    %v660 = vadd.f32 %v658, 1e-05
    %v661 = vadd.f32 %v659, 1e-05
    %v662 = vrsqrt.pop %v660
    %v663 = vrsqrt.pop %v661
    %v664 = vmul.f32 %v620, %v662
    %v665 = vmul.f32 %v621, %v662
    %v666 = vmul.f32 %v622, %v662
    %v667 = vmul.f32 %v623, %v662
    %v668 = vmul.f32 %v624, %v662
    %v669 = vmul.f32 %v625, %v662
    %v670 = vmul.f32 %v626, %v663
    %v671 = vmul.f32 %v627, %v663
    %v672 = vmul.f32 %v628, %v663
    %v673 = vmul.f32 %v629, %v663
    %v674 = vmul.f32 %v630, %v663
    %v675 = vmul.f32 %v631, %v663
    %v676 = vmul.f32 %v664, %v355
    %v677 = vmul.f32 %v665, %v359
    %v678 = vmul.f32 %v666, %v363
    %v679 = vmul.f32 %v667, %v367
    %v680 = vmul.f32 %v668, %v371
    %v681 = vmul.f32 %v669, %v375
    %v682 = vmul.f32 %v670, %v355
    %v683 = vmul.f32 %v671, %v359
    %v684 = vmul.f32 %v672, %v363
    %v685 = vmul.f32 %v673, %v367
    %v686 = vmul.f32 %v674, %v371
    %v687 = vmul.f32 %v675, %v375
    %v688 = vadd.f32 %v676, %v404
    %v689 = vadd.f32 %v677, %v408
    %v690 = vadd.f32 %v678, %v412
    %v691 = vadd.f32 %v679, %v416
    %v692 = vadd.f32 %v680, %v420
    %v693 = vadd.f32 %v681, %v424
    %v694 = vadd.f32 %v682, %v404
    %v695 = vadd.f32 %v683, %v408
    %v696 = vadd.f32 %v684, %v412
    %v697 = vadd.f32 %v685, %v416
    %v698 = vadd.f32 %v686, %v420
    %v699 = vadd.f32 %v687, %v424
    %701 = vset.pattern.permute.xlu0 0
    %702 = vperm.xlu0 %701, %v602
    %v703 = vpop.permute.xlu0 %702
    %706 = vset.pattern.permute.xlu0 0
    %707 = vperm.xlu0 %706, %v603
    %v708 = vpop.permute.xlu0 %707
    %v710 = vmul.f32 %v688, %v703
    %v711 = vmul.f32 %v689, %v703
    %v712 = vmul.f32 %v690, %v703
    %v713 = vmul.f32 %v691, %v703
    %v714 = vmul.f32 %v692, %v703
    %v715 = vmul.f32 %v693, %v703
    %v716 = vmul.f32 %v694, %v708
    %v717 = vmul.f32 %v695, %v708
    %v718 = vmul.f32 %v696, %v708
    %v719 = vmul.f32 %v697, %v708
    %v720 = vmul.f32 %v698, %v708
    %v721 = vmul.f32 %v699, %v708
    %v722 = vrot.slane %v710, 4
    %v723 = vadd.f32 %v710, %v722
    %v724 = vrot.slane %v723, 2
    %v725 = vadd.f32 %v723, %v724
    %v726 = vrot.slane %v725, 1
    %v727 = vadd.f32 %v725, %v726
    %v728 = vrot.slane %v711, 4
    %v729 = vadd.f32 %v711, %v728
    %v730 = vrot.slane %v729, 2
    %v731 = vadd.f32 %v729, %v730
    %v732 = vrot.slane %v731, 1
    %v733 = vadd.f32 %v731, %v732
    %v734 = vrot.slane %v712, 4
    %v735 = vadd.f32 %v712, %v734
    %v736 = vrot.slane %v735, 2
    %v737 = vadd.f32 %v735, %v736
    %v738 = vrot.slane %v737, 1
    %v739 = vadd.f32 %v737, %v738
    %v740 = vrot.slane %v713, 4
    %v741 = vadd.f32 %v713, %v740
    %v742 = vrot.slane %v741, 2
    %v743 = vadd.f32 %v741, %v742
    %v744 = vrot.slane %v743, 1
    %v745 = vadd.f32 %v743, %v744
    %v746 = vrot.slane %v714, 4
    %v747 = vadd.f32 %v714, %v746
    %v748 = vrot.slane %v747, 2
    %v749 = vadd.f32 %v747, %v748
    %v750 = vrot.slane %v749, 1
    %v751 = vadd.f32 %v749, %v750
    %v752 = vrot.slane %v715, 4
    %v753 = vadd.f32 %v715, %v752
    %v754 = vrot.slane %v753, 2
    %v755 = vadd.f32 %v753, %v754
    %v756 = vrot.slane %v755, 1
    %v757 = vadd.f32 %v755, %v756
    %v758 = vrot.slane %v716, 4
    %v759 = vadd.f32 %v716, %v758
    %v760 = vrot.slane %v759, 2
    %v761 = vadd.f32 %v759, %v760
    %v762 = vrot.slane %v761, 1
    %v763 = vadd.f32 %v761, %v762
    %v764 = vrot.slane %v717, 4
    %v765 = vadd.f32 %v717, %v764
    %v766 = vrot.slane %v765, 2
    %v767 = vadd.f32 %v765, %v766
    %v768 = vrot.slane %v767, 1
    %v769 = vadd.f32 %v767, %v768
    %v770 = vrot.slane %v718, 4
    %v771 = vadd.f32 %v718, %v770
    %v772 = vrot.slane %v771, 2
    %v773 = vadd.f32 %v771, %v772
    %v774 = vrot.slane %v773, 1
    %v775 = vadd.f32 %v773, %v774
    %v776 = vrot.slane %v719, 4
    %v777 = vadd.f32 %v719, %v776
    %v778 = vrot.slane %v777, 2
    %v779 = vadd.f32 %v777, %v778
    %v780 = vrot.slane %v779, 1
    %v781 = vadd.f32 %v779, %v780
    %v782 = vrot.slane %v720, 4
    %v783 = vadd.f32 %v720, %v782
    %v784 = vrot.slane %v783, 2
    %v785 = vadd.f32 %v783, %v784
    %v786 = vrot.slane %v785, 1
    %v787 = vadd.f32 %v785, %v786
    %v788 = vrot.slane %v721, 4
    %v789 = vadd.f32 %v721, %v788
    %v790 = vrot.slane %v789, 2
    %v791 = vadd.f32 %v789, %v790
    %v792 = vrot.slane %v791, 1
    %v793 = vadd.f32 %v791, %v792
    %v794 = vld [vmem:[%s6] sm:$0xff]
    %v795 = vld [vmem:[%s6 + $0x8] sm:$0xff]
    %v796 = vld [vmem:[%s6 + $0x10] sm:$0xff]
    %v797 = vld [vmem:[%s6 + $0x18] sm:$0xff]
    %v798 = vld [vmem:[#allocation7] sm:$0xff]
    %v799 = vld [vmem:[#allocation7 + $0x8] sm:$0xff]
    %v800 = vld [vmem:[#allocation7 + $0x10] sm:$0xff]
    %v801 = vld [vmem:[#allocation7 + $0x18] sm:$0xff]
    %v802 = vld [vmem:[#allocation7 + $0x20] sm:$0xff]
    %v803 = vld [vmem:[#allocation7 + $0x28] sm:$0xff]
    %v804 = vld [vmem:[#allocation7 + $0x30] sm:$0xff]
    %v805 = vld [vmem:[#allocation7 + $0x38] sm:$0xff]
    %v806 = vld [vmem:[#allocation7 + $0x40] sm:$0xff]
    %v807 = vld [vmem:[#allocation7 + $0x48] sm:$0xff]
    %v808 = vld [vmem:[#allocation7 + $0x50] sm:$0xff]
    %v809 = vld [vmem:[#allocation7 + $0x58] sm:$0xff]
    %v810 = vld [vmem:[#allocation7 + $0x60] sm:$0xff]
    %v811 = vld [vmem:[#allocation7 + $0x68] sm:$0xff]
    %v812 = vld [vmem:[#allocation7 + $0x70] sm:$0xff]
    %v813 = vld [vmem:[#allocation7 + $0x78] sm:$0xff]
    %v814 = vld [vmem:[#allocation7 + $0x80] sm:$0xff]
    %v815 = vld [vmem:[#allocation7 + $0x88] sm:$0xff]
    %v816 = vld [vmem:[#allocation7 + $0x90] sm:$0xff]
    %v817 = vld [vmem:[#allocation7 + $0x98] sm:$0xff]
    %v818 = vld [vmem:[#allocation7 + $0xa0] sm:$0xff]
    %v819 = vld [vmem:[#allocation7 + $0xa8] sm:$0xff]
    %v820 = vld [vmem:[#allocation7 + $0xb0] sm:$0xff]
    %v821 = vld [vmem:[#allocation7 + $0xb8] sm:$0xff]
    %v822 = vadd.f32 %v798, %v799
    %v823 = vadd.f32 %v822, %v800
    %v824 = vadd.f32 %v823, %v801
    %v825 = vadd.f32 %v824, %v802
    %v826 = vadd.f32 %v825, %v803
    %827 = vadd.xlane.f32.xlu0 %v826
    %v828 = vpop.xlane.xlu0 %827
    %v829 = vadd.f32 %v804, %v805
    %v830 = vadd.f32 %v829, %v806
    %v831 = vadd.f32 %v830, %v807
    %v832 = vadd.f32 %v831, %v808
    %v833 = vadd.f32 %v832, %v809
    %834 = vadd.xlane.f32.xlu0 %v833
    %v835 = vpop.xlane.xlu0 %834
    %v836 = vadd.f32 %v810, %v811
    %v837 = vadd.f32 %v836, %v812
    %v838 = vadd.f32 %v837, %v813
    %v839 = vadd.f32 %v838, %v814
    %v840 = vadd.f32 %v839, %v815
    %841 = vadd.xlane.f32.xlu0 %v840
    %v842 = vpop.xlane.xlu0 %841
    %v843 = vadd.f32 %v816, %v817
    %v844 = vadd.f32 %v843, %v818
    %v845 = vadd.f32 %v844, %v819
    %v846 = vadd.f32 %v845, %v820
    %v847 = vadd.f32 %v846, %v821
    %848 = vadd.xlane.f32.xlu0 %v847
    %v849 = vpop.xlane.xlu0 %848
    %v850 = vmul.f32 %v828, %v263
    %v851 = vmul.f32 %v835, %v263
    %v852 = vmul.f32 %v842, %v263
    %v853 = vmul.f32 %v849, %v263
    %v854 = vsub.f32 %v798, %v850
    %v855 = vsub.f32 %v799, %v850
    %v856 = vsub.f32 %v800, %v850
    %v857 = vsub.f32 %v801, %v850
    %v858 = vsub.f32 %v802, %v850
    %v859 = vsub.f32 %v803, %v850
    %v860 = vsub.f32 %v804, %v851
    %v861 = vsub.f32 %v805, %v851
    %v862 = vsub.f32 %v806, %v851
    %v863 = vsub.f32 %v807, %v851
    %v864 = vsub.f32 %v808, %v851
    %v865 = vsub.f32 %v809, %v851
    %v866 = vsub.f32 %v810, %v852
    %v867 = vsub.f32 %v811, %v852
    %v868 = vsub.f32 %v812, %v852
    %v869 = vsub.f32 %v813, %v852
    %v870 = vsub.f32 %v814, %v852
    %v871 = vsub.f32 %v815, %v852
    %v872 = vsub.f32 %v816, %v853
    %v873 = vsub.f32 %v817, %v853
    %v874 = vsub.f32 %v818, %v853
    %v875 = vsub.f32 %v819, %v853
    %v876 = vsub.f32 %v820, %v853
    %v877 = vsub.f32 %v821, %v853
    %v878 = vmul.f32 %v854, %v854
    %v879 = vmul.f32 %v855, %v855
    %v880 = vmul.f32 %v856, %v856
    %v881 = vmul.f32 %v857, %v857
    %v882 = vmul.f32 %v858, %v858
    %v883 = vmul.f32 %v859, %v859
    %v884 = vmul.f32 %v860, %v860
    %v885 = vmul.f32 %v861, %v861
    %v886 = vmul.f32 %v862, %v862
    %v887 = vmul.f32 %v863, %v863
    %v888 = vmul.f32 %v864, %v864
    %v889 = vmul.f32 %v865, %v865
    %v890 = vmul.f32 %v866, %v866
    %v891 = vmul.f32 %v867, %v867
    %v892 = vmul.f32 %v868, %v868
    %v893 = vmul.f32 %v869, %v869
    %v894 = vmul.f32 %v870, %v870
    %v895 = vmul.f32 %v871, %v871
    %v896 = vmul.f32 %v872, %v872
    %v897 = vmul.f32 %v873, %v873
    %v898 = vmul.f32 %v874, %v874
    %v899 = vmul.f32 %v875, %v875
    %v900 = vmul.f32 %v876, %v876
    %v901 = vmul.f32 %v877, %v877
    %v902 = vadd.f32 %v878, %v879
    %v903 = vadd.f32 %v902, %v880
    %v904 = vadd.f32 %v903, %v881
    %v905 = vadd.f32 %v904, %v882
    %v906 = vadd.f32 %v905, %v883
    %907 = vadd.xlane.f32.xlu0 %v906
    %v908 = vpop.xlane.xlu0 %907
    %v909 = vadd.f32 %v884, %v885
    %v910 = vadd.f32 %v909, %v886
    %v911 = vadd.f32 %v910, %v887
    %v912 = vadd.f32 %v911, %v888
    %v913 = vadd.f32 %v912, %v889
    %914 = vadd.xlane.f32.xlu0 %v913
    %v915 = vpop.xlane.xlu0 %914
    %v916 = vadd.f32 %v890, %v891
    %v917 = vadd.f32 %v916, %v892
    %v918 = vadd.f32 %v917, %v893
    %v919 = vadd.f32 %v918, %v894
    %v920 = vadd.f32 %v919, %v895
    %921 = vadd.xlane.f32.xlu0 %v920
    %v922 = vpop.xlane.xlu0 %921
    %v923 = vadd.f32 %v896, %v897
    %v924 = vadd.f32 %v923, %v898
    %v925 = vadd.f32 %v924, %v899
    %v926 = vadd.f32 %v925, %v900
    %v927 = vadd.f32 %v926, %v901
    %928 = vadd.xlane.f32.xlu0 %v927
    %v929 = vpop.xlane.xlu0 %928
    %v930 = vmul.f32 %v908, %v263
    %v931 = vmul.f32 %v915, %v263
    %v932 = vmul.f32 %v922, %v263
    %v933 = vmul.f32 %v929, %v263
    %v934 = vadd.f32 %v930, 1e-05
    %v935 = vadd.f32 %v931, 1e-05
    %v936 = vadd.f32 %v932, 1e-05
    %v937 = vadd.f32 %v933, 1e-05
    %v938 = vrsqrt.pop %v934
    %v939 = vrsqrt.pop %v935
    %v940 = vrsqrt.pop %v936
    %v941 = vrsqrt.pop %v937
    %v942 = vmul.f32 %v854, %v938
    %v943 = vmul.f32 %v855, %v938
    %v944 = vmul.f32 %v856, %v938
    %v945 = vmul.f32 %v857, %v938
    %v946 = vmul.f32 %v858, %v938
    %v947 = vmul.f32 %v859, %v938
    %v948 = vmul.f32 %v860, %v939
    %v949 = vmul.f32 %v861, %v939
    %v950 = vmul.f32 %v862, %v939
    %v951 = vmul.f32 %v863, %v939
    %v952 = vmul.f32 %v864, %v939
    %v953 = vmul.f32 %v865, %v939
    %v954 = vmul.f32 %v866, %v940
    %v955 = vmul.f32 %v867, %v940
    %v956 = vmul.f32 %v868, %v940
    %v957 = vmul.f32 %v869, %v940
    %v958 = vmul.f32 %v870, %v940
    %v959 = vmul.f32 %v871, %v940
    %v960 = vmul.f32 %v872, %v941
    %v961 = vmul.f32 %v873, %v941
    %v962 = vmul.f32 %v874, %v941
    %v963 = vmul.f32 %v875, %v941
    %v964 = vmul.f32 %v876, %v941
    %v965 = vmul.f32 %v877, %v941
    %v967 = vlaneseq
    %v968 = vshrl.u32 %v967, 7
    %v969 = vsub.s32 0, %v968
    %v970 = vrot.slane %v123, %v969
    %v971 = vlaneseq
    %v972 = vshrl.u32 %v971, 7
    %v973 = vsub.s32 1, %v972
    %v974 = vrot.slane %v123, %v973
    %v975 = vlaneseq
    %v976 = vshrl.u32 %v975, 7
    %v977 = vsub.s32 2, %v976
    %v978 = vrot.slane %v123, %v977
    %v979 = vlaneseq
    %v980 = vshrl.u32 %v979, 7
    %v981 = vsub.s32 3, %v980
    %v982 = vrot.slane %v123, %v981
    %v983 = vlaneseq
    %v984 = vshrl.u32 %v983, 7
    %v985 = vsub.s32 4, %v984
    %v986 = vrot.slane %v123, %v985
    %v987 = vlaneseq
    %v988 = vshrl.u32 %v987, 7
    %v989 = vsub.s32 5, %v988
    %v990 = vrot.slane %v123, %v989
    %v997 = vmul.f32 %v942, %v970
    %v998 = vmul.f32 %v943, %v974
    %v999 = vmul.f32 %v944, %v978
    %v1000 = vmul.f32 %v945, %v982
    %v1001 = vmul.f32 %v946, %v986
    %v1002 = vmul.f32 %v947, %v990
    %v1003 = vmul.f32 %v948, %v970
    %v1004 = vmul.f32 %v949, %v974
    %v1005 = vmul.f32 %v950, %v978
    %v1006 = vmul.f32 %v951, %v982
    %v1007 = vmul.f32 %v952, %v986
    %v1008 = vmul.f32 %v953, %v990
    %v1009 = vmul.f32 %v954, %v970
    %v1010 = vmul.f32 %v955, %v974
    %v1011 = vmul.f32 %v956, %v978
    %v1012 = vmul.f32 %v957, %v982
    %v1013 = vmul.f32 %v958, %v986
    %v1014 = vmul.f32 %v959, %v990
    %v1015 = vmul.f32 %v960, %v970
    %v1016 = vmul.f32 %v961, %v974
    %v1017 = vmul.f32 %v962, %v978
    %v1018 = vmul.f32 %v963, %v982
    %v1019 = vmul.f32 %v964, %v986
    %v1020 = vmul.f32 %v965, %v990
    %v1022 = vlaneseq
    %v1023 = vshrl.u32 %v1022, 7
    %v1024 = vsub.s32 0, %v1023
    %v1025 = vrot.slane %v124, %v1024
    %v1026 = vlaneseq
    %v1027 = vshrl.u32 %v1026, 7
    %v1028 = vsub.s32 1, %v1027
    %v1029 = vrot.slane %v124, %v1028
    %v1030 = vlaneseq
    %v1031 = vshrl.u32 %v1030, 7
    %v1032 = vsub.s32 2, %v1031
    %v1033 = vrot.slane %v124, %v1032
    %v1034 = vlaneseq
    %v1035 = vshrl.u32 %v1034, 7
    %v1036 = vsub.s32 3, %v1035
    %v1037 = vrot.slane %v124, %v1036
    %v1038 = vlaneseq
    %v1039 = vshrl.u32 %v1038, 7
    %v1040 = vsub.s32 4, %v1039
    %v1041 = vrot.slane %v124, %v1040
    %v1042 = vlaneseq
    %v1043 = vshrl.u32 %v1042, 7
    %v1044 = vsub.s32 5, %v1043
    %v1045 = vrot.slane %v124, %v1044
    %v1052 = vadd.f32 %v997, %v1025
    %v1053 = vadd.f32 %v998, %v1029
    %v1054 = vadd.f32 %v999, %v1033
    %v1055 = vadd.f32 %v1000, %v1037
    %v1056 = vadd.f32 %v1001, %v1041
    %v1057 = vadd.f32 %v1002, %v1045
    %v1058 = vadd.f32 %v1003, %v1025
    %v1059 = vadd.f32 %v1004, %v1029
    %v1060 = vadd.f32 %v1005, %v1033
    %v1061 = vadd.f32 %v1006, %v1037
    %v1062 = vadd.f32 %v1007, %v1041
    %v1063 = vadd.f32 %v1008, %v1045
    %v1064 = vadd.f32 %v1009, %v1025
    %v1065 = vadd.f32 %v1010, %v1029
    %v1066 = vadd.f32 %v1011, %v1033
    %v1067 = vadd.f32 %v1012, %v1037
    %v1068 = vadd.f32 %v1013, %v1041
    %v1069 = vadd.f32 %v1014, %v1045
    %v1070 = vadd.f32 %v1015, %v1025
    %v1071 = vadd.f32 %v1016, %v1029
    %v1072 = vadd.f32 %v1017, %v1033
    %v1073 = vadd.f32 %v1018, %v1037
    %v1074 = vadd.f32 %v1019, %v1041
    %v1075 = vadd.f32 %v1020, %v1045
    %1077 = vset.pattern.permute.xlu0 0
    %1078 = vperm.xlu0 %1077, %v794
    %v1079 = vpop.permute.xlu0 %1078
    %1082 = vset.pattern.permute.xlu0 0
    %1083 = vperm.xlu0 %1082, %v795
    %v1084 = vpop.permute.xlu0 %1083
    %1087 = vset.pattern.permute.xlu0 0
    %1088 = vperm.xlu0 %1087, %v796
    %v1089 = vpop.permute.xlu0 %1088
    %1092 = vset.pattern.permute.xlu0 0
    %1093 = vperm.xlu0 %1092, %v797
    %v1094 = vpop.permute.xlu0 %1093
    %v1096 = vmul.f32 %v1052, %v1079
    %v1097 = vmul.f32 %v1053, %v1079
    %v1098 = vmul.f32 %v1054, %v1079
    %v1099 = vmul.f32 %v1055, %v1079
    %v1100 = vmul.f32 %v1056, %v1079
    %v1101 = vmul.f32 %v1057, %v1079
    %v1102 = vmul.f32 %v1058, %v1084
    %v1103 = vmul.f32 %v1059, %v1084
    %v1104 = vmul.f32 %v1060, %v1084
    %v1105 = vmul.f32 %v1061, %v1084
    %v1106 = vmul.f32 %v1062, %v1084
    %v1107 = vmul.f32 %v1063, %v1084
    %v1108 = vmul.f32 %v1064, %v1089
    %v1109 = vmul.f32 %v1065, %v1089
    %v1110 = vmul.f32 %v1066, %v1089
    %v1111 = vmul.f32 %v1067, %v1089
    %v1112 = vmul.f32 %v1068, %v1089
    %v1113 = vmul.f32 %v1069, %v1089
    %v1114 = vmul.f32 %v1070, %v1094
    %v1115 = vmul.f32 %v1071, %v1094
    %v1116 = vmul.f32 %v1072, %v1094
    %v1117 = vmul.f32 %v1073, %v1094
    %v1118 = vmul.f32 %v1074, %v1094
    %v1119 = vmul.f32 %v1075, %v1094
    %v1120 = vrot.slane %v1096, 4
    %v1121 = vadd.f32 %v1096, %v1120
    %v1122 = vrot.slane %v1121, 2
    %v1123 = vadd.f32 %v1121, %v1122
    %v1124 = vrot.slane %v1123, 1
    %v1125 = vadd.f32 %v1123, %v1124
    %v1126 = vrot.slane %v1097, 4
    %v1127 = vadd.f32 %v1097, %v1126
    %v1128 = vrot.slane %v1127, 2
    %v1129 = vadd.f32 %v1127, %v1128
    %v1130 = vrot.slane %v1129, 1
    %v1131 = vadd.f32 %v1129, %v1130
    %v1132 = vrot.slane %v1098, 4
    %v1133 = vadd.f32 %v1098, %v1132
    %v1134 = vrot.slane %v1133, 2
    %v1135 = vadd.f32 %v1133, %v1134
    %v1136 = vrot.slane %v1135, 1
    %v1137 = vadd.f32 %v1135, %v1136
    %v1138 = vrot.slane %v1099, 4
    %v1139 = vadd.f32 %v1099, %v1138
    %v1140 = vrot.slane %v1139, 2
    %v1141 = vadd.f32 %v1139, %v1140
    %v1142 = vrot.slane %v1141, 1
    %v1143 = vadd.f32 %v1141, %v1142
    %v1144 = vrot.slane %v1100, 4
    %v1145 = vadd.f32 %v1100, %v1144
    %v1146 = vrot.slane %v1145, 2
    %v1147 = vadd.f32 %v1145, %v1146
    %v1148 = vrot.slane %v1147, 1
    %v1149 = vadd.f32 %v1147, %v1148
    %v1150 = vrot.slane %v1101, 4
    %v1151 = vadd.f32 %v1101, %v1150
    %v1152 = vrot.slane %v1151, 2
    %v1153 = vadd.f32 %v1151, %v1152
    %v1154 = vrot.slane %v1153, 1
    %v1155 = vadd.f32 %v1153, %v1154
    %v1156 = vrot.slane %v1102, 4
    %v1157 = vadd.f32 %v1102, %v1156
    %v1158 = vrot.slane %v1157, 2
    %v1159 = vadd.f32 %v1157, %v1158
    %v1160 = vrot.slane %v1159, 1
    %v1161 = vadd.f32 %v1159, %v1160
    %v1162 = vrot.slane %v1103, 4
    %v1163 = vadd.f32 %v1103, %v1162
    %v1164 = vrot.slane %v1163, 2
    %v1165 = vadd.f32 %v1163, %v1164
    %v1166 = vrot.slane %v1165, 1
    %v1167 = vadd.f32 %v1165, %v1166
    %v1168 = vrot.slane %v1104, 4
    %v1169 = vadd.f32 %v1104, %v1168
    %v1170 = vrot.slane %v1169, 2
    %v1171 = vadd.f32 %v1169, %v1170
    %v1172 = vrot.slane %v1171, 1
    %v1173 = vadd.f32 %v1171, %v1172
    %v1174 = vrot.slane %v1105, 4
    %v1175 = vadd.f32 %v1105, %v1174
    %v1176 = vrot.slane %v1175, 2
    %v1177 = vadd.f32 %v1175, %v1176
    %v1178 = vrot.slane %v1177, 1
    %v1179 = vadd.f32 %v1177, %v1178
    %v1180 = vrot.slane %v1106, 4
    %v1181 = vadd.f32 %v1106, %v1180
    %v1182 = vrot.slane %v1181, 2
    %v1183 = vadd.f32 %v1181, %v1182
    %v1184 = vrot.slane %v1183, 1
    %v1185 = vadd.f32 %v1183, %v1184
    %v1186 = vrot.slane %v1107, 4
    %v1187 = vadd.f32 %v1107, %v1186
    %v1188 = vrot.slane %v1187, 2
    %v1189 = vadd.f32 %v1187, %v1188
    %v1190 = vrot.slane %v1189, 1
    %v1191 = vadd.f32 %v1189, %v1190
    %v1192 = vrot.slane %v1108, 4
    %v1193 = vadd.f32 %v1108, %v1192
    %v1194 = vrot.slane %v1193, 2
    %v1195 = vadd.f32 %v1193, %v1194
    %v1196 = vrot.slane %v1195, 1
    %v1197 = vadd.f32 %v1195, %v1196
    %v1198 = vrot.slane %v1109, 4
    %v1199 = vadd.f32 %v1109, %v1198
    %v1200 = vrot.slane %v1199, 2
    %v1201 = vadd.f32 %v1199, %v1200
    %v1202 = vrot.slane %v1201, 1
    %v1203 = vadd.f32 %v1201, %v1202
    %v1204 = vrot.slane %v1110, 4
    %v1205 = vadd.f32 %v1110, %v1204
    %v1206 = vrot.slane %v1205, 2
    %v1207 = vadd.f32 %v1205, %v1206
    %v1208 = vrot.slane %v1207, 1
    %v1209 = vadd.f32 %v1207, %v1208
    %v1210 = vrot.slane %v1111, 4
    %v1211 = vadd.f32 %v1111, %v1210
    %v1212 = vrot.slane %v1211, 2
    %v1213 = vadd.f32 %v1211, %v1212
    %v1214 = vrot.slane %v1213, 1
    %v1215 = vadd.f32 %v1213, %v1214
    %v1216 = vrot.slane %v1112, 4
    %v1217 = vadd.f32 %v1112, %v1216
    %v1218 = vrot.slane %v1217, 2
    %v1219 = vadd.f32 %v1217, %v1218
    %v1220 = vrot.slane %v1219, 1
    %v1221 = vadd.f32 %v1219, %v1220
    %v1222 = vrot.slane %v1113, 4
    %v1223 = vadd.f32 %v1113, %v1222
    %v1224 = vrot.slane %v1223, 2
    %v1225 = vadd.f32 %v1223, %v1224
    %v1226 = vrot.slane %v1225, 1
    %v1227 = vadd.f32 %v1225, %v1226
    %v1228 = vrot.slane %v1114, 4
    %v1229 = vadd.f32 %v1114, %v1228
    %v1230 = vrot.slane %v1229, 2
    %v1231 = vadd.f32 %v1229, %v1230
    %v1232 = vrot.slane %v1231, 1
    %v1233 = vadd.f32 %v1231, %v1232
    %v1234 = vrot.slane %v1115, 4
    %v1235 = vadd.f32 %v1115, %v1234
    %v1236 = vrot.slane %v1235, 2
    %v1237 = vadd.f32 %v1235, %v1236
    %v1238 = vrot.slane %v1237, 1
    %v1239 = vadd.f32 %v1237, %v1238
    %v1240 = vrot.slane %v1116, 4
    %v1241 = vadd.f32 %v1116, %v1240
    %v1242 = vrot.slane %v1241, 2
    %v1243 = vadd.f32 %v1241, %v1242
    %v1244 = vrot.slane %v1243, 1
    %v1245 = vadd.f32 %v1243, %v1244
    %v1246 = vrot.slane %v1117, 4
    %v1247 = vadd.f32 %v1117, %v1246
    %v1248 = vrot.slane %v1247, 2
    %v1249 = vadd.f32 %v1247, %v1248
    %v1250 = vrot.slane %v1249, 1
    %v1251 = vadd.f32 %v1249, %v1250
    %v1252 = vrot.slane %v1118, 4
    %v1253 = vadd.f32 %v1118, %v1252
    %v1254 = vrot.slane %v1253, 2
    %v1255 = vadd.f32 %v1253, %v1254
    %v1256 = vrot.slane %v1255, 1
    %v1257 = vadd.f32 %v1255, %v1256
    %v1258 = vrot.slane %v1119, 4
    %v1259 = vadd.f32 %v1119, %v1258
    %v1260 = vrot.slane %v1259, 2
    %v1261 = vadd.f32 %v1259, %v1260
    %v1262 = vrot.slane %v1261, 1
    %v1263 = vadd.f32 %v1261, %v1262
    %v1264 = vld [vmem:[#allocation8] sm:$0xff]
    %v1265 = vld [vmem:[#allocation8 + $0x8] sm:$0xff]
    %v1266 = vld [vmem:[#allocation8 + $0x10] sm:$0xff]
    %v1267 = vld [vmem:[#allocation8 + $0x18] sm:$0xff]
    %v1268 = vld [vmem:[#allocation8 + $0x20] sm:$0xff]
    %v1269 = vld [vmem:[#allocation8 + $0x28] sm:$0xff]
    %v1270 = vld [vmem:[#allocation8 + $0x30] sm:$0xff]
    %v1271 = vld [vmem:[#allocation8 + $0x38] sm:$0xff]
    %v1272 = vld [vmem:[#allocation8 + $0x40] sm:$0xff]
    %v1273 = vld [vmem:[#allocation8 + $0x48] sm:$0xff]
    %v1274 = vld [vmem:[#allocation8 + $0x50] sm:$0xff]
    %v1275 = vld [vmem:[#allocation8 + $0x58] sm:$0xff]
    %v1276 = vld [vmem:[#allocation8 + $0x60] sm:$0xff]
    %v1277 = vld [vmem:[#allocation8 + $0x68] sm:$0xff]
    %v1278 = vld [vmem:[#allocation8 + $0x70] sm:$0xff]
    %v1279 = vld [vmem:[#allocation8 + $0x78] sm:$0xff]
    %v1280 = vld [vmem:[#allocation8 + $0x80] sm:$0xff]
    %v1281 = vld [vmem:[#allocation8 + $0x88] sm:$0xff]
    %v1282 = vld [vmem:[#allocation8 + $0x90] sm:$0xff]
    %v1283 = vld [vmem:[#allocation8 + $0x98] sm:$0xff]
    %v1284 = vld [vmem:[#allocation8 + $0xa0] sm:$0xff]
    %v1285 = vld [vmem:[#allocation8 + $0xa8] sm:$0xff]
    %v1286 = vld [vmem:[#allocation8 + $0xb0] sm:$0xff]
    %v1287 = vld [vmem:[#allocation8 + $0xb8] sm:$0xff]
    %v1288 = vadd.f32 %v1264, %v1265
    %v1289 = vadd.f32 %v1288, %v1266
    %v1290 = vadd.f32 %v1289, %v1267
    %v1291 = vadd.f32 %v1290, %v1268
    %v1292 = vadd.f32 %v1291, %v1269
    %1293 = vadd.xlane.f32.xlu0 %v1292
    %v1294 = vpop.xlane.xlu0 %1293
    %v1295 = vadd.f32 %v1270, %v1271
    %v1296 = vadd.f32 %v1295, %v1272
    %v1297 = vadd.f32 %v1296, %v1273
    %v1298 = vadd.f32 %v1297, %v1274
    %v1299 = vadd.f32 %v1298, %v1275
    %1300 = vadd.xlane.f32.xlu0 %v1299
    %v1301 = vpop.xlane.xlu0 %1300
    %v1302 = vadd.f32 %v1276, %v1277
    %v1303 = vadd.f32 %v1302, %v1278
    %v1304 = vadd.f32 %v1303, %v1279
    %v1305 = vadd.f32 %v1304, %v1280
    %v1306 = vadd.f32 %v1305, %v1281
    %1307 = vadd.xlane.f32.xlu0 %v1306
    %v1308 = vpop.xlane.xlu0 %1307
    %v1309 = vadd.f32 %v1282, %v1283
    %v1310 = vadd.f32 %v1309, %v1284
    %v1311 = vadd.f32 %v1310, %v1285
    %v1312 = vadd.f32 %v1311, %v1286
    %v1313 = vadd.f32 %v1312, %v1287
    %1314 = vadd.xlane.f32.xlu0 %v1313
    %v1315 = vpop.xlane.xlu0 %1314
    %v1316 = vmul.f32 %v1294, %v263
    %v1317 = vmul.f32 %v1301, %v263
    %v1318 = vmul.f32 %v1308, %v263
    %v1319 = vmul.f32 %v1315, %v263
    %v1320 = vsub.f32 %v1264, %v1316
    %v1321 = vsub.f32 %v1265, %v1316
    %v1322 = vsub.f32 %v1266, %v1316
    %v1323 = vsub.f32 %v1267, %v1316
    %v1324 = vsub.f32 %v1268, %v1316
    %v1325 = vsub.f32 %v1269, %v1316
    %v1326 = vsub.f32 %v1270, %v1317
    %v1327 = vsub.f32 %v1271, %v1317
    %v1328 = vsub.f32 %v1272, %v1317
    %v1329 = vsub.f32 %v1273, %v1317
    %v1330 = vsub.f32 %v1274, %v1317
    %v1331 = vsub.f32 %v1275, %v1317
    %v1332 = vsub.f32 %v1276, %v1318
    %v1333 = vsub.f32 %v1277, %v1318
    %v1334 = vsub.f32 %v1278, %v1318
    %v1335 = vsub.f32 %v1279, %v1318
    %v1336 = vsub.f32 %v1280, %v1318
    %v1337 = vsub.f32 %v1281, %v1318
    %v1338 = vsub.f32 %v1282, %v1319
    %v1339 = vsub.f32 %v1283, %v1319
    %v1340 = vsub.f32 %v1284, %v1319
    %v1341 = vsub.f32 %v1285, %v1319
    %v1342 = vsub.f32 %v1286, %v1319
    %v1343 = vsub.f32 %v1287, %v1319
    %v1344 = vmul.f32 %v1320, %v1320
    %v1345 = vmul.f32 %v1321, %v1321
    %v1346 = vmul.f32 %v1322, %v1322
    %v1347 = vmul.f32 %v1323, %v1323
    %v1348 = vmul.f32 %v1324, %v1324
    %v1349 = vmul.f32 %v1325, %v1325
    %v1350 = vmul.f32 %v1326, %v1326
    %v1351 = vmul.f32 %v1327, %v1327
    %v1352 = vmul.f32 %v1328, %v1328
    %v1353 = vmul.f32 %v1329, %v1329
    %v1354 = vmul.f32 %v1330, %v1330
    %v1355 = vmul.f32 %v1331, %v1331
    %v1356 = vmul.f32 %v1332, %v1332
    %v1357 = vmul.f32 %v1333, %v1333
    %v1358 = vmul.f32 %v1334, %v1334
    %v1359 = vmul.f32 %v1335, %v1335
    %v1360 = vmul.f32 %v1336, %v1336
    %v1361 = vmul.f32 %v1337, %v1337
    %v1362 = vmul.f32 %v1338, %v1338
    %v1363 = vmul.f32 %v1339, %v1339
    %v1364 = vmul.f32 %v1340, %v1340
    %v1365 = vmul.f32 %v1341, %v1341
    %v1366 = vmul.f32 %v1342, %v1342
    %v1367 = vmul.f32 %v1343, %v1343
    %v1368 = vadd.f32 %v1344, %v1345
    %v1369 = vadd.f32 %v1368, %v1346
    %v1370 = vadd.f32 %v1369, %v1347
    %v1371 = vadd.f32 %v1370, %v1348
    %v1372 = vadd.f32 %v1371, %v1349
    %1373 = vadd.xlane.f32.xlu0 %v1372
    %v1374 = vpop.xlane.xlu0 %1373
    %v1375 = vadd.f32 %v1350, %v1351
    %v1376 = vadd.f32 %v1375, %v1352
    %v1377 = vadd.f32 %v1376, %v1353
    %v1378 = vadd.f32 %v1377, %v1354
    %v1379 = vadd.f32 %v1378, %v1355
    %1380 = vadd.xlane.f32.xlu0 %v1379
    %v1381 = vpop.xlane.xlu0 %1380
    %v1382 = vadd.f32 %v1356, %v1357
    %v1383 = vadd.f32 %v1382, %v1358
    %v1384 = vadd.f32 %v1383, %v1359
    %v1385 = vadd.f32 %v1384, %v1360
    %v1386 = vadd.f32 %v1385, %v1361
    %1387 = vadd.xlane.f32.xlu0 %v1386
    %v1388 = vpop.xlane.xlu0 %1387
    %v1389 = vadd.f32 %v1362, %v1363
    %v1390 = vadd.f32 %v1389, %v1364
    %v1391 = vadd.f32 %v1390, %v1365
    %v1392 = vadd.f32 %v1391, %v1366
    %v1393 = vadd.f32 %v1392, %v1367
    %1394 = vadd.xlane.f32.xlu0 %v1393
    %v1395 = vpop.xlane.xlu0 %1394
    %v1396 = vmul.f32 %v1374, %v263
    %v1397 = vmul.f32 %v1381, %v263
    %v1398 = vmul.f32 %v1388, %v263
    %v1399 = vmul.f32 %v1395, %v263
    %v1400 = vadd.f32 %v1396, 1e-05
    %v1401 = vadd.f32 %v1397, 1e-05
    %v1402 = vadd.f32 %v1398, 1e-05
    %v1403 = vadd.f32 %v1399, 1e-05
    %v1404 = vrsqrt.pop %v1400
    %v1405 = vrsqrt.pop %v1401
    %v1406 = vrsqrt.pop %v1402
    %v1407 = vrsqrt.pop %v1403
    %v1408 = vmul.f32 %v1320, %v1404
    %v1409 = vmul.f32 %v1321, %v1404
    %v1410 = vmul.f32 %v1322, %v1404
    %v1411 = vmul.f32 %v1323, %v1404
    %v1412 = vmul.f32 %v1324, %v1404
    %v1413 = vmul.f32 %v1325, %v1404
    %v1414 = vmul.f32 %v1326, %v1405
    %v1415 = vmul.f32 %v1327, %v1405
    %v1416 = vmul.f32 %v1328, %v1405
    %v1417 = vmul.f32 %v1329, %v1405
    %v1418 = vmul.f32 %v1330, %v1405
    %v1419 = vmul.f32 %v1331, %v1405
    %v1420 = vmul.f32 %v1332, %v1406
    %v1421 = vmul.f32 %v1333, %v1406
    %v1422 = vmul.f32 %v1334, %v1406
    %v1423 = vmul.f32 %v1335, %v1406
    %v1424 = vmul.f32 %v1336, %v1406
    %v1425 = vmul.f32 %v1337, %v1406
    %v1426 = vmul.f32 %v1338, %v1407
    %v1427 = vmul.f32 %v1339, %v1407
    %v1428 = vmul.f32 %v1340, %v1407
    %v1429 = vmul.f32 %v1341, %v1407
    %v1430 = vmul.f32 %v1342, %v1407
    %v1431 = vmul.f32 %v1343, %v1407
    %v1432 = vmul.f32 %v1408, %v355
    %v1433 = vmul.f32 %v1409, %v359
    %v1434 = vmul.f32 %v1410, %v363
    %v1435 = vmul.f32 %v1411, %v367
    %v1436 = vmul.f32 %v1412, %v371
    %v1437 = vmul.f32 %v1413, %v375
    %v1438 = vmul.f32 %v1414, %v355
    %v1439 = vmul.f32 %v1415, %v359
    %v1440 = vmul.f32 %v1416, %v363
    %v1441 = vmul.f32 %v1417, %v367
    %v1442 = vmul.f32 %v1418, %v371
    %v1443 = vmul.f32 %v1419, %v375
    %v1444 = vmul.f32 %v1420, %v355
    %v1445 = vmul.f32 %v1421, %v359
    %v1446 = vmul.f32 %v1422, %v363
    %v1447 = vmul.f32 %v1423, %v367
    %v1448 = vmul.f32 %v1424, %v371
    %v1449 = vmul.f32 %v1425, %v375
    %v1450 = vmul.f32 %v1426, %v355
    %v1451 = vmul.f32 %v1427, %v359
    %v1452 = vmul.f32 %v1428, %v363
    %v1453 = vmul.f32 %v1429, %v367
    %v1454 = vmul.f32 %v1430, %v371
    %v1455 = vmul.f32 %v1431, %v375
    %v1456 = vadd.f32 %v1432, %v404
    %v1457 = vadd.f32 %v1433, %v408
    %v1458 = vadd.f32 %v1434, %v412
    %v1459 = vadd.f32 %v1435, %v416
    %v1460 = vadd.f32 %v1436, %v420
    %v1461 = vadd.f32 %v1437, %v424
    %v1462 = vadd.f32 %v1438, %v404
    %v1463 = vadd.f32 %v1439, %v408
    %v1464 = vadd.f32 %v1440, %v412
    %v1465 = vadd.f32 %v1441, %v416
    %v1466 = vadd.f32 %v1442, %v420
    %v1467 = vadd.f32 %v1443, %v424
    %v1468 = vadd.f32 %v1444, %v404
    %v1469 = vadd.f32 %v1445, %v408
    %v1470 = vadd.f32 %v1446, %v412
    %v1471 = vadd.f32 %v1447, %v416
    %v1472 = vadd.f32 %v1448, %v420
    %v1473 = vadd.f32 %v1449, %v424
    %v1474 = vadd.f32 %v1450, %v404
    %v1475 = vadd.f32 %v1451, %v408
    %v1476 = vadd.f32 %v1452, %v412
    %v1477 = vadd.f32 %v1453, %v416
    %v1478 = vadd.f32 %v1454, %v420
    %v1479 = vadd.f32 %v1455, %v424
    %v1480 = vmul.f32 %v1456, %v1079
    %v1481 = vmul.f32 %v1457, %v1079
    %v1482 = vmul.f32 %v1458, %v1079
    %v1483 = vmul.f32 %v1459, %v1079
    %v1484 = vmul.f32 %v1460, %v1079
    %v1485 = vmul.f32 %v1461, %v1079
    %v1486 = vmul.f32 %v1462, %v1084
    %v1487 = vmul.f32 %v1463, %v1084
    %v1488 = vmul.f32 %v1464, %v1084
    %v1489 = vmul.f32 %v1465, %v1084
    %v1490 = vmul.f32 %v1466, %v1084
    %v1491 = vmul.f32 %v1467, %v1084
    %v1492 = vmul.f32 %v1468, %v1089
    %v1493 = vmul.f32 %v1469, %v1089
    %v1494 = vmul.f32 %v1470, %v1089
    %v1495 = vmul.f32 %v1471, %v1089
    %v1496 = vmul.f32 %v1472, %v1089
    %v1497 = vmul.f32 %v1473, %v1089
    %v1498 = vmul.f32 %v1474, %v1094
    %v1499 = vmul.f32 %v1475, %v1094
    %v1500 = vmul.f32 %v1476, %v1094
    %v1501 = vmul.f32 %v1477, %v1094
    %v1502 = vmul.f32 %v1478, %v1094
    %v1503 = vmul.f32 %v1479, %v1094
    %v1504 = vrot.slane %v1480, 4
    %v1505 = vadd.f32 %v1480, %v1504
    %v1506 = vrot.slane %v1505, 2
    %v1507 = vadd.f32 %v1505, %v1506
    %v1508 = vrot.slane %v1507, 1
    %v1509 = vadd.f32 %v1507, %v1508
    %v1510 = vrot.slane %v1481, 4
    %v1511 = vadd.f32 %v1481, %v1510
    %v1512 = vrot.slane %v1511, 2
    %v1513 = vadd.f32 %v1511, %v1512
    %v1514 = vrot.slane %v1513, 1
    %v1515 = vadd.f32 %v1513, %v1514
    %v1516 = vrot.slane %v1482, 4
    %v1517 = vadd.f32 %v1482, %v1516
    %v1518 = vrot.slane %v1517, 2
    %v1519 = vadd.f32 %v1517, %v1518
    %v1520 = vrot.slane %v1519, 1
    %v1521 = vadd.f32 %v1519, %v1520
    %v1522 = vrot.slane %v1483, 4
    %v1523 = vadd.f32 %v1483, %v1522
    %v1524 = vrot.slane %v1523, 2
    %v1525 = vadd.f32 %v1523, %v1524
    %v1526 = vrot.slane %v1525, 1
    %v1527 = vadd.f32 %v1525, %v1526
    %v1528 = vrot.slane %v1484, 4
    %v1529 = vadd.f32 %v1484, %v1528
    %v1530 = vrot.slane %v1529, 2
    %v1531 = vadd.f32 %v1529, %v1530
    %v1532 = vrot.slane %v1531, 1
    %v1533 = vadd.f32 %v1531, %v1532
    %v1534 = vrot.slane %v1485, 4
    %v1535 = vadd.f32 %v1485, %v1534
    %v1536 = vrot.slane %v1535, 2
    %v1537 = vadd.f32 %v1535, %v1536
    %v1538 = vrot.slane %v1537, 1
    %v1539 = vadd.f32 %v1537, %v1538
    %v1540 = vrot.slane %v1486, 4
    %v1541 = vadd.f32 %v1486, %v1540
    %v1542 = vrot.slane %v1541, 2
    %v1543 = vadd.f32 %v1541, %v1542
    %v1544 = vrot.slane %v1543, 1
    %v1545 = vadd.f32 %v1543, %v1544
    %v1546 = vrot.slane %v1487, 4
    %v1547 = vadd.f32 %v1487, %v1546
    %v1548 = vrot.slane %v1547, 2
    %v1549 = vadd.f32 %v1547, %v1548
    %v1550 = vrot.slane %v1549, 1
    %v1551 = vadd.f32 %v1549, %v1550
    %v1552 = vrot.slane %v1488, 4
    %v1553 = vadd.f32 %v1488, %v1552
    %v1554 = vrot.slane %v1553, 2
    %v1555 = vadd.f32 %v1553, %v1554
    %v1556 = vrot.slane %v1555, 1
    %v1557 = vadd.f32 %v1555, %v1556
    %v1558 = vrot.slane %v1489, 4
    %v1559 = vadd.f32 %v1489, %v1558
    %v1560 = vrot.slane %v1559, 2
    %v1561 = vadd.f32 %v1559, %v1560
    %v1562 = vrot.slane %v1561, 1
    %v1563 = vadd.f32 %v1561, %v1562
    %v1564 = vrot.slane %v1490, 4
    %v1565 = vadd.f32 %v1490, %v1564
    %v1566 = vrot.slane %v1565, 2
    %v1567 = vadd.f32 %v1565, %v1566
    %v1568 = vrot.slane %v1567, 1
    %v1569 = vadd.f32 %v1567, %v1568
    %v1570 = vrot.slane %v1491, 4
    %v1571 = vadd.f32 %v1491, %v1570
    %v1572 = vrot.slane %v1571, 2
    %v1573 = vadd.f32 %v1571, %v1572
    %v1574 = vrot.slane %v1573, 1
    %v1575 = vadd.f32 %v1573, %v1574
    %v1576 = vrot.slane %v1492, 4
    %v1577 = vadd.f32 %v1492, %v1576
    %v1578 = vrot.slane %v1577, 2
    %v1579 = vadd.f32 %v1577, %v1578
    %v1580 = vrot.slane %v1579, 1
    %v1581 = vadd.f32 %v1579, %v1580
    %v1582 = vrot.slane %v1493, 4
    %v1583 = vadd.f32 %v1493, %v1582
    %v1584 = vrot.slane %v1583, 2
    %v1585 = vadd.f32 %v1583, %v1584
    %v1586 = vrot.slane %v1585, 1
    %v1587 = vadd.f32 %v1585, %v1586
    %v1588 = vrot.slane %v1494, 4
    %v1589 = vadd.f32 %v1494, %v1588
    %v1590 = vrot.slane %v1589, 2
    %v1591 = vadd.f32 %v1589, %v1590
    %v1592 = vrot.slane %v1591, 1
    %v1593 = vadd.f32 %v1591, %v1592
    %v1594 = vrot.slane %v1495, 4
    %v1595 = vadd.f32 %v1495, %v1594
    %v1596 = vrot.slane %v1595, 2
    %v1597 = vadd.f32 %v1595, %v1596
    %v1598 = vrot.slane %v1597, 1
    %v1599 = vadd.f32 %v1597, %v1598
    %v1600 = vrot.slane %v1496, 4
    %v1601 = vadd.f32 %v1496, %v1600
    %v1602 = vrot.slane %v1601, 2
    %v1603 = vadd.f32 %v1601, %v1602
    %v1604 = vrot.slane %v1603, 1
    %v1605 = vadd.f32 %v1603, %v1604
    %v1606 = vrot.slane %v1497, 4
    %v1607 = vadd.f32 %v1497, %v1606
    %v1608 = vrot.slane %v1607, 2
    %v1609 = vadd.f32 %v1607, %v1608
    %v1610 = vrot.slane %v1609, 1
    %v1611 = vadd.f32 %v1609, %v1610
    %v1612 = vrot.slane %v1498, 4
    %v1613 = vadd.f32 %v1498, %v1612
    %v1614 = vrot.slane %v1613, 2
    %v1615 = vadd.f32 %v1613, %v1614
    %v1616 = vrot.slane %v1615, 1
    %v1617 = vadd.f32 %v1615, %v1616
    %v1618 = vrot.slane %v1499, 4
    %v1619 = vadd.f32 %v1499, %v1618
    %v1620 = vrot.slane %v1619, 2
    %v1621 = vadd.f32 %v1619, %v1620
    %v1622 = vrot.slane %v1621, 1
    %v1623 = vadd.f32 %v1621, %v1622
    %v1624 = vrot.slane %v1500, 4
    %v1625 = vadd.f32 %v1500, %v1624
    %v1626 = vrot.slane %v1625, 2
    %v1627 = vadd.f32 %v1625, %v1626
    %v1628 = vrot.slane %v1627, 1
    %v1629 = vadd.f32 %v1627, %v1628
    %v1630 = vrot.slane %v1501, 4
    %v1631 = vadd.f32 %v1501, %v1630
    %v1632 = vrot.slane %v1631, 2
    %v1633 = vadd.f32 %v1631, %v1632
    %v1634 = vrot.slane %v1633, 1
    %v1635 = vadd.f32 %v1633, %v1634
    %v1636 = vrot.slane %v1502, 4
    %v1637 = vadd.f32 %v1502, %v1636
    %v1638 = vrot.slane %v1637, 2
    %v1639 = vadd.f32 %v1637, %v1638
    %v1640 = vrot.slane %v1639, 1
    %v1641 = vadd.f32 %v1639, %v1640
    %v1642 = vrot.slane %v1503, 4
    %v1643 = vadd.f32 %v1503, %v1642
    %v1644 = vrot.slane %v1643, 2
    %v1645 = vadd.f32 %v1643, %v1644
    %v1646 = vrot.slane %v1645, 1
    %v1647 = vadd.f32 %v1645, %v1646
    %v1648 = vpack.c.bf16 %v487, %v487
    %v1649 = vpack.c.bf16 %v493, %v493
    %v1650 = vpack.c.bf16 %v499, %v499
    %v1651 = vpack.c.bf16 %v505, %v505
    %v1652 = vpack.c.bf16 %v511, %v511
    %v1653 = vpack.c.bf16 %v517, %v517
    %v1654 = vpack.c.bf16 %v523, %v523
    %v1655 = vpack.c.bf16 %v529, %v529
    %v1656 = vpack.c.bf16 %v535, %v535
    %v1657 = vpack.c.bf16 %v541, %v541
    %v1658 = vpack.c.bf16 %v547, %v547
    %v1659 = vpack.c.bf16 %v553, %v553
    %v1660 = vpack.c.bf16 %v559, %v559
    %v1661 = vpack.c.bf16 %v565, %v565
    %v1662 = vpack.c.bf16 %v571, %v571
    %v1663 = vpack.c.bf16 %v577, %v577
    %v1664 = vpack.c.bf16 %v583, %v583
    %v1665 = vpack.c.bf16 %v589, %v589
    %v1684 = vunpack.c.l.b16 %v1648
    %v1685 = vunpack.c.l.b16 %v1649
    %v1686 = vunpack.c.l.b16 %v1650
    %v1687 = vunpack.c.l.b16 %v1651
    %v1688 = vunpack.c.l.b16 %v1652
    %v1689 = vunpack.c.l.b16 %v1653
    %v1690 = vunpack.c.l.b16 %v1654
    %v1691 = vunpack.c.l.b16 %v1655
    %v1692 = vunpack.c.l.b16 %v1656
    %v1693 = vunpack.c.l.b16 %v1657
    %v1694 = vunpack.c.l.b16 %v1658
    %v1695 = vunpack.c.l.b16 %v1659
    %v1696 = vunpack.c.l.b16 %v1660
    %v1697 = vunpack.c.l.b16 %v1661
    %v1698 = vunpack.c.l.b16 %v1662
    %v1699 = vunpack.c.l.b16 %v1663
    %v1700 = vunpack.c.l.b16 %v1664
    %v1701 = vunpack.c.l.b16 %v1665
    %vm1702 = vcmask 1041409
    %v1703 = vsel %vm1702, %v1690, %v1684
    %vm1704 = vcmask 1042434
    %v1705 = vsel %vm1704, %v1696, %v1703
    %v1706 = vsel %vm1702, %v1691, %v1685
    %v1707 = vsel %vm1704, %v1697, %v1706
    %v1708 = vsel %vm1702, %v1692, %v1686
    %v1709 = vsel %vm1704, %v1698, %v1708
    %v1710 = vsel %vm1702, %v1693, %v1687
    %v1711 = vsel %vm1704, %v1699, %v1710
    %v1712 = vsel %vm1702, %v1694, %v1688
    %v1713 = vsel %vm1704, %v1700, %v1712
    %v1714 = vsel %vm1702, %v1695, %v1689
    %v1715 = vsel %vm1704, %v1701, %v1714
    %v1716 = vpack.c.b16 %v1705, %v1705
    %v1717 = vpack.c.b16 %v1707, %v1707
    %v1718 = vpack.c.b16 %v1709, %v1709
    %v1719 = vpack.c.b16 %v1711, %v1711
    %v1720 = vpack.c.b16 %v1713, %v1713
    %v1721 = vpack.c.b16 %v1715, %v1715
    %v1824 = vunpack.c.l.b16 %v125
    %v1825 = vunpack.c.l.b16 %v126
    %v1826 = vunpack.c.l.b16 %v127
    %v1827 = vunpack.c.l.b16 %v128
    %v1828 = vunpack.c.l.b16 %v129
    %v1829 = vunpack.c.l.b16 %v130
    %v1830 = vunpack.c.l.b16 %v131
    %v1831 = vunpack.c.l.b16 %v132
    %v1832 = vunpack.c.l.b16 %v133
    %v1833 = vunpack.c.l.b16 %v134
    %v1834 = vunpack.c.l.b16 %v135
    %v1835 = vunpack.c.l.b16 %v136
    %v1836 = vunpack.c.l.b16 %v137
    %v1837 = vunpack.c.l.b16 %v138
    %v1838 = vunpack.c.l.b16 %v139
    %v1839 = vunpack.c.l.b16 %v140
    %v1840 = vunpack.c.l.b16 %v141
    %v1841 = vunpack.c.l.b16 %v142
    %v1842 = vunpack.c.l.b16 %v143
    %v1843 = vunpack.c.l.b16 %v144
    %v1844 = vunpack.c.l.b16 %v145
    %v1845 = vunpack.c.l.b16 %v146
    %v1846 = vunpack.c.l.b16 %v147
    %v1847 = vunpack.c.l.b16 %v148
    %v1848 = vunpack.c.l.b16 %v149
    %v1849 = vunpack.c.l.b16 %v150
    %v1850 = vunpack.c.l.b16 %v151
    %v1851 = vunpack.c.l.b16 %v152
    %v1852 = vunpack.c.l.b16 %v153
    %v1853 = vunpack.c.l.b16 %v154
    %v1854 = vunpack.c.l.b16 %v155
    %v1855 = vunpack.c.l.b16 %v156
    %v1856 = vunpack.c.l.b16 %v157
    %v1857 = vunpack.c.l.b16 %v158
    %v1858 = vunpack.c.l.b16 %v159
    %v1859 = vunpack.c.l.b16 %v160
    %v1860 = vunpack.c.l.b16 %v161
    %v1861 = vunpack.c.l.b16 %v162
    %v1862 = vunpack.c.l.b16 %v163
    %v1863 = vunpack.c.l.b16 %v164
    %v1864 = vunpack.c.l.b16 %v165
    %v1865 = vunpack.c.l.b16 %v166
    %v1866 = vunpack.c.l.b16 %v167
    %v1867 = vunpack.c.l.b16 %v168
    %v1868 = vunpack.c.l.b16 %v169
    %v1869 = vunpack.c.l.b16 %v170
    %v1870 = vunpack.c.l.b16 %v171
    %v1871 = vunpack.c.l.b16 %v172
    %v1872 = vunpack.c.l.b16 %v173
    %v1873 = vunpack.c.l.b16 %v174
    %v1874 = vunpack.c.l.b16 %v175
    %v1875 = vunpack.c.l.b16 %v176
    %v1876 = vunpack.c.l.b16 %v177
    %v1877 = vunpack.c.l.b16 %v178
    %v1878 = vunpack.c.l.b16 %v179
    %v1879 = vunpack.c.l.b16 %v180
    %v1880 = vunpack.c.l.b16 %v181
    %v1881 = vunpack.c.l.b16 %v182
    %v1882 = vunpack.c.l.b16 %v183
    %v1883 = vunpack.c.l.b16 %v184
    %v1884 = vunpack.c.l.b16 %v185
    %v1885 = vunpack.c.l.b16 %v186
    %v1886 = vunpack.c.l.b16 %v187
    %v1887 = vunpack.c.l.b16 %v188
    %v1888 = vunpack.c.l.b16 %v189
    %v1889 = vunpack.c.l.b16 %v190
    %v1890 = vunpack.c.l.b16 %v191
    %v1891 = vunpack.c.l.b16 %v192
    %v1892 = vunpack.c.l.b16 %v193
    %v1893 = vunpack.c.l.b16 %v194
    %v1894 = vunpack.c.l.b16 %v195
    %v1895 = vunpack.c.l.b16 %v196
    %v1896 = vunpack.c.l.b16 %v197
    %v1897 = vunpack.c.l.b16 %v198
    %v1898 = vunpack.c.l.b16 %v199
    %v1899 = vunpack.c.l.b16 %v200
    %v1900 = vunpack.c.l.b16 %v201
    %v1901 = vunpack.c.l.b16 %v202
    %v1902 = vunpack.c.l.b16 %v203
    %v1903 = vunpack.c.l.b16 %v204
    %v1904 = vunpack.c.l.b16 %v205
    %v1905 = vunpack.c.l.b16 %v206
    %v1906 = vunpack.c.l.b16 %v207
    %v1907 = vunpack.c.l.b16 %v208
    %v1908 = vunpack.c.l.b16 %v209
    %v1909 = vunpack.c.l.b16 %v210
    %v1910 = vunpack.c.l.b16 %v211
    %v1911 = vunpack.c.l.b16 %v212
    %v1912 = vunpack.c.l.b16 %v213
    %v1913 = vunpack.c.l.b16 %v214
    %v1914 = vunpack.c.l.b16 %v215
    %v1915 = vunpack.c.l.b16 %v216
    %v1916 = vunpack.c.l.b16 %v217
    %v1917 = vunpack.c.l.b16 %v218
    %v1918 = vunpack.c.l.b16 %v219
    %v1919 = vunpack.c.l.b16 %v220
    %v1920 = vpack.c.b16 %v1825, %v1824
    %v1921 = vpack.c.b16 %v1827, %v1826
    %v1922 = vpack.c.b16 %v1829, %v1828
    %v1923 = vpack.c.b16 %v1831, %v1830
    %v1924 = vpack.c.b16 %v1833, %v1832
    %v1925 = vpack.c.b16 %v1835, %v1834
    %v1926 = vpack.c.b16 %v1837, %v1836
    %v1927 = vpack.c.b16 %v1839, %v1838
    %v1928 = vpack.c.b16 %v1841, %v1840
    %v1929 = vpack.c.b16 %v1843, %v1842
    %v1930 = vpack.c.b16 %v1845, %v1844
    %v1931 = vpack.c.b16 %v1847, %v1846
    %v1932 = vpack.c.b16 %v1849, %v1848
    %v1933 = vpack.c.b16 %v1851, %v1850
    %v1934 = vpack.c.b16 %v1853, %v1852
    %v1935 = vpack.c.b16 %v1855, %v1854
    %v1936 = vpack.c.b16 %v1857, %v1856
    %v1937 = vpack.c.b16 %v1859, %v1858
    %v1938 = vpack.c.b16 %v1861, %v1860
    %v1939 = vpack.c.b16 %v1863, %v1862
    %v1940 = vpack.c.b16 %v1865, %v1864
    %v1941 = vpack.c.b16 %v1867, %v1866
    %v1942 = vpack.c.b16 %v1869, %v1868
    %v1943 = vpack.c.b16 %v1871, %v1870
    %v1944 = vpack.c.b16 %v1873, %v1872
    %v1945 = vpack.c.b16 %v1875, %v1874
    %v1946 = vpack.c.b16 %v1877, %v1876
    %v1947 = vpack.c.b16 %v1879, %v1878
    %v1948 = vpack.c.b16 %v1881, %v1880
    %v1949 = vpack.c.b16 %v1883, %v1882
    %v1950 = vpack.c.b16 %v1885, %v1884
    %v1951 = vpack.c.b16 %v1887, %v1886
    %v1952 = vpack.c.b16 %v1889, %v1888
    %v1953 = vpack.c.b16 %v1891, %v1890
    %v1954 = vpack.c.b16 %v1893, %v1892
    %v1955 = vpack.c.b16 %v1895, %v1894
    %v1956 = vpack.c.b16 %v1897, %v1896
    %v1957 = vpack.c.b16 %v1899, %v1898
    %v1958 = vpack.c.b16 %v1901, %v1900
    %v1959 = vpack.c.b16 %v1903, %v1902
    %v1960 = vpack.c.b16 %v1905, %v1904
    %v1961 = vpack.c.b16 %v1907, %v1906
    %v1962 = vpack.c.b16 %v1909, %v1908
    %v1963 = vpack.c.b16 %v1911, %v1910
    %v1964 = vpack.c.b16 %v1913, %v1912
    %v1965 = vpack.c.b16 %v1915, %v1914
    %v1966 = vpack.c.b16 %v1917, %v1916
    %v1967 = vpack.c.b16 %v1919, %v1918
    %2016 = vmatprep.subr.bf16.mxu0 0
    %2017 = vmatpush1.bf16.msra.mxu0 %v1920
    %2018 = vmatprep.subr.bf16.mxu0 0
    %2019 = vmatpush1.bf16.msra.mxu0 %v1921
    %2020 = vmatprep.subr.bf16.mxu0 0
    %2021 = vmatpush1.bf16.msra.mxu0 %v1922
    %2022 = vmatprep.subr.bf16.mxu0 0
    %2023 = vmatpush1.bf16.msra.mxu0 %v1923
    %2024 = vmatprep.subr.bf16.mxu0 0
    %2025 = vmatpush1.bf16.msra.mxu0 %v1924
    %2026 = vmatprep.subr.bf16.mxu0 0
    %2027 = vmatpush1.bf16.msra.mxu0 %v1925
    %2028 = vmatprep.subr.bf16.mxu0 0
    %2029 = vmatpush1.bf16.msra.mxu0 %v1926
    %2030 = vmatprep.subr.bf16.mxu0 0
    %2031 = vmatpush1.bf16.msra.mxu0 %v1927
    %2032 = vmatprep.subr.bf16.mxu0 0
    %2033 = vmatpush1.bf16.msra.mxu0 %v1928
    %2034 = vmatprep.subr.bf16.mxu0 0
    %2035 = vmatpush1.bf16.msra.mxu0 %v1929
    %2036 = vmatprep.subr.bf16.mxu0 0
    %2037 = vmatpush1.bf16.msra.mxu0 %v1930
    %2038 = vmatprep.subr.bf16.mxu0 0
    %2039 = vmatpush1.bf16.msra.mxu0 %v1931
    %2040 = vmatprep.subr.bf16.mxu0 0
    %2041 = vmatpush1.bf16.msra.mxu0 %v1932
    %2042 = vmatprep.subr.bf16.mxu0 0
    %2043 = vmatpush1.bf16.msra.mxu0 %v1933
    %2044 = vmatprep.subr.bf16.mxu0 0
    %2045 = vmatpush1.bf16.msra.mxu0 %v1934
    %2046 = vmatprep.subr.bf16.mxu0 0
    %2047 = vmatpush1.bf16.msra.mxu0 %v1935
    %2048 = vmatprep.mubr.bf16.mxu0 %v1717
    %2049 = vmatmul.mubr.bf16.gmra.mrb[0].mxu0 %v1716
    %v2050 = vpop.f32.mrb[0].mxu0
    %v2051 = vadd.f32 0.0, %v2050
    %v2052 = vpop.f32.mrb[0].mxu0
    %v2053 = vpop.f32.mrb[0].mxu0
    %v2054 = vpop.f32.mrb[0].mxu0
    %2055 = vdwg.mxu0
    %2056 = vmatprep.subr.bf16.mxu0 0
    %2057 = vmatpush1.bf16.msra.mxu0 %v1936
    %2058 = vmatprep.subr.bf16.mxu0 0
    %2059 = vmatpush1.bf16.msra.mxu0 %v1937
    %2060 = vmatprep.subr.bf16.mxu0 0
    %2061 = vmatpush1.bf16.msra.mxu0 %v1938
    %2062 = vmatprep.subr.bf16.mxu0 0
    %2063 = vmatpush1.bf16.msra.mxu0 %v1939
    %2064 = vmatprep.subr.bf16.mxu0 0
    %2065 = vmatpush1.bf16.msra.mxu0 %v1940
    %2066 = vmatprep.subr.bf16.mxu0 0
    %2067 = vmatpush1.bf16.msra.mxu0 %v1941
    %2068 = vmatprep.subr.bf16.mxu0 0
    %2069 = vmatpush1.bf16.msra.mxu0 %v1942
    %2070 = vmatprep.subr.bf16.mxu0 0
    %2071 = vmatpush1.bf16.msra.mxu0 %v1943
    %2072 = vmatprep.subr.bf16.mxu0 0
    %2073 = vmatpush1.bf16.msra.mxu0 %v1944
    %2074 = vmatprep.subr.bf16.mxu0 0
    %2075 = vmatpush1.bf16.msra.mxu0 %v1945
    %2076 = vmatprep.subr.bf16.mxu0 0
    %2077 = vmatpush1.bf16.msra.mxu0 %v1946
    %2078 = vmatprep.subr.bf16.mxu0 0
    %2079 = vmatpush1.bf16.msra.mxu0 %v1947
    %2080 = vmatprep.subr.bf16.mxu0 0
    %2081 = vmatpush1.bf16.msra.mxu0 %v1948
    %2082 = vmatprep.subr.bf16.mxu0 0
    %2083 = vmatpush1.bf16.msra.mxu0 %v1949
    %2084 = vmatprep.subr.bf16.mxu0 0
    %2085 = vmatpush1.bf16.msra.mxu0 %v1950
    %2086 = vmatprep.subr.bf16.mxu0 0
    %2087 = vmatpush1.bf16.msra.mxu0 %v1951
    %2088 = vmatprep.mubr.bf16.mxu0 %v1719
    %2089 = vmatmul.mubr.bf16.gmra.mrb[0].mxu0 %v1718
    %v2090 = vpop.f32.mrb[0].mxu0
    %v2091 = vadd.f32 %v2051, %v2090
    %v2092 = vpop.f32.mrb[0].mxu0
    %v2093 = vpop.f32.mrb[0].mxu0
    %v2094 = vpop.f32.mrb[0].mxu0
    %2095 = vdwg.mxu0
    %2096 = vmatprep.subr.bf16.mxu0 0
    %2097 = vmatpush1.bf16.msra.mxu0 %v1952
    %2098 = vmatprep.subr.bf16.mxu0 0
    %2099 = vmatpush1.bf16.msra.mxu0 %v1953
    %2100 = vmatprep.subr.bf16.mxu0 0
    %2101 = vmatpush1.bf16.msra.mxu0 %v1954
    %2102 = vmatprep.subr.bf16.mxu0 0
    %2103 = vmatpush1.bf16.msra.mxu0 %v1955
    %2104 = vmatprep.subr.bf16.mxu0 0
    %2105 = vmatpush1.bf16.msra.mxu0 %v1956
    %2106 = vmatprep.subr.bf16.mxu0 0
    %2107 = vmatpush1.bf16.msra.mxu0 %v1957
    %2108 = vmatprep.subr.bf16.mxu0 0
    %2109 = vmatpush1.bf16.msra.mxu0 %v1958
    %2110 = vmatprep.subr.bf16.mxu0 0
    %2111 = vmatpush1.bf16.msra.mxu0 %v1959
    %2112 = vmatprep.subr.bf16.mxu0 0
    %2113 = vmatpush1.bf16.msra.mxu0 %v1960
    %2114 = vmatprep.subr.bf16.mxu0 0
    %2115 = vmatpush1.bf16.msra.mxu0 %v1961
    %2116 = vmatprep.subr.bf16.mxu0 0
    %2117 = vmatpush1.bf16.msra.mxu0 %v1962
    %2118 = vmatprep.subr.bf16.mxu0 0
    %2119 = vmatpush1.bf16.msra.mxu0 %v1963
    %2120 = vmatprep.subr.bf16.mxu0 0
    %2121 = vmatpush1.bf16.msra.mxu0 %v1964
    %2122 = vmatprep.subr.bf16.mxu0 0
    %2123 = vmatpush1.bf16.msra.mxu0 %v1965
    %2124 = vmatprep.subr.bf16.mxu0 0
    %2125 = vmatpush1.bf16.msra.mxu0 %v1966
    %2126 = vmatprep.subr.bf16.mxu0 0
    %2127 = vmatpush1.bf16.msra.mxu0 %v1967
    %2128 = vmatprep.mubr.bf16.mxu0 %v1721
    %2129 = vmatmul.mubr.bf16.gmra.mrb[0].mxu0 %v1720
    %v2130 = vpop.f32.mrb[0].mxu0
    %v2131 = vadd.f32 %v2091, %v2130
    %v2132 = vpop.f32.mrb[0].mxu0
    %v2133 = vpop.f32.mrb[0].mxu0
    %v2134 = vpop.f32.mrb[0].mxu0
    %2135 = vdwg.mxu0
    %2136 = vst [vmem:[#allocation11] sm:$0x7] %v2131
    %v2137 = vpack.c.bf16 %v727, %v727
    %v2138 = vpack.c.bf16 %v733, %v733
    %v2139 = vpack.c.bf16 %v739, %v739
    %v2140 = vpack.c.bf16 %v745, %v745
    %v2141 = vpack.c.bf16 %v751, %v751
    %v2142 = vpack.c.bf16 %v757, %v757
    %v2143 = vpack.c.bf16 %v763, %v763
    %v2144 = vpack.c.bf16 %v769, %v769
    %v2145 = vpack.c.bf16 %v775, %v775
    %v2146 = vpack.c.bf16 %v781, %v781
    %v2147 = vpack.c.bf16 %v787, %v787
    %v2148 = vpack.c.bf16 %v793, %v793
    %v2161 = vunpack.c.l.b16 %v2137
    %v2162 = vunpack.c.l.b16 %v2138
    %v2163 = vunpack.c.l.b16 %v2139
    %v2164 = vunpack.c.l.b16 %v2140
    %v2165 = vunpack.c.l.b16 %v2141
    %v2166 = vunpack.c.l.b16 %v2142
    %v2167 = vunpack.c.l.b16 %v2143
    %v2168 = vunpack.c.l.b16 %v2144
    %v2169 = vunpack.c.l.b16 %v2145
    %v2170 = vunpack.c.l.b16 %v2146
    %v2171 = vunpack.c.l.b16 %v2147
    %v2172 = vunpack.c.l.b16 %v2148
    %v2173 = vsel %vm1702, %v2167, %v2161
    %v2174 = vsel %vm1702, %v2168, %v2162
    %v2175 = vsel %vm1702, %v2169, %v2163
    %v2176 = vsel %vm1702, %v2170, %v2164
    %v2177 = vsel %vm1702, %v2171, %v2165
    %v2178 = vsel %vm1702, %v2172, %v2166
    %v2179 = vpack.c.b16 %v2173, %v2173
    %v2180 = vpack.c.b16 %v2174, %v2174
    %v2181 = vpack.c.b16 %v2175, %v2175
    %v2182 = vpack.c.b16 %v2176, %v2176
    %v2183 = vpack.c.b16 %v2177, %v2177
    %v2184 = vpack.c.b16 %v2178, %v2178
    %2191 = vmatprep.subr.bf16.mxu0 0
    %2192 = vmatpush1.bf16.msra.mxu0 %v1920
    %2193 = vmatprep.subr.bf16.mxu0 0
    %2194 = vmatpush1.bf16.msra.mxu0 %v1921
    %2195 = vmatprep.subr.bf16.mxu0 0
    %2196 = vmatpush1.bf16.msra.mxu0 %v1922
    %2197 = vmatprep.subr.bf16.mxu0 0
    %2198 = vmatpush1.bf16.msra.mxu0 %v1923
    %2199 = vmatprep.subr.bf16.mxu0 0
    %2200 = vmatpush1.bf16.msra.mxu0 %v1924
    %2201 = vmatprep.subr.bf16.mxu0 0
    %2202 = vmatpush1.bf16.msra.mxu0 %v1925
    %2203 = vmatprep.subr.bf16.mxu0 0
    %2204 = vmatpush1.bf16.msra.mxu0 %v1926
    %2205 = vmatprep.subr.bf16.mxu0 0
    %2206 = vmatpush1.bf16.msra.mxu0 %v1927
    %2207 = vmatprep.subr.bf16.mxu0 0
    %2208 = vmatpush1.bf16.msra.mxu0 %v1928
    %2209 = vmatprep.subr.bf16.mxu0 0
    %2210 = vmatpush1.bf16.msra.mxu0 %v1929
    %2211 = vmatprep.subr.bf16.mxu0 0
    %2212 = vmatpush1.bf16.msra.mxu0 %v1930
    %2213 = vmatprep.subr.bf16.mxu0 0
    %2214 = vmatpush1.bf16.msra.mxu0 %v1931
    %2215 = vmatprep.subr.bf16.mxu0 0
    %2216 = vmatpush1.bf16.msra.mxu0 %v1932
    %2217 = vmatprep.subr.bf16.mxu0 0
    %2218 = vmatpush1.bf16.msra.mxu0 %v1933
    %2219 = vmatprep.subr.bf16.mxu0 0
    %2220 = vmatpush1.bf16.msra.mxu0 %v1934
    %2221 = vmatprep.subr.bf16.mxu0 0
    %2222 = vmatpush1.bf16.msra.mxu0 %v1935
    %2223 = vmatprep.mubr.bf16.mxu0 %v2180
    %2224 = vmatmul.mubr.bf16.gmra.mrb[0].mxu0 %v2179
    %v2225 = vpop.f32.mrb[0].mxu0
    %v2226 = vadd.f32 0.0, %v2225
    %v2227 = vpop.f32.mrb[0].mxu0
    %v2228 = vpop.f32.mrb[0].mxu0
    %v2229 = vpop.f32.mrb[0].mxu0
    %2230 = vdwg.mxu0
    %2231 = vmatprep.subr.bf16.mxu0 0
    %2232 = vmatpush1.bf16.msra.mxu0 %v1936
    %2233 = vmatprep.subr.bf16.mxu0 0
    %2234 = vmatpush1.bf16.msra.mxu0 %v1937
    %2235 = vmatprep.subr.bf16.mxu0 0
    %2236 = vmatpush1.bf16.msra.mxu0 %v1938
    %2237 = vmatprep.subr.bf16.mxu0 0
    %2238 = vmatpush1.bf16.msra.mxu0 %v1939
    %2239 = vmatprep.subr.bf16.mxu0 0
    %2240 = vmatpush1.bf16.msra.mxu0 %v1940
    %2241 = vmatprep.subr.bf16.mxu0 0
    %2242 = vmatpush1.bf16.msra.mxu0 %v1941
    %2243 = vmatprep.subr.bf16.mxu0 0
    %2244 = vmatpush1.bf16.msra.mxu0 %v1942
    %2245 = vmatprep.subr.bf16.mxu0 0
    %2246 = vmatpush1.bf16.msra.mxu0 %v1943
    %2247 = vmatprep.subr.bf16.mxu0 0
    %2248 = vmatpush1.bf16.msra.mxu0 %v1944
    %2249 = vmatprep.subr.bf16.mxu0 0
    %2250 = vmatpush1.bf16.msra.mxu0 %v1945
    %2251 = vmatprep.subr.bf16.mxu0 0
    %2252 = vmatpush1.bf16.msra.mxu0 %v1946
    %2253 = vmatprep.subr.bf16.mxu0 0
    %2254 = vmatpush1.bf16.msra.mxu0 %v1947
    %2255 = vmatprep.subr.bf16.mxu0 0
    %2256 = vmatpush1.bf16.msra.mxu0 %v1948
    %2257 = vmatprep.subr.bf16.mxu0 0
    %2258 = vmatpush1.bf16.msra.mxu0 %v1949
    %2259 = vmatprep.subr.bf16.mxu0 0
    %2260 = vmatpush1.bf16.msra.mxu0 %v1950
    %2261 = vmatprep.subr.bf16.mxu0 0
    %2262 = vmatpush1.bf16.msra.mxu0 %v1951
    %2263 = vmatprep.mubr.bf16.mxu0 %v2182
    %2264 = vmatmul.mubr.bf16.gmra.mrb[0].mxu0 %v2181
    %v2265 = vpop.f32.mrb[0].mxu0
    %v2266 = vadd.f32 %v2226, %v2265
    %v2267 = vpop.f32.mrb[0].mxu0
    %v2268 = vpop.f32.mrb[0].mxu0
    %v2269 = vpop.f32.mrb[0].mxu0
    %2270 = vdwg.mxu0
    %2271 = vmatprep.subr.bf16.mxu0 0
    %2272 = vmatpush1.bf16.msra.mxu0 %v1952
    %2273 = vmatprep.subr.bf16.mxu0 0
    %2274 = vmatpush1.bf16.msra.mxu0 %v1953
    %2275 = vmatprep.subr.bf16.mxu0 0
    %2276 = vmatpush1.bf16.msra.mxu0 %v1954
    %2277 = vmatprep.subr.bf16.mxu0 0
    %2278 = vmatpush1.bf16.msra.mxu0 %v1955
    %2279 = vmatprep.subr.bf16.mxu0 0
    %2280 = vmatpush1.bf16.msra.mxu0 %v1956
    %2281 = vmatprep.subr.bf16.mxu0 0
    %2282 = vmatpush1.bf16.msra.mxu0 %v1957
    %2283 = vmatprep.subr.bf16.mxu0 0
    %2284 = vmatpush1.bf16.msra.mxu0 %v1958
    %2285 = vmatprep.subr.bf16.mxu0 0
    %2286 = vmatpush1.bf16.msra.mxu0 %v1959
    %2287 = vmatprep.subr.bf16.mxu0 0
    %2288 = vmatpush1.bf16.msra.mxu0 %v1960
    %2289 = vmatprep.subr.bf16.mxu0 0
    %2290 = vmatpush1.bf16.msra.mxu0 %v1961
    %2291 = vmatprep.subr.bf16.mxu0 0
    %2292 = vmatpush1.bf16.msra.mxu0 %v1962
    %2293 = vmatprep.subr.bf16.mxu0 0
    %2294 = vmatpush1.bf16.msra.mxu0 %v1963
    %2295 = vmatprep.subr.bf16.mxu0 0
    %2296 = vmatpush1.bf16.msra.mxu0 %v1964
    %2297 = vmatprep.subr.bf16.mxu0 0
    %2298 = vmatpush1.bf16.msra.mxu0 %v1965
    %2299 = vmatprep.subr.bf16.mxu0 0
    %2300 = vmatpush1.bf16.msra.mxu0 %v1966
    %2301 = vmatprep.subr.bf16.mxu0 0
    %2302 = vmatpush1.bf16.msra.mxu0 %v1967
    %2303 = vmatprep.mubr.bf16.mxu0 %v2184
    %2304 = vmatmul.mubr.bf16.gmra.mrb[0].mxu0 %v2183
    %v2305 = vpop.f32.mrb[0].mxu0
    %v2306 = vadd.f32 %v2266, %v2305
    %v2307 = vpop.f32.mrb[0].mxu0
    %v2308 = vpop.f32.mrb[0].mxu0
    %v2309 = vpop.f32.mrb[0].mxu0
    %2310 = vdwg.mxu0
    %2311 = vst [vmem:[#allocation12] sm:$0x3] %v2306
    %v2312 = vpack.c.bf16 %v1125, %v1125
    %v2313 = vpack.c.bf16 %v1131, %v1131
    %v2314 = vpack.c.bf16 %v1137, %v1137
    %v2315 = vpack.c.bf16 %v1143, %v1143
    %v2316 = vpack.c.bf16 %v1149, %v1149
    %v2317 = vpack.c.bf16 %v1155, %v1155
    %v2318 = vpack.c.bf16 %v1161, %v1161
    %v2319 = vpack.c.bf16 %v1167, %v1167
    %v2320 = vpack.c.bf16 %v1173, %v1173
    %v2321 = vpack.c.bf16 %v1179, %v1179
    %v2322 = vpack.c.bf16 %v1185, %v1185
    %v2323 = vpack.c.bf16 %v1191, %v1191
    %v2324 = vpack.c.bf16 %v1197, %v1197
    %v2325 = vpack.c.bf16 %v1203, %v1203
    %v2326 = vpack.c.bf16 %v1209, %v1209
    %v2327 = vpack.c.bf16 %v1215, %v1215
    %v2328 = vpack.c.bf16 %v1221, %v1221
    %v2329 = vpack.c.bf16 %v1227, %v1227
    %v2330 = vpack.c.bf16 %v1233, %v1233
    %v2331 = vpack.c.bf16 %v1239, %v1239
    %v2332 = vpack.c.bf16 %v1245, %v1245
    %v2333 = vpack.c.bf16 %v1251, %v1251
    %v2334 = vpack.c.bf16 %v1257, %v1257
    %v2335 = vpack.c.bf16 %v1263, %v1263
    %v2360 = vunpack.c.l.b16 %v2312
    %v2361 = vunpack.c.l.b16 %v2313
    %v2362 = vunpack.c.l.b16 %v2314
    %v2363 = vunpack.c.l.b16 %v2315
    %v2364 = vunpack.c.l.b16 %v2316
    %v2365 = vunpack.c.l.b16 %v2317
    %v2366 = vunpack.c.l.b16 %v2318
    %v2367 = vunpack.c.l.b16 %v2319
    %v2368 = vunpack.c.l.b16 %v2320
    %v2369 = vunpack.c.l.b16 %v2321
    %v2370 = vunpack.c.l.b16 %v2322
    %v2371 = vunpack.c.l.b16 %v2323
    %v2372 = vunpack.c.l.b16 %v2324
    %v2373 = vunpack.c.l.b16 %v2325
    %v2374 = vunpack.c.l.b16 %v2326
    %v2375 = vunpack.c.l.b16 %v2327
    %v2376 = vunpack.c.l.b16 %v2328
    %v2377 = vunpack.c.l.b16 %v2329
    %v2378 = vunpack.c.l.b16 %v2330
    %v2379 = vunpack.c.l.b16 %v2331
    %v2380 = vunpack.c.l.b16 %v2332
    %v2381 = vunpack.c.l.b16 %v2333
    %v2382 = vunpack.c.l.b16 %v2334
    %v2383 = vunpack.c.l.b16 %v2335
    %v2384 = vsel %vm1702, %v2366, %v2360
    %v2385 = vsel %vm1704, %v2372, %v2384
    %vm2386 = vcmask 1043459
    %v2387 = vsel %vm2386, %v2378, %v2385
    %v2388 = vsel %vm1702, %v2367, %v2361
    %v2389 = vsel %vm1704, %v2373, %v2388
    %v2390 = vsel %vm2386, %v2379, %v2389
    %v2391 = vsel %vm1702, %v2368, %v2362
    %v2392 = vsel %vm1704, %v2374, %v2391
    %v2393 = vsel %vm2386, %v2380, %v2392
    %v2394 = vsel %vm1702, %v2369, %v2363
    %v2395 = vsel %vm1704, %v2375, %v2394
    %v2396 = vsel %vm2386, %v2381, %v2395
    %v2397 = vsel %vm1702, %v2370, %v2364
    %v2398 = vsel %vm1704, %v2376, %v2397
    %v2399 = vsel %vm2386, %v2382, %v2398
    %v2400 = vsel %vm1702, %v2371, %v2365
    %v2401 = vsel %vm1704, %v2377, %v2400
    %v2402 = vsel %vm2386, %v2383, %v2401
    %v2403 = vpack.c.b16 %v2387, %v2387
    %v2404 = vpack.c.b16 %v2390, %v2390
    %v2405 = vpack.c.b16 %v2393, %v2393
    %v2406 = vpack.c.b16 %v2396, %v2396
    %v2407 = vpack.c.b16 %v2399, %v2399
    %v2408 = vpack.c.b16 %v2402, %v2402
    %2415 = vmatprep.subr.bf16.mxu0 0
    %2416 = vmatpush1.bf16.msra.mxu0 %v1920
    %2417 = vmatprep.subr.bf16.mxu0 0
    %2418 = vmatpush1.bf16.msra.mxu0 %v1921
    %2419 = vmatprep.subr.bf16.mxu0 0
    %2420 = vmatpush1.bf16.msra.mxu0 %v1922
    %2421 = vmatprep.subr.bf16.mxu0 0
    %2422 = vmatpush1.bf16.msra.mxu0 %v1923
    %2423 = vmatprep.subr.bf16.mxu0 0
    %2424 = vmatpush1.bf16.msra.mxu0 %v1924
    %2425 = vmatprep.subr.bf16.mxu0 0
    %2426 = vmatpush1.bf16.msra.mxu0 %v1925
    %2427 = vmatprep.subr.bf16.mxu0 0
    %2428 = vmatpush1.bf16.msra.mxu0 %v1926
    %2429 = vmatprep.subr.bf16.mxu0 0
    %2430 = vmatpush1.bf16.msra.mxu0 %v1927
    %2431 = vmatprep.subr.bf16.mxu0 0
    %2432 = vmatpush1.bf16.msra.mxu0 %v1928
    %2433 = vmatprep.subr.bf16.mxu0 0
    %2434 = vmatpush1.bf16.msra.mxu0 %v1929
    %2435 = vmatprep.subr.bf16.mxu0 0
    %2436 = vmatpush1.bf16.msra.mxu0 %v1930
    %2437 = vmatprep.subr.bf16.mxu0 0
    %2438 = vmatpush1.bf16.msra.mxu0 %v1931
    %2439 = vmatprep.subr.bf16.mxu0 0
    %2440 = vmatpush1.bf16.msra.mxu0 %v1932
    %2441 = vmatprep.subr.bf16.mxu0 0
    %2442 = vmatpush1.bf16.msra.mxu0 %v1933
    %2443 = vmatprep.subr.bf16.mxu0 0
    %2444 = vmatpush1.bf16.msra.mxu0 %v1934
    %2445 = vmatprep.subr.bf16.mxu0 0
    %2446 = vmatpush1.bf16.msra.mxu0 %v1935
    %2447 = vmatprep.mubr.bf16.mxu0 %v2404
    %2448 = vmatmul.mubr.bf16.gmra.mrb[0].mxu0 %v2403
    %v2449 = vpop.f32.mrb[0].mxu0
    %v2450 = vadd.f32 0.0, %v2449
    %v2451 = vpop.f32.mrb[0].mxu0
    %v2452 = vpop.f32.mrb[0].mxu0
    %v2453 = vpop.f32.mrb[0].mxu0
    %2454 = vdwg.mxu0
    %2455 = vmatprep.subr.bf16.mxu0 0
    %2456 = vmatpush1.bf16.msra.mxu0 %v1936
    %2457 = vmatprep.subr.bf16.mxu0 0
    %2458 = vmatpush1.bf16.msra.mxu0 %v1937
    %2459 = vmatprep.subr.bf16.mxu0 0
    %2460 = vmatpush1.bf16.msra.mxu0 %v1938
    %2461 = vmatprep.subr.bf16.mxu0 0
    %2462 = vmatpush1.bf16.msra.mxu0 %v1939
    %2463 = vmatprep.subr.bf16.mxu0 0
    %2464 = vmatpush1.bf16.msra.mxu0 %v1940
    %2465 = vmatprep.subr.bf16.mxu0 0
    %2466 = vmatpush1.bf16.msra.mxu0 %v1941
    %2467 = vmatprep.subr.bf16.mxu0 0
    %2468 = vmatpush1.bf16.msra.mxu0 %v1942
    %2469 = vmatprep.subr.bf16.mxu0 0
    %2470 = vmatpush1.bf16.msra.mxu0 %v1943
    %2471 = vmatprep.subr.bf16.mxu0 0
    %2472 = vmatpush1.bf16.msra.mxu0 %v1944
    %2473 = vmatprep.subr.bf16.mxu0 0
    %2474 = vmatpush1.bf16.msra.mxu0 %v1945
    %2475 = vmatprep.subr.bf16.mxu0 0
    %2476 = vmatpush1.bf16.msra.mxu0 %v1946
    %2477 = vmatprep.subr.bf16.mxu0 0
    %2478 = vmatpush1.bf16.msra.mxu0 %v1947
    %2479 = vmatprep.subr.bf16.mxu0 0
    %2480 = vmatpush1.bf16.msra.mxu0 %v1948
    %2481 = vmatprep.subr.bf16.mxu0 0
    %2482 = vmatpush1.bf16.msra.mxu0 %v1949
    %2483 = vmatprep.subr.bf16.mxu0 0
    %2484 = vmatpush1.bf16.msra.mxu0 %v1950
    %2485 = vmatprep.subr.bf16.mxu0 0
    %2486 = vmatpush1.bf16.msra.mxu0 %v1951
    %2487 = vmatprep.mubr.bf16.mxu0 %v2406
    %2488 = vmatmul.mubr.bf16.gmra.mrb[0].mxu0 %v2405
    %v2489 = vpop.f32.mrb[0].mxu0
    %v2490 = vadd.f32 %v2450, %v2489
    %v2491 = vpop.f32.mrb[0].mxu0
    %v2492 = vpop.f32.mrb[0].mxu0
    %v2493 = vpop.f32.mrb[0].mxu0
    %2494 = vdwg.mxu0
    %2495 = vmatprep.subr.bf16.mxu0 0
    %2496 = vmatpush1.bf16.msra.mxu0 %v1952
    %2497 = vmatprep.subr.bf16.mxu0 0
    %2498 = vmatpush1.bf16.msra.mxu0 %v1953
    %2499 = vmatprep.subr.bf16.mxu0 0
    %2500 = vmatpush1.bf16.msra.mxu0 %v1954
    %2501 = vmatprep.subr.bf16.mxu0 0
    %2502 = vmatpush1.bf16.msra.mxu0 %v1955
    %2503 = vmatprep.subr.bf16.mxu0 0
    %2504 = vmatpush1.bf16.msra.mxu0 %v1956
    %2505 = vmatprep.subr.bf16.mxu0 0
    %2506 = vmatpush1.bf16.msra.mxu0 %v1957
    %2507 = vmatprep.subr.bf16.mxu0 0
    %2508 = vmatpush1.bf16.msra.mxu0 %v1958
    %2509 = vmatprep.subr.bf16.mxu0 0
    %2510 = vmatpush1.bf16.msra.mxu0 %v1959
    %2511 = vmatprep.subr.bf16.mxu0 0
    %2512 = vmatpush1.bf16.msra.mxu0 %v1960
    %2513 = vmatprep.subr.bf16.mxu0 0
    %2514 = vmatpush1.bf16.msra.mxu0 %v1961
    %2515 = vmatprep.subr.bf16.mxu0 0
    %2516 = vmatpush1.bf16.msra.mxu0 %v1962
    %2517 = vmatprep.subr.bf16.mxu0 0
    %2518 = vmatpush1.bf16.msra.mxu0 %v1963
    %2519 = vmatprep.subr.bf16.mxu0 0
    %2520 = vmatpush1.bf16.msra.mxu0 %v1964
    %2521 = vmatprep.subr.bf16.mxu0 0
    %2522 = vmatpush1.bf16.msra.mxu0 %v1965
    %2523 = vmatprep.subr.bf16.mxu0 0
    %2524 = vmatpush1.bf16.msra.mxu0 %v1966
    %2525 = vmatprep.subr.bf16.mxu0 0
    %2526 = vmatpush1.bf16.msra.mxu0 %v1967
    %2527 = vmatprep.mubr.bf16.mxu0 %v2408
    %2528 = vmatmul.mubr.bf16.gmra.mrb[0].mxu0 %v2407
    %v2529 = vpop.f32.mrb[0].mxu0
    %v2530 = vadd.f32 %v2490, %v2529
    %v2531 = vpop.f32.mrb[0].mxu0
    %v2532 = vpop.f32.mrb[0].mxu0
    %v2533 = vpop.f32.mrb[0].mxu0
    %2534 = vdwg.mxu0
    %2535 = vst [vmem:[#allocation14] sm:$0xf] %v2530
    %v2536 = vpack.c.bf16 %v1509, %v1509
    %v2537 = vpack.c.bf16 %v1515, %v1515
    %v2538 = vpack.c.bf16 %v1521, %v1521
    %v2539 = vpack.c.bf16 %v1527, %v1527
    %v2540 = vpack.c.bf16 %v1533, %v1533
    %v2541 = vpack.c.bf16 %v1539, %v1539
    %v2542 = vpack.c.bf16 %v1545, %v1545
    %v2543 = vpack.c.bf16 %v1551, %v1551
    %v2544 = vpack.c.bf16 %v1557, %v1557
    %v2545 = vpack.c.bf16 %v1563, %v1563
    %v2546 = vpack.c.bf16 %v1569, %v1569
    %v2547 = vpack.c.bf16 %v1575, %v1575
    %v2548 = vpack.c.bf16 %v1581, %v1581
    %v2549 = vpack.c.bf16 %v1587, %v1587
    %v2550 = vpack.c.bf16 %v1593, %v1593
    %v2551 = vpack.c.bf16 %v1599, %v1599
    %v2552 = vpack.c.bf16 %v1605, %v1605
    %v2553 = vpack.c.bf16 %v1611, %v1611
    %v2554 = vpack.c.bf16 %v1617, %v1617
    %v2555 = vpack.c.bf16 %v1623, %v1623
    %v2556 = vpack.c.bf16 %v1629, %v1629
    %v2557 = vpack.c.bf16 %v1635, %v1635
    %v2558 = vpack.c.bf16 %v1641, %v1641
    %v2559 = vpack.c.bf16 %v1647, %v1647
    %v2584 = vunpack.c.l.b16 %v2536
    %v2585 = vunpack.c.l.b16 %v2537
    %v2586 = vunpack.c.l.b16 %v2538
    %v2587 = vunpack.c.l.b16 %v2539
    %v2588 = vunpack.c.l.b16 %v2540
    %v2589 = vunpack.c.l.b16 %v2541
    %v2590 = vunpack.c.l.b16 %v2542
    %v2591 = vunpack.c.l.b16 %v2543
    %v2592 = vunpack.c.l.b16 %v2544
    %v2593 = vunpack.c.l.b16 %v2545
    %v2594 = vunpack.c.l.b16 %v2546
    %v2595 = vunpack.c.l.b16 %v2547
    %v2596 = vunpack.c.l.b16 %v2548
    %v2597 = vunpack.c.l.b16 %v2549
    %v2598 = vunpack.c.l.b16 %v2550
    %v2599 = vunpack.c.l.b16 %v2551
    %v2600 = vunpack.c.l.b16 %v2552
    %v2601 = vunpack.c.l.b16 %v2553
    %v2602 = vunpack.c.l.b16 %v2554
    %v2603 = vunpack.c.l.b16 %v2555
    %v2604 = vunpack.c.l.b16 %v2556
    %v2605 = vunpack.c.l.b16 %v2557
    %v2606 = vunpack.c.l.b16 %v2558
    %v2607 = vunpack.c.l.b16 %v2559
    %v2608 = vsel %vm1702, %v2590, %v2584
    %v2609 = vsel %vm1704, %v2596, %v2608
    %v2610 = vsel %vm2386, %v2602, %v2609
    %v2611 = vsel %vm1702, %v2591, %v2585
    %v2612 = vsel %vm1704, %v2597, %v2611
    %v2613 = vsel %vm2386, %v2603, %v2612
    %v2614 = vsel %vm1702, %v2592, %v2586
    %v2615 = vsel %vm1704, %v2598, %v2614
    %v2616 = vsel %vm2386, %v2604, %v2615
    %v2617 = vsel %vm1702, %v2593, %v2587
    %v2618 = vsel %vm1704, %v2599, %v2617
    %v2619 = vsel %vm2386, %v2605, %v2618
    %v2620 = vsel %vm1702, %v2594, %v2588
    %v2621 = vsel %vm1704, %v2600, %v2620
    %v2622 = vsel %vm2386, %v2606, %v2621
    %v2623 = vsel %vm1702, %v2595, %v2589
    %v2624 = vsel %vm1704, %v2601, %v2623
    %v2625 = vsel %vm2386, %v2607, %v2624
    %v2626 = vpack.c.b16 %v2610, %v2610
    %v2627 = vpack.c.b16 %v2613, %v2613
    %v2628 = vpack.c.b16 %v2616, %v2616
    %v2629 = vpack.c.b16 %v2619, %v2619
    %v2630 = vpack.c.b16 %v2622, %v2622
    %v2631 = vpack.c.b16 %v2625, %v2625
    %2638 = vmatprep.subr.bf16.mxu0 0
    %2639 = vmatpush1.bf16.msra.mxu0 %v1920
    %2640 = vmatprep.subr.bf16.mxu0 0
    %2641 = vmatpush1.bf16.msra.mxu0 %v1921
    %2642 = vmatprep.subr.bf16.mxu0 0
    %2643 = vmatpush1.bf16.msra.mxu0 %v1922
    %2644 = vmatprep.subr.bf16.mxu0 0
    %2645 = vmatpush1.bf16.msra.mxu0 %v1923
    %2646 = vmatprep.subr.bf16.mxu0 0
    %2647 = vmatpush1.bf16.msra.mxu0 %v1924
    %2648 = vmatprep.subr.bf16.mxu0 0
    %2649 = vmatpush1.bf16.msra.mxu0 %v1925
    %2650 = vmatprep.subr.bf16.mxu0 0
    %2651 = vmatpush1.bf16.msra.mxu0 %v1926
    %2652 = vmatprep.subr.bf16.mxu0 0
    %2653 = vmatpush1.bf16.msra.mxu0 %v1927
    %2654 = vmatprep.subr.bf16.mxu0 0
    %2655 = vmatpush1.bf16.msra.mxu0 %v1928
    %2656 = vmatprep.subr.bf16.mxu0 0
    %2657 = vmatpush1.bf16.msra.mxu0 %v1929
    %2658 = vmatprep.subr.bf16.mxu0 0
    %2659 = vmatpush1.bf16.msra.mxu0 %v1930
    %2660 = vmatprep.subr.bf16.mxu0 0
    %2661 = vmatpush1.bf16.msra.mxu0 %v1931
    %2662 = vmatprep.subr.bf16.mxu0 0
    %2663 = vmatpush1.bf16.msra.mxu0 %v1932
    %2664 = vmatprep.subr.bf16.mxu0 0
    %2665 = vmatpush1.bf16.msra.mxu0 %v1933
    %2666 = vmatprep.subr.bf16.mxu0 0
    %2667 = vmatpush1.bf16.msra.mxu0 %v1934
    %2668 = vmatprep.subr.bf16.mxu0 0
    %2669 = vmatpush1.bf16.msra.mxu0 %v1935
    %2670 = vmatprep.mubr.bf16.mxu0 %v2627
    %2671 = vmatmul.mubr.bf16.gmra.mrb[0].mxu0 %v2626
    %v2672 = vpop.f32.mrb[0].mxu0
    %v2673 = vadd.f32 0.0, %v2672
    %v2674 = vpop.f32.mrb[0].mxu0
    %v2675 = vpop.f32.mrb[0].mxu0
    %v2676 = vpop.f32.mrb[0].mxu0
    %2677 = vdwg.mxu0
    %2678 = vmatprep.subr.bf16.mxu0 0
    %2679 = vmatpush1.bf16.msra.mxu0 %v1936
    %2680 = vmatprep.subr.bf16.mxu0 0
    %2681 = vmatpush1.bf16.msra.mxu0 %v1937
    %2682 = vmatprep.subr.bf16.mxu0 0
    %2683 = vmatpush1.bf16.msra.mxu0 %v1938
    %2684 = vmatprep.subr.bf16.mxu0 0
    %2685 = vmatpush1.bf16.msra.mxu0 %v1939
    %2686 = vmatprep.subr.bf16.mxu0 0
    %2687 = vmatpush1.bf16.msra.mxu0 %v1940
    %2688 = vmatprep.subr.bf16.mxu0 0
    %2689 = vmatpush1.bf16.msra.mxu0 %v1941
    %2690 = vmatprep.subr.bf16.mxu0 0
    %2691 = vmatpush1.bf16.msra.mxu0 %v1942
    %2692 = vmatprep.subr.bf16.mxu0 0
    %2693 = vmatpush1.bf16.msra.mxu0 %v1943
    %2694 = vmatprep.subr.bf16.mxu0 0
    %2695 = vmatpush1.bf16.msra.mxu0 %v1944
    %2696 = vmatprep.subr.bf16.mxu0 0
    %2697 = vmatpush1.bf16.msra.mxu0 %v1945
    %2698 = vmatprep.subr.bf16.mxu0 0
    %2699 = vmatpush1.bf16.msra.mxu0 %v1946
    %2700 = vmatprep.subr.bf16.mxu0 0
    %2701 = vmatpush1.bf16.msra.mxu0 %v1947
    %2702 = vmatprep.subr.bf16.mxu0 0
    %2703 = vmatpush1.bf16.msra.mxu0 %v1948
    %2704 = vmatprep.subr.bf16.mxu0 0
    %2705 = vmatpush1.bf16.msra.mxu0 %v1949
    %2706 = vmatprep.subr.bf16.mxu0 0
    %2707 = vmatpush1.bf16.msra.mxu0 %v1950
    %2708 = vmatprep.subr.bf16.mxu0 0
    %2709 = vmatpush1.bf16.msra.mxu0 %v1951
    %2710 = vmatprep.mubr.bf16.mxu0 %v2629
    %2711 = vmatmul.mubr.bf16.gmra.mrb[0].mxu0 %v2628
    %v2712 = vpop.f32.mrb[0].mxu0
    %v2713 = vadd.f32 %v2673, %v2712
    %v2714 = vpop.f32.mrb[0].mxu0
    %v2715 = vpop.f32.mrb[0].mxu0
    %v2716 = vpop.f32.mrb[0].mxu0
    %2717 = vdwg.mxu0
    %2718 = vmatprep.subr.bf16.mxu0 0
    %2719 = vmatpush1.bf16.msra.mxu0 %v1952
    %2720 = vmatprep.subr.bf16.mxu0 0
    %2721 = vmatpush1.bf16.msra.mxu0 %v1953
    %2722 = vmatprep.subr.bf16.mxu0 0
    %2723 = vmatpush1.bf16.msra.mxu0 %v1954
    %2724 = vmatprep.subr.bf16.mxu0 0
    %2725 = vmatpush1.bf16.msra.mxu0 %v1955
    %2726 = vmatprep.subr.bf16.mxu0 0
    %2727 = vmatpush1.bf16.msra.mxu0 %v1956
    %2728 = vmatprep.subr.bf16.mxu0 0
    %2729 = vmatpush1.bf16.msra.mxu0 %v1957
    %2730 = vmatprep.subr.bf16.mxu0 0
    %2731 = vmatpush1.bf16.msra.mxu0 %v1958
    %2732 = vmatprep.subr.bf16.mxu0 0
    %2733 = vmatpush1.bf16.msra.mxu0 %v1959
    %2734 = vmatprep.subr.bf16.mxu0 0
    %2735 = vmatpush1.bf16.msra.mxu0 %v1960
    %2736 = vmatprep.subr.bf16.mxu0 0
    %2737 = vmatpush1.bf16.msra.mxu0 %v1961
    %2738 = vmatprep.subr.bf16.mxu0 0
    %2739 = vmatpush1.bf16.msra.mxu0 %v1962
    %2740 = vmatprep.subr.bf16.mxu0 0
    %2741 = vmatpush1.bf16.msra.mxu0 %v1963
    %2742 = vmatprep.subr.bf16.mxu0 0
    %2743 = vmatpush1.bf16.msra.mxu0 %v1964
    %2744 = vmatprep.subr.bf16.mxu0 0
    %2745 = vmatpush1.bf16.msra.mxu0 %v1965
    %2746 = vmatprep.subr.bf16.mxu0 0
    %2747 = vmatpush1.bf16.msra.mxu0 %v1966
    %2748 = vmatprep.subr.bf16.mxu0 0
    %2749 = vmatpush1.bf16.msra.mxu0 %v1967
    %2750 = vmatprep.mubr.bf16.mxu0 %v2631
    %2751 = vmatmul.mubr.bf16.gmra.mrb[0].mxu0 %v2630
    %v2752 = vpop.f32.mrb[0].mxu0
    %v2753 = vadd.f32 %v2713, %v2752
    %v2754 = vpop.f32.mrb[0].mxu0
    %v2755 = vpop.f32.mrb[0].mxu0
    %v2756 = vpop.f32.mrb[0].mxu0
    %2757 = vdwg.mxu0
    %2758 = vst [vmem:[#allocation15] sm:$0xf] %v2753
    %v2759 = vld [vmem:[%s11] sm:$0x3f]
    %v2761 = vlaneseq
    %v2762 = vshrl.u32 %v2761, 7
    %v2763 = vsub.s32 0, %v2762
    %v2764 = vrot.slane %v2759, %v2763
    %v2765 = vlaneseq
    %v2766 = vshrl.u32 %v2765, 7
    %v2767 = vsub.s32 1, %v2766
    %v2768 = vrot.slane %v2759, %v2767
    %v2769 = vlaneseq
    %v2770 = vshrl.u32 %v2769, 7
    %v2771 = vsub.s32 2, %v2770
    %v2772 = vrot.slane %v2759, %v2771
    %v2773 = vlaneseq
    %v2774 = vshrl.u32 %v2773, 7
    %v2775 = vsub.s32 3, %v2774
    %v2776 = vrot.slane %v2759, %v2775
    %v2777 = vlaneseq
    %v2778 = vshrl.u32 %v2777, 7
    %v2779 = vsub.s32 4, %v2778
    %v2780 = vrot.slane %v2759, %v2779
    %v2781 = vlaneseq
    %v2782 = vshrl.u32 %v2781, 7
    %v2783 = vsub.s32 5, %v2782
    %v2784 = vrot.slane %v2759, %v2783
    %v2791 = vpack.c.bf16 %v2764, %v2764
    %v2792 = vpack.c.bf16 %v2768, %v2768
    %v2793 = vpack.c.bf16 %v2772, %v2772
    %v2794 = vpack.c.bf16 %v2776, %v2776
    %v2795 = vpack.c.bf16 %v2780, %v2780
    %v2796 = vpack.c.bf16 %v2784, %v2784
    %2797 = vmatprep.subr.bf16.mxu0 0
    %2798 = vmatpush1.bf16.msra.mxu0 %v1920
    %2799 = vmatprep.subr.bf16.mxu0 0
    %2800 = vmatpush1.bf16.msra.mxu0 %v1921
    %2801 = vmatprep.subr.bf16.mxu0 0
    %2802 = vmatpush1.bf16.msra.mxu0 %v1922
    %2803 = vmatprep.subr.bf16.mxu0 0
    %2804 = vmatpush1.bf16.msra.mxu0 %v1923
    %2805 = vmatprep.subr.bf16.mxu0 0
    %2806 = vmatpush1.bf16.msra.mxu0 %v1924
    %2807 = vmatprep.subr.bf16.mxu0 0
    %2808 = vmatpush1.bf16.msra.mxu0 %v1925
    %2809 = vmatprep.subr.bf16.mxu0 0
    %2810 = vmatpush1.bf16.msra.mxu0 %v1926
    %2811 = vmatprep.subr.bf16.mxu0 0
    %2812 = vmatpush1.bf16.msra.mxu0 %v1927
    %2813 = vmatprep.subr.bf16.mxu0 0
    %2814 = vmatpush1.bf16.msra.mxu0 %v1928
    %2815 = vmatprep.subr.bf16.mxu0 0
    %2816 = vmatpush1.bf16.msra.mxu0 %v1929
    %2817 = vmatprep.subr.bf16.mxu0 0
    %2818 = vmatpush1.bf16.msra.mxu0 %v1930
    %2819 = vmatprep.subr.bf16.mxu0 0
    %2820 = vmatpush1.bf16.msra.mxu0 %v1931
    %2821 = vmatprep.subr.bf16.mxu0 0
    %2822 = vmatpush1.bf16.msra.mxu0 %v1932
    %2823 = vmatprep.subr.bf16.mxu0 0
    %2824 = vmatpush1.bf16.msra.mxu0 %v1933
    %2825 = vmatprep.subr.bf16.mxu0 0
    %2826 = vmatpush1.bf16.msra.mxu0 %v1934
    %2827 = vmatprep.subr.bf16.mxu0 0
    %2828 = vmatpush1.bf16.msra.mxu0 %v1935
    %2829 = vmatprep.mubr.bf16.mxu0 %v2792
    %2830 = vmatmul.mubr.bf16.gmra.mrb[0].mxu0 %v2791
    %v2831 = vpop.f32.mrb[0].mxu0
    %v2832 = vadd.f32 0.0, %v2831
    %v2833 = vpop.f32.mrb[0].mxu0
    %v2834 = vpop.f32.mrb[0].mxu0
    %v2835 = vpop.f32.mrb[0].mxu0
    %2836 = vdwg.mxu0
    %2837 = vmatprep.subr.bf16.mxu0 0
    %2838 = vmatpush1.bf16.msra.mxu0 %v1936
    %2839 = vmatprep.subr.bf16.mxu0 0
    %2840 = vmatpush1.bf16.msra.mxu0 %v1937
    %2841 = vmatprep.subr.bf16.mxu0 0
    %2842 = vmatpush1.bf16.msra.mxu0 %v1938
    %2843 = vmatprep.subr.bf16.mxu0 0
    %2844 = vmatpush1.bf16.msra.mxu0 %v1939
    %2845 = vmatprep.subr.bf16.mxu0 0
    %2846 = vmatpush1.bf16.msra.mxu0 %v1940
    %2847 = vmatprep.subr.bf16.mxu0 0
    %2848 = vmatpush1.bf16.msra.mxu0 %v1941
    %2849 = vmatprep.subr.bf16.mxu0 0
    %2850 = vmatpush1.bf16.msra.mxu0 %v1942
    %2851 = vmatprep.subr.bf16.mxu0 0
    %2852 = vmatpush1.bf16.msra.mxu0 %v1943
    %2853 = vmatprep.subr.bf16.mxu0 0
    %2854 = vmatpush1.bf16.msra.mxu0 %v1944
    %2855 = vmatprep.subr.bf16.mxu0 0
    %2856 = vmatpush1.bf16.msra.mxu0 %v1945
    %2857 = vmatprep.subr.bf16.mxu0 0
    %2858 = vmatpush1.bf16.msra.mxu0 %v1946
    %2859 = vmatprep.subr.bf16.mxu0 0
    %2860 = vmatpush1.bf16.msra.mxu0 %v1947
    %2861 = vmatprep.subr.bf16.mxu0 0
    %2862 = vmatpush1.bf16.msra.mxu0 %v1948
    %2863 = vmatprep.subr.bf16.mxu0 0
    %2864 = vmatpush1.bf16.msra.mxu0 %v1949
    %2865 = vmatprep.subr.bf16.mxu0 0
    %2866 = vmatpush1.bf16.msra.mxu0 %v1950
    %2867 = vmatprep.subr.bf16.mxu0 0
    %2868 = vmatpush1.bf16.msra.mxu0 %v1951
    %2869 = vmatprep.mubr.bf16.mxu0 %v2794
    %2870 = vmatmul.mubr.bf16.gmra.mrb[0].mxu0 %v2793
    %v2871 = vpop.f32.mrb[0].mxu0
    %v2872 = vadd.f32 %v2832, %v2871
    %v2873 = vpop.f32.mrb[0].mxu0
    %v2874 = vpop.f32.mrb[0].mxu0
    %v2875 = vpop.f32.mrb[0].mxu0
    %2876 = vdwg.mxu0
    %2877 = vmatprep.subr.bf16.mxu0 0
    %2878 = vmatpush1.bf16.msra.mxu0 %v1952
    %2879 = vmatprep.subr.bf16.mxu0 0
    %2880 = vmatpush1.bf16.msra.mxu0 %v1953
    %2881 = vmatprep.subr.bf16.mxu0 0
    %2882 = vmatpush1.bf16.msra.mxu0 %v1954
    %2883 = vmatprep.subr.bf16.mxu0 0
    %2884 = vmatpush1.bf16.msra.mxu0 %v1955
    %2885 = vmatprep.subr.bf16.mxu0 0
    %2886 = vmatpush1.bf16.msra.mxu0 %v1956
    %2887 = vmatprep.subr.bf16.mxu0 0
    %2888 = vmatpush1.bf16.msra.mxu0 %v1957
    %2889 = vmatprep.subr.bf16.mxu0 0
    %2890 = vmatpush1.bf16.msra.mxu0 %v1958
    %2891 = vmatprep.subr.bf16.mxu0 0
    %2892 = vmatpush1.bf16.msra.mxu0 %v1959
    %2893 = vmatprep.subr.bf16.mxu0 0
    %2894 = vmatpush1.bf16.msra.mxu0 %v1960
    %2895 = vmatprep.subr.bf16.mxu0 0
    %2896 = vmatpush1.bf16.msra.mxu0 %v1961
    %2897 = vmatprep.subr.bf16.mxu0 0
    %2898 = vmatpush1.bf16.msra.mxu0 %v1962
    %2899 = vmatprep.subr.bf16.mxu0 0
    %2900 = vmatpush1.bf16.msra.mxu0 %v1963
    %2901 = vmatprep.subr.bf16.mxu0 0
    %2902 = vmatpush1.bf16.msra.mxu0 %v1964
    %2903 = vmatprep.subr.bf16.mxu0 0
    %2904 = vmatpush1.bf16.msra.mxu0 %v1965
    %2905 = vmatprep.subr.bf16.mxu0 0
    %2906 = vmatpush1.bf16.msra.mxu0 %v1966
    %2907 = vmatprep.subr.bf16.mxu0 0
    %2908 = vmatpush1.bf16.msra.mxu0 %v1967
    %2909 = vmatprep.mubr.bf16.mxu0 %v2796
    %2910 = vmatmul.mubr.bf16.gmra.mrb[0].mxu0 %v2795
    %v2911 = vpop.f32.mrb[0].mxu0
    %v2912 = vadd.f32 %v2872, %v2911
    %v2913 = vpop.f32.mrb[0].mxu0
    %v2914 = vpop.f32.mrb[0].mxu0
    %v2915 = vpop.f32.mrb[0].mxu0
    %2916 = vdwg.mxu0
    %2917 = vst [vmem:[#allocation17] sm:$0x1] %v2912
    // Predicated region
    $region74: #{tpu_custom_call.1} parent=1 // pred_check
      _
    $region75: #{tpu_custom_call.1} parent=1 // pred_check_branch
      %2919 = sbr.rel (0) target = $region77
    $region76: #{tpu_custom_call.1} parent=1 // pred_region
      %s2921 = ssub.s32 64, 64
      %2922 = vsyncadd [#allocation4], %s2921
      %s2924 = sshll.u32 [#allocation11], 4
      %s2925 = int_to_ptr.vmem [resolvable:$true] %s2924
      %2927 = dma.vmem_to_hbm [thread:$0]  %s2925, 64, %s13, [#allocation4]
    $region77: #{tpu_custom_call.1} parent=1 // pred_fallthru
      _
    // Predicated region
    $region78: #{tpu_custom_call.1} parent=1 // pred_check
      _
    $region79: #{tpu_custom_call.1} parent=1 // pred_check_branch
      %2929 = sbr.rel (0) target = $region81
    $region80: #{tpu_custom_call.1} parent=1 // pred_region
      %s2931 = ssub.s32 32, 32
      %2932 = vsyncadd [#allocation13], %s2931
      %s2934 = sshll.u32 [#allocation12], 4
      %s2935 = int_to_ptr.vmem [resolvable:$true] %s2934
      %2937 = dma.vmem_to_hbm [thread:$0]  %s2935, 32, %s14, [#allocation13]
    $region81: #{tpu_custom_call.1} parent=1 // pred_fallthru
      _
    // Predicated region
    $region82: #{tpu_custom_call.1} parent=1 // pred_check
      _
    $region83: #{tpu_custom_call.1} parent=1 // pred_check_branch
      %2939 = sbr.rel (0) target = $region85
    $region84: #{tpu_custom_call.1} parent=1 // pred_region
      %s2941 = ssub.s32 64, 64
      %2942 = vsyncadd [#allocation13], %s2941
      %s2944 = sshll.u32 [#allocation14], 4
      %s2945 = int_to_ptr.vmem [resolvable:$true] %s2944
      %2947 = dma.vmem_to_hbm [thread:$0]  %s2945, 64, %s15, [#allocation13]
    $region85: #{tpu_custom_call.1} parent=1 // pred_fallthru
      _
    // Predicated region
    $region86: #{tpu_custom_call.1} parent=1 // pred_check
      _
    $region87: #{tpu_custom_call.1} parent=1 // pred_check_branch
      %2949 = sbr.rel (0) target = $region89
    $region88: #{tpu_custom_call.1} parent=1 // pred_region
      %s2951 = ssub.s32 64, 64
      %2952 = vsyncadd [#allocation16], %s2951
      %s2954 = sshll.u32 [#allocation15], 4
      %s2955 = int_to_ptr.vmem [resolvable:$true] %s2954
      %2957 = dma.vmem_to_hbm [thread:$0]  %s2955, 64, %s16, [#allocation16]
    $region89: #{tpu_custom_call.1} parent=1 // pred_fallthru
      _
    // Predicated region
    $region90: #{tpu_custom_call.1} parent=1 // pred_check
      _
    $region91: #{tpu_custom_call.1} parent=1 // pred_check_branch
      %2959 = sbr.rel (0) target = $region93
    $region92: #{tpu_custom_call.1} parent=1 // pred_region
      %s2961 = ssub.s32 16, 16
      %2962 = vsyncadd [#allocation16], %s2961
      %s2964 = sshll.u32 [#allocation17], 4
      %s2965 = int_to_ptr.vmem [resolvable:$true] %s2964
      %2967 = dma.vmem_to_hbm [thread:$0]  %s2965, 16, %s17, [#allocation16]
    $region93: #{tpu_custom_call.1} parent=1 // pred_fallthru
      _
    // Predicated region
    $region94: #{tpu_custom_call.1} parent=1 // pred_check
      _
    $region95: #{tpu_custom_call.1} parent=1 // pred_check_branch
      %2969 = sbr.rel (0) target = $region97
    $region96: #{tpu_custom_call.1} parent=1 // pred_region
      %2970 = dma.done [#allocation4], 64
    $region97: #{tpu_custom_call.1} parent=1 // pred_fallthru
      _
    // Predicated region
    $region98: #{tpu_custom_call.1} parent=1 // pred_check
      _
    $region99: #{tpu_custom_call.1} parent=1 // pred_check_branch
      %2972 = sbr.rel (0) target = $region101
    $region100: #{tpu_custom_call.1} parent=1 // pred_region
      %2973 = dma.done [#allocation13], 32
    $region101: #{tpu_custom_call.1} parent=1 // pred_fallthru
      _
    // Predicated region
    $region102: #{tpu_custom_call.1} parent=1 // pred_check
      _
    $region103: #{tpu_custom_call.1} parent=1 // pred_check_branch
      %2975 = sbr.rel (0) target = $region105
    $region104: #{tpu_custom_call.1} parent=1 // pred_region
      %2976 = dma.done [#allocation13], 64
    $region105: #{tpu_custom_call.1} parent=1 // pred_fallthru
      _
    // Predicated region
    $region106: #{tpu_custom_call.1} parent=1 // pred_check
      _
    $region107: #{tpu_custom_call.1} parent=1 // pred_check_branch
      %2978 = sbr.rel (0) target = $region109
    $region108: #{tpu_custom_call.1} parent=1 // pred_region
      %2979 = dma.done [#allocation16], 64
    $region109: #{tpu_custom_call.1} parent=1 // pred_fallthru
      _
    // Predicated region
    $region110: #{tpu_custom_call.1} parent=1 // pred_check
      _
    $region111: #{tpu_custom_call.1} parent=1 // pred_check_branch
      %2981 = sbr.rel (0) target = $region113
    $region112: #{tpu_custom_call.1} parent=1 // pred_region
      %2982 = dma.done [#allocation16], 16
    $region113: #{tpu_custom_call.1} parent=1 // pred_fallthru
      _
    %2983 = vsyncpa [#allocation3], 1
    %2984 = vsyncpa [#allocation6], 1
    %2985 = vsyncpa [#allocation9], 1
    %2986 = vsyncpa [#allocation4], 1
    %2987 = vsyncpa [#allocation13], 1
    %2988 = vsyncpa [#allocation16], 1

</llo_original>
